<compile_context>
chip_gen: v7x
topology: tpu7x:2x2x1
jax: 0.10.0
libtpu: 0.0.40
codegen_flags: <defaults>
</compile_context>

<pallas_src>
import functools
import math

import jax
import jax.numpy as jnp
import numpy as np
from jax import lax
from jax.experimental import pallas as pl
from jax.experimental.pallas import tpu as pltpu


def _pick_heads_per_group(num_heads, d_head):
    """Smallest head group whose lane extent (G*dh) is a multiple of 128
    (dense stores); falls back to all heads (full minor extent) otherwise."""
    for g in range(1, num_heads + 1):
        if num_heads % g == 0 and (g * d_head) % 128 == 0:
            return g
    return num_heads


def _rga_group_kernel(x_ref, w_ref, b_ref, er_ref, o_ref, *, d_head,
                      heads_per_group):
    """One (batch, head-group) tile: fused QKV projection + relative attention
    for `heads_per_group` heads, written lane-dense into the (B, L, D) output."""
    dh = d_head
    G = heads_per_group
    L = x_ref.shape[1]
    scale = 1.0 / math.sqrt(dh)

    # bf16 MXU operands, f32 accumulation (weights / Er already bf16).
    x = x_ref[0].astype(jnp.bfloat16)                    # (L, D)
    w = w_ref[0]                                         # (D, 3*G*dh) bf16
    bias = b_ref[0]                                      # (1, 3*G*dh) f32
    er = er_ref[...]                                     # (L, dh)     bf16

    # Single fused projection for the whole head group (lane-dense N = 3*G*dh).
    qkv = jnp.dot(x, w, preferred_element_type=jnp.float32) + bias  # (L, 3*G*dh)

    # Causal mask built once, reused by every head of the group.
    row = lax.broadcasted_iota(jnp.int32, (L, L), 0)
    col = lax.broadcasted_iota(jnp.int32, (L, L), 1)
    causal = col <= row

    contract_last = (((1,), (1,)), ((), ()))             # a @ b.T, no materialized b.T
    outs = []
    for g in range(G):                                   # static unroll over the group
        base = 3 * dh * g
        # 1/sqrt(dh) folded into q: it scales both QK^T and Srel (both from q).
        q = (qkv[:, base:base + dh] * scale).astype(jnp.bfloat16)      # (L, dh)
        k = qkv[:, base + dh:base + 2 * dh].astype(jnp.bfloat16)       # (L, dh)
        v = qkv[:, base + 2 * dh:base + 3 * dh].astype(jnp.bfloat16)   # (L, dh)

        qk = lax.dot_general(q, k, contract_last,
                             preferred_element_type=jnp.float32)       # (L, L)
        qer = lax.dot_general(q, er, contract_last,
                              preferred_element_type=jnp.float32)      # (L, L)

        # Relative skew via a single strided XLU rotation:
        #   srel[i, j] = qer[i, (j - i - 1) mod L] == qer[i, L - 1 - i + j]
        # Circularly wrapped entries only appear at j > i and are removed by
        # the causal mask below (mask applied AFTER adding srel, as in torch).
        srel = pltpu.roll(qer, 1, 1, stride=1, stride_axis=0)          # (L, L)

        # Finite mask fill (not -inf): diagonal is always unmasked, and a
        # finite value keeps any padded-row variant NaN-free.
        logits = jnp.where(causal, qk + srel, -1e30)

        m = jnp.max(logits, axis=-1, keepdims=True)
        p = jnp.exp(logits - m)
        denom = jnp.sum(p, axis=-1, keepdims=True)

        out_h = jnp.dot(p.astype(jnp.bfloat16), v,
                        preferred_element_type=jnp.float32)            # (L, dh)
        outs.append(out_h * pl.reciprocal(denom, approx=True))         # EUP divide

    out_g = outs[0] if G == 1 else jnp.concatenate(outs, axis=-1)      # (L, G*dh)
    o_ref[0] = out_g.astype(o_ref.dtype)


def pack_rga_params(wq, bq, wk, bk, wv, bv, Er, *, num_heads):
    """One-time parameter packing (call at init, NOT per forward).

    wq/wk/wv are stored pre-transposed (D_in, D_out) so y = x @ w + b matches
    torch.nn.Linear; output channel h*dh + j belongs to head h.  Returns
    (w_fused, b_fused, Er_bf16, heads_per_group) with group-local column
    layout [head0: Wq|Wk|Wv][head1: Wq|Wk|Wv]...
    """
    D = wq.shape[0]
    H = num_heads
    dh = D // H
    G = _pick_heads_per_group(H, dh)
    num_groups = H // G

    def _per_head(w):
        return w.reshape(D, H, dh).transpose(1, 0, 2)                  # (H, D, dh)

    w_qkv = jnp.concatenate([_per_head(wq), _per_head(wk), _per_head(wv)],
                            axis=-1)                                   # (H, D, 3*dh)
    w_fused = (w_qkv.reshape(num_groups, G, D, 3 * dh)
               .transpose(0, 2, 1, 3)
               .reshape(num_groups, D, G * 3 * dh)
               .astype(jnp.bfloat16))                                  # bf16 weights
    b_qkv = jnp.concatenate([bq.reshape(H, dh), bk.reshape(H, dh),
                             bv.reshape(H, dh)], axis=-1)              # (H, 3*dh)
    b_fused = b_qkv.reshape(num_groups, 1, G * 3 * dh).astype(jnp.float32)
    return w_fused, b_fused, Er.astype(jnp.bfloat16), G


def relative_global_attention(x, packed, *, num_heads, max_len):
    w_fused, b_fused, er_bf16, G = packed
    B, L, D = x.shape
    H = num_heads
    assert D % H == 0 and L <= max_len
    dh = D // H
    num_groups = H // G

    er_slice = er_bf16[max_len - L:, :]                                # (L, dh) bf16

    # --- VMEM budget: 2x each pipelined block + live intermediates ----------
    x_blk = L * D * x.dtype.itemsize
    w_blk = D * 3 * G * dh * 2
    b_blk = 3 * G * dh * 4
    er_blk = L * dh * 2
    out_blk = L * G * dh * x.dtype.itemsize
    interm = 4 * (L * 3 * G * dh + 8 * L * L + (G + 6) * L * dh + 16 * L)
    vmem_needed = 2 * (x_blk + w_blk + b_blk + er_blk + out_blk) + interm
    try:   # clamp to ~75% of physical VMEM (v5e/v6e 128 MiB, v7x 64 MiB)
        cap = int(pltpu.get_tpu_info().vmem_capacity_bytes)
    except Exception:
        cap = 64 * 1024 * 1024
    vmem_limit = int(min(max(vmem_needed, 32 * 1024 * 1024), (3 * cap) // 4))

    # --- grid order: larger re-fetched operand goes on the outer axis -------
    if w_blk + b_blk > x_blk:
        grid = (num_groups, B)                    # weights resident over inner axis
        x_map = lambda gi, b: (b, 0, 0)
        w_map = lambda gi, b: (gi, 0, 0)
        o_map = lambda gi, b: (b, 0, gi)
        x_fetches, w_fetches = num_groups * B, num_groups
    else:
        grid = (B, num_groups)                    # activations resident over inner axis
        x_map = lambda b, gi: (b, 0, 0)
        w_map = lambda b, gi: (gi, 0, 0)
        o_map = lambda b, gi: (b, 0, gi)
        x_fetches, w_fetches = B, B * num_groups
    er_map = lambda *_: (0, 0)

    flops = 2 * B * L * D * 3 * D + 3 * 2 * B * H * L * L * dh
    transcendentals = B * H * (L * L + L)
    bytes_accessed = (x_fetches * x_blk + w_fetches * (w_blk + b_blk)
                      + er_blk + B * L * D * x.dtype.itemsize)

    kernel = functools.partial(_rga_group_kernel, d_head=dh, heads_per_group=G)

    # Output is written directly in (B, L, D) layout (heads concatenated on the
    # lane axis) -> no wrapper-side transpose/reshape, no extra HBM round trip.
    return pl.pallas_call(
        kernel,
        out_shape=jax.ShapeDtypeStruct((B, L, D), x.dtype),
        grid=grid,
        in_specs=[
            pl.BlockSpec((1, L, D), x_map),               # activations (f32)
            pl.BlockSpec((1, D, 3 * G * dh), w_map),      # fused per-group W (bf16)
            pl.BlockSpec((1, 1, 3 * G * dh), w_map),      # fused per-group bias (f32)
            pl.BlockSpec((L, dh), er_map),                # Er[max_len-L:] (bf16), resident
        ],
        out_specs=pl.BlockSpec((1, L, G * dh), o_map),    # lane-dense output slab
        compiler_params=pltpu.CompilerParams(
            dimension_semantics=("parallel", "parallel"),
            vmem_limit_bytes=vmem_limit),
        cost_estimate=pl.CostEstimate(flops=int(flops),
                                      transcendentals=int(transcendentals),
                                      bytes_accessed=int(bytes_accessed)),
    )(x, w_fused, b_fused, er_slice)


def reference(x, wq, bq, wk, bk, wv, bv, Er, *, num_heads, max_len):
    """Pure-JAX f32 transcription of the PyTorch forward (incl. pad/reshape skew)."""
    B, L, D = x.shape
    H = num_heads
    dh = D // H
    k_t = (x @ wk + bk).reshape(B, L, H, dh).transpose(0, 2, 3, 1)     # (B,H,dh,L)
    v = (x @ wv + bv).reshape(B, L, H, dh).transpose(0, 2, 1, 3)       # (B,H,L,dh)
    q = (x @ wq + bq).reshape(B, L, H, dh).transpose(0, 2, 1, 3)       # (B,H,L,dh)
    start = max_len - L
    Er_t = Er[start:, :].T                                             # (dh, L)
    QEr = q @ Er_t                                                     # (B,H,L,L)
    padded = jnp.pad(QEr, ((0, 0), (0, 0), (0, 0), (1, 0)))
    Srel = padded.reshape(B, H, L + 1, L)[:, :, 1:, :]
    QK_t = q @ k_t
    attn = (QK_t + Srel) / math.sqrt(dh)
    mask = jnp.tril(jnp.ones((L, L), x.dtype))
    attn = jnp.where(mask == 0, -jnp.inf, attn)
    attn = jax.nn.softmax(attn, axis=-1)
    out = attn @ v                                                     # (B,H,L,dh)
    return out.transpose(0, 2, 1, 3).reshape(B, L, D)


if __name__ == "__main__":
    B, L, d_model, num_heads, max_len = 2, 128, 64, 4, 256
    d_head = d_model // num_heads

    key = jax.random.PRNGKey(0)
    kx, kwq, kwk, kwv, kbq, kbk, kbv, ker = jax.random.split(key, 8)

    x = jax.random.normal(kx, (B, L, d_model), jnp.float32)
    wq = jax.random.normal(kwq, (d_model, d_model), jnp.float32) * 0.1
    wk = jax.random.normal(kwk, (d_model, d_model), jnp.float32) * 0.1
    wv = jax.random.normal(kwv, (d_model, d_model), jnp.float32) * 0.1
    bq = jax.random.normal(kbq, (d_model,), jnp.float32) * 0.1
    bk = jax.random.normal(kbk, (d_model,), jnp.float32) * 0.1
    bv = jax.random.normal(kbv, (d_model,), jnp.float32) * 0.1
    Er = jax.random.normal(ker, (max_len, d_head), jnp.float32)

    # One-time parameter packing (parameter-init time, not per forward call).
    packed = pack_rga_params(wq, bq, wk, bk, wv, bv, Er, num_heads=num_heads)

    out = relative_global_attention(x, packed, num_heads=num_heads,
                                    max_len=max_len)
    out = jax.block_until_ready(out)

    ref = reference(x, wq, bq, wk, bk, wv, bv, Er,
                    num_heads=num_heads, max_len=max_len)
    ref = jax.block_until_ready(ref)

    # Tolerance accommodates bf16 MXU operands (f32 accumulation) and the EUP
    # approximate reciprocal; the reference is pure f32.
    np.testing.assert_allclose(np.asarray(out), np.asarray(ref),
                               rtol=3e-2, atol=3e-2)
    print("KERNEL_OK")
</pallas_src>

<mosaic_0001>
module attributes {stable_mosaic.version = 11 : i64} {
  func.func @_rga_group_kernel(%arg0: i32, %arg1: i32, %arg2: memref<1x128x64xf32, #tpu.memory_space<vmem>>, %arg3: memref<1x64x192xbf16, #tpu.memory_space<vmem>>, %arg4: memref<1x1x192xf32, #tpu.memory_space<vmem>>, %arg5: memref<128x16xbf16, #tpu.memory_space<vmem>>, %arg6: memref<1x128x64xf32, #tpu.memory_space<vmem>>) attributes {dimension_semantics = [#tpu.dimension_semantics<parallel>, #tpu.dimension_semantics<parallel>], iteration_bounds = array<i64: 2, 1>, scalar_prefetch = 0 : i64, scratch_operands = 0 : i64, tpu.core_type = #tpu.core_type<tc>, window_params = [{transform_indices = @transform_0, window_bounds = array<i64: 1, 128, 64>}, {transform_indices = @transform_1, window_bounds = array<i64: 1, 64, 192>}, {transform_indices = @transform_2, window_bounds = array<i64: 1, 1, 192>}, {pipeline_mode = #tpu.pipeline_mode<synchronous>, transform_indices = @transform_3, window_bounds = array<i64: 128, 16>}, {transform_indices = @transform_4, window_bounds = array<i64: 1, 128, 64>}]} {
    %c0 = arith.constant 0 : index
    %c0_0 = arith.constant 0 : index
    %c0_1 = arith.constant 0 : index
    %0 = vector.load %arg2[%c0, %c0_0, %c0_1] : memref<1x128x64xf32, #tpu.memory_space<vmem>>, vector<1x128x64xf32>
    %1 = vector.shape_cast %0 : vector<1x128x64xf32> to vector<128x64xf32>
    %2 = arith.truncf %1 : vector<128x64xf32> to vector<128x64xbf16>
    %c0_2 = arith.constant 0 : index
    %c0_3 = arith.constant 0 : index
    %c0_4 = arith.constant 0 : index
    %3 = vector.load %arg3[%c0_2, %c0_3, %c0_4] : memref<1x64x192xbf16, #tpu.memory_space<vmem>>, vector<1x64x192xbf16>
    %4 = vector.shape_cast %3 : vector<1x64x192xbf16> to vector<64x192xbf16>
    %c0_5 = arith.constant 0 : index
    %c0_6 = arith.constant 0 : index
    %c0_7 = arith.constant 0 : index
    %5 = vector.load %arg4[%c0_5, %c0_6, %c0_7] : memref<1x1x192xf32, #tpu.memory_space<vmem>>, vector<1x1x192xf32>
    %6 = vector.shape_cast %5 : vector<1x1x192xf32> to vector<1x192xf32>
    %c0_8 = arith.constant 0 : index
    %c0_9 = arith.constant 0 : index
    %7 = vector.load %arg5[%c0_8, %c0_9] : memref<128x16xbf16, #tpu.memory_space<vmem>>, vector<128x16xbf16>
    %cst = arith.constant dense<0.000000e+00> : vector<128x192xf32>
    %8 = tpu.matmul %2, %4, %cst {dimension_numbers = #tpu.dot_dimension_numbers<[1], [0], [0], [1], [0, 0, 1, 1], [], []>} : vector<128x64xbf16>, vector<64x192xbf16>, vector<128x192xf32> -> vector<128x192xf32>
    %9 = vector.broadcast %6 : vector<1x192xf32> to vector<128x192xf32>
    %10 = arith.addf %8, %9 : vector<128x192xf32>
    %11 = tpu.iota {dimensions = array<i32: 0>} : vector<128x128xi32>
    %12 = tpu.iota {dimensions = array<i32: 1>} : vector<128x128xi32>
    %13 = arith.cmpi sle, %12, %11 : vector<128x128xi32>
    %14 = vector.extract_strided_slice %10 {offsets = [0, 0], sizes = [128, 16], strides = [1, 1]} : vector<128x192xf32> to vector<128x16xf32>
    %cst_10 = arith.constant 2.500000e-01 : f32
    %15 = vector.broadcast %cst_10 : f32 to vector<128x16xf32>
    %16 = arith.mulf %14, %15 : vector<128x16xf32>
    %17 = arith.truncf %16 : vector<128x16xf32> to vector<128x16xbf16>
    %18 = vector.extract_strided_slice %10 {offsets = [0, 16], sizes = [128, 16], strides = [1, 1]} : vector<128x192xf32> to vector<128x16xf32>
    %19 = arith.truncf %18 : vector<128x16xf32> to vector<128x16xbf16>
    %20 = vector.extract_strided_slice %10 {offsets = [0, 32], sizes = [128, 16], strides = [1, 1]} : vector<128x192xf32> to vector<128x16xf32>
    %21 = arith.truncf %20 : vector<128x16xf32> to vector<128x16xbf16>
    %cst_11 = arith.constant dense<0.000000e+00> : vector<128x128xf32>
    %22 = tpu.matmul %17, %19, %cst_11 {dimension_numbers = #tpu.dot_dimension_numbers<[1], [1], [0], [0], [0, 0, 1, 0], [], []>} : vector<128x16xbf16>, vector<128x16xbf16>, vector<128x128xf32> -> vector<128x128xf32>
    %cst_12 = arith.constant dense<0.000000e+00> : vector<128x128xf32>
    %23 = tpu.matmul %17, %7, %cst_12 {dimension_numbers = #tpu.dot_dimension_numbers<[1], [1], [0], [0], [0, 0, 1, 0], [], []>} : vector<128x16xbf16>, vector<128x16xbf16>, vector<128x128xf32> -> vector<128x128xf32>
    %c1_i32 = arith.constant 1 : i32
    %24 = tpu.dynamic_rotate %23 by %c1_i32 dim 1 {stride = 1 : si32, stride_dimension = 0 : si32} : vector<128x128xf32>, i32 -> vector<128x128xf32>
    %25 = arith.addf %22, %24 : vector<128x128xf32>
    %cst_13 = arith.constant -1.000000e+30 : f32
    %26 = vector.broadcast %cst_13 : f32 to vector<128x128xf32>
    %27 = arith.select %13, %25, %26 : vector<128x128xi1>, vector<128x128xf32>
    %cst_14 = arith.constant dense<0xFF800000> : vector<128xf32>
    %28 = vector.multi_reduction <maximumf>, %27, %cst_14 [1] : vector<128x128xf32> to vector<128xf32>
    %29 = vector.shape_cast %28 : vector<128xf32> to vector<128x1xf32>
    %30 = vector.broadcast %29 : vector<128x1xf32> to vector<128x128xf32>
    %31 = arith.subf %27, %30 : vector<128x128xf32>
    %32 = math.exp %31 : vector<128x128xf32>
    %cst_15 = arith.constant dense<0.000000e+00> : vector<128xf32>
    %33 = vector.multi_reduction <add>, %32, %cst_15 [1] : vector<128x128xf32> to vector<128xf32>
    %34 = vector.shape_cast %33 : vector<128xf32> to vector<128x1xf32>
    %35 = arith.truncf %32 : vector<128x128xf32> to vector<128x128xbf16>
    %cst_16 = arith.constant dense<0.000000e+00> : vector<128x16xf32>
    %36 = tpu.matmul %35, %21, %cst_16 {dimension_numbers = #tpu.dot_dimension_numbers<[1], [0], [0], [1], [0, 0, 1, 1], [], []>} : vector<128x128xbf16>, vector<128x16xbf16>, vector<128x16xf32> -> vector<128x16xf32>
    %37 = tpu.reciprocal %34 {approx = true} : vector<128x1xf32> -> vector<128x1xf32>
    %38 = vector.broadcast %37 : vector<128x1xf32> to vector<128x16xf32>
    %39 = arith.mulf %36, %38 : vector<128x16xf32>
    %40 = vector.extract_strided_slice %10 {offsets = [0, 48], sizes = [128, 16], strides = [1, 1]} : vector<128x192xf32> to vector<128x16xf32>
    %cst_17 = arith.constant 2.500000e-01 : f32
    %41 = vector.broadcast %cst_17 : f32 to vector<128x16xf32>
    %42 = arith.mulf %40, %41 : vector<128x16xf32>
    %43 = arith.truncf %42 : vector<128x16xf32> to vector<128x16xbf16>
    %44 = vector.extract_strided_slice %10 {offsets = [0, 64], sizes = [128, 16], strides = [1, 1]} : vector<128x192xf32> to vector<128x16xf32>
    %45 = arith.truncf %44 : vector<128x16xf32> to vector<128x16xbf16>
    %46 = vector.extract_strided_slice %10 {offsets = [0, 80], sizes = [128, 16], strides = [1, 1]} : vector<128x192xf32> to vector<128x16xf32>
    %47 = arith.truncf %46 : vector<128x16xf32> to vector<128x16xbf16>
    %cst_18 = arith.constant dense<0.000000e+00> : vector<128x128xf32>
    %48 = tpu.matmul %43, %45, %cst_18 {dimension_numbers = #tpu.dot_dimension_numbers<[1], [1], [0], [0], [0, 0, 1, 0], [], []>} : vector<128x16xbf16>, vector<128x16xbf16>, vector<128x128xf32> -> vector<128x128xf32>
    %cst_19 = arith.constant dense<0.000000e+00> : vector<128x128xf32>
    %49 = tpu.matmul %43, %7, %cst_19 {dimension_numbers = #tpu.dot_dimension_numbers<[1], [1], [0], [0], [0, 0, 1, 0], [], []>} : vector<128x16xbf16>, vector<128x16xbf16>, vector<128x128xf32> -> vector<128x128xf32>
    %c1_i32_20 = arith.constant 1 : i32
    %50 = tpu.dynamic_rotate %49 by %c1_i32_20 dim 1 {stride = 1 : si32, stride_dimension = 0 : si32} : vector<128x128xf32>, i32 -> vector<128x128xf32>
    %51 = arith.addf %48, %50 : vector<128x128xf32>
    %cst_21 = arith.constant -1.000000e+30 : f32
    %52 = vector.broadcast %cst_21 : f32 to vector<128x128xf32>
    %53 = arith.select %13, %51, %52 : vector<128x128xi1>, vector<128x128xf32>
    %cst_22 = arith.constant dense<0xFF800000> : vector<128xf32>
    %54 = vector.multi_reduction <maximumf>, %53, %cst_22 [1] : vector<128x128xf32> to vector<128xf32>
    %55 = vector.shape_cast %54 : vector<128xf32> to vector<128x1xf32>
    %56 = vector.broadcast %55 : vector<128x1xf32> to vector<128x128xf32>
    %57 = arith.subf %53, %56 : vector<128x128xf32>
    %58 = math.exp %57 : vector<128x128xf32>
    %cst_23 = arith.constant dense<0.000000e+00> : vector<128xf32>
    %59 = vector.multi_reduction <add>, %58, %cst_23 [1] : vector<128x128xf32> to vector<128xf32>
    %60 = vector.shape_cast %59 : vector<128xf32> to vector<128x1xf32>
    %61 = arith.truncf %58 : vector<128x128xf32> to vector<128x128xbf16>
    %cst_24 = arith.constant dense<0.000000e+00> : vector<128x16xf32>
    %62 = tpu.matmul %61, %47, %cst_24 {dimension_numbers = #tpu.dot_dimension_numbers<[1], [0], [0], [1], [0, 0, 1, 1], [], []>} : vector<128x128xbf16>, vector<128x16xbf16>, vector<128x16xf32> -> vector<128x16xf32>
    %63 = tpu.reciprocal %60 {approx = true} : vector<128x1xf32> -> vector<128x1xf32>
    %64 = vector.broadcast %63 : vector<128x1xf32> to vector<128x16xf32>
    %65 = arith.mulf %62, %64 : vector<128x16xf32>
    %66 = vector.extract_strided_slice %10 {offsets = [0, 96], sizes = [128, 16], strides = [1, 1]} : vector<128x192xf32> to vector<128x16xf32>
    %cst_25 = arith.constant 2.500000e-01 : f32
    %67 = vector.broadcast %cst_25 : f32 to vector<128x16xf32>
    %68 = arith.mulf %66, %67 : vector<128x16xf32>
    %69 = arith.truncf %68 : vector<128x16xf32> to vector<128x16xbf16>
    %70 = vector.extract_strided_slice %10 {offsets = [0, 112], sizes = [128, 16], strides = [1, 1]} : vector<128x192xf32> to vector<128x16xf32>
    %71 = arith.truncf %70 : vector<128x16xf32> to vector<128x16xbf16>
    %72 = vector.extract_strided_slice %10 {offsets = [0, 128], sizes = [128, 16], strides = [1, 1]} : vector<128x192xf32> to vector<128x16xf32>
    %73 = arith.truncf %72 : vector<128x16xf32> to vector<128x16xbf16>
    %cst_26 = arith.constant dense<0.000000e+00> : vector<128x128xf32>
    %74 = tpu.matmul %69, %71, %cst_26 {dimension_numbers = #tpu.dot_dimension_numbers<[1], [1], [0], [0], [0, 0, 1, 0], [], []>} : vector<128x16xbf16>, vector<128x16xbf16>, vector<128x128xf32> -> vector<128x128xf32>
    %cst_27 = arith.constant dense<0.000000e+00> : vector<128x128xf32>
    %75 = tpu.matmul %69, %7, %cst_27 {dimension_numbers = #tpu.dot_dimension_numbers<[1], [1], [0], [0], [0, 0, 1, 0], [], []>} : vector<128x16xbf16>, vector<128x16xbf16>, vector<128x128xf32> -> vector<128x128xf32>
    %c1_i32_28 = arith.constant 1 : i32
    %76 = tpu.dynamic_rotate %75 by %c1_i32_28 dim 1 {stride = 1 : si32, stride_dimension = 0 : si32} : vector<128x128xf32>, i32 -> vector<128x128xf32>
    %77 = arith.addf %74, %76 : vector<128x128xf32>
    %cst_29 = arith.constant -1.000000e+30 : f32
    %78 = vector.broadcast %cst_29 : f32 to vector<128x128xf32>
    %79 = arith.select %13, %77, %78 : vector<128x128xi1>, vector<128x128xf32>
    %cst_30 = arith.constant dense<0xFF800000> : vector<128xf32>
    %80 = vector.multi_reduction <maximumf>, %79, %cst_30 [1] : vector<128x128xf32> to vector<128xf32>
    %81 = vector.shape_cast %80 : vector<128xf32> to vector<128x1xf32>
    %82 = vector.broadcast %81 : vector<128x1xf32> to vector<128x128xf32>
    %83 = arith.subf %79, %82 : vector<128x128xf32>
    %84 = math.exp %83 : vector<128x128xf32>
    %cst_31 = arith.constant dense<0.000000e+00> : vector<128xf32>
    %85 = vector.multi_reduction <add>, %84, %cst_31 [1] : vector<128x128xf32> to vector<128xf32>
    %86 = vector.shape_cast %85 : vector<128xf32> to vector<128x1xf32>
    %87 = arith.truncf %84 : vector<128x128xf32> to vector<128x128xbf16>
    %cst_32 = arith.constant dense<0.000000e+00> : vector<128x16xf32>
    %88 = tpu.matmul %87, %73, %cst_32 {dimension_numbers = #tpu.dot_dimension_numbers<[1], [0], [0], [1], [0, 0, 1, 1], [], []>} : vector<128x128xbf16>, vector<128x16xbf16>, vector<128x16xf32> -> vector<128x16xf32>
    %89 = tpu.reciprocal %86 {approx = true} : vector<128x1xf32> -> vector<128x1xf32>
    %90 = vector.broadcast %89 : vector<128x1xf32> to vector<128x16xf32>
    %91 = arith.mulf %88, %90 : vector<128x16xf32>
    %92 = vector.extract_strided_slice %10 {offsets = [0, 144], sizes = [128, 16], strides = [1, 1]} : vector<128x192xf32> to vector<128x16xf32>
    %cst_33 = arith.constant 2.500000e-01 : f32
    %93 = vector.broadcast %cst_33 : f32 to vector<128x16xf32>
    %94 = arith.mulf %92, %93 : vector<128x16xf32>
    %95 = arith.truncf %94 : vector<128x16xf32> to vector<128x16xbf16>
    %96 = vector.extract_strided_slice %10 {offsets = [0, 160], sizes = [128, 16], strides = [1, 1]} : vector<128x192xf32> to vector<128x16xf32>
    %97 = arith.truncf %96 : vector<128x16xf32> to vector<128x16xbf16>
    %98 = vector.extract_strided_slice %10 {offsets = [0, 176], sizes = [128, 16], strides = [1, 1]} : vector<128x192xf32> to vector<128x16xf32>
    %99 = arith.truncf %98 : vector<128x16xf32> to vector<128x16xbf16>
    %cst_34 = arith.constant dense<0.000000e+00> : vector<128x128xf32>
    %100 = tpu.matmul %95, %97, %cst_34 {dimension_numbers = #tpu.dot_dimension_numbers<[1], [1], [0], [0], [0, 0, 1, 0], [], []>} : vector<128x16xbf16>, vector<128x16xbf16>, vector<128x128xf32> -> vector<128x128xf32>
    %cst_35 = arith.constant dense<0.000000e+00> : vector<128x128xf32>
    %101 = tpu.matmul %95, %7, %cst_35 {dimension_numbers = #tpu.dot_dimension_numbers<[1], [1], [0], [0], [0, 0, 1, 0], [], []>} : vector<128x16xbf16>, vector<128x16xbf16>, vector<128x128xf32> -> vector<128x128xf32>
    %c1_i32_36 = arith.constant 1 : i32
    %102 = tpu.dynamic_rotate %101 by %c1_i32_36 dim 1 {stride = 1 : si32, stride_dimension = 0 : si32} : vector<128x128xf32>, i32 -> vector<128x128xf32>
    %103 = arith.addf %100, %102 : vector<128x128xf32>
    %cst_37 = arith.constant -1.000000e+30 : f32
    %104 = vector.broadcast %cst_37 : f32 to vector<128x128xf32>
    %105 = arith.select %13, %103, %104 : vector<128x128xi1>, vector<128x128xf32>
    %cst_38 = arith.constant dense<0xFF800000> : vector<128xf32>
    %106 = vector.multi_reduction <maximumf>, %105, %cst_38 [1] : vector<128x128xf32> to vector<128xf32>
    %107 = vector.shape_cast %106 : vector<128xf32> to vector<128x1xf32>
    %108 = vector.broadcast %107 : vector<128x1xf32> to vector<128x128xf32>
    %109 = arith.subf %105, %108 : vector<128x128xf32>
    %110 = math.exp %109 : vector<128x128xf32>
    %cst_39 = arith.constant dense<0.000000e+00> : vector<128xf32>
    %111 = vector.multi_reduction <add>, %110, %cst_39 [1] : vector<128x128xf32> to vector<128xf32>
    %112 = vector.shape_cast %111 : vector<128xf32> to vector<128x1xf32>
    %113 = arith.truncf %110 : vector<128x128xf32> to vector<128x128xbf16>
    %cst_40 = arith.constant dense<0.000000e+00> : vector<128x16xf32>
    %114 = tpu.matmul %113, %99, %cst_40 {dimension_numbers = #tpu.dot_dimension_numbers<[1], [0], [0], [1], [0, 0, 1, 1], [], []>} : vector<128x128xbf16>, vector<128x16xbf16>, vector<128x16xf32> -> vector<128x16xf32>
    %115 = tpu.reciprocal %112 {approx = true} : vector<128x1xf32> -> vector<128x1xf32>
    %116 = vector.broadcast %115 : vector<128x1xf32> to vector<128x16xf32>
    %117 = arith.mulf %114, %116 : vector<128x16xf32>
    %118 = tpu.concatenate %39, %65, %91, %117 in 1 : vector<128x16xf32>, vector<128x16xf32>, vector<128x16xf32>, vector<128x16xf32> -> vector<128x64xf32>
    %c0_41 = arith.constant 0 : index
    %c0_42 = arith.constant 0 : index
    %c0_43 = arith.constant 0 : index
    %119 = vector.load %arg6[%c0_41, %c0_42, %c0_43] : memref<1x128x64xf32, #tpu.memory_space<vmem>>, vector<1x128x64xf32>
    %120 = vector.shape_cast %119 : vector<1x128x64xf32> to vector<128x64xf32>
    %121 = vector.shape_cast %118 : vector<128x64xf32> to vector<1x128x64xf32>
    tpu.vector_store %arg6[%c0_41, %c0_42, %c0_43], %121 {strides = array<i32>} : memref<1x128x64xf32, #tpu.memory_space<vmem>>, vector<1x128x64xf32>,
    return
  }
  func.func @transform_0(%arg0: i32, %arg1: i32) -> (i32, i32, i32) {
    %c0_i32 = arith.constant 0 : i32
    %c0_i32_0 = arith.constant 0 : i32
    %c0_i32_1 = arith.constant 0 : i32
    return %arg0, %c0_i32, %c0_i32_0 : i32, i32, i32
  }
  func.func @transform_1(%arg0: i32, %arg1: i32) -> (i32, i32, i32) {
    %c0_i32 = arith.constant 0 : i32
    %c0_i32_0 = arith.constant 0 : i32
    %c0_i32_1 = arith.constant 0 : i32
    return %arg1, %c0_i32, %c0_i32_0 : i32, i32, i32
  }
  func.func @transform_2(%arg0: i32, %arg1: i32) -> (i32, i32, i32) {
    %c0_i32 = arith.constant 0 : i32
    %c0_i32_0 = arith.constant 0 : i32
    %c0_i32_1 = arith.constant 0 : i32
    return %arg1, %c0_i32, %c0_i32_0 : i32, i32, i32
  }
  func.func @transform_3(%arg0: i32, %arg1: i32) -> (i32, i32) {
    %c0_i32 = arith.constant 0 : i32
    %c0_i32_0 = arith.constant 0 : i32
    %c0_i32_1 = arith.constant 0 : i32
    return %c0_i32, %c0_i32_0 : i32, i32
  }
  func.func @transform_4(%arg0: i32, %arg1: i32) -> (i32, i32, i32) {
    %c0_i32 = arith.constant 0 : i32
    %c0_i32_0 = arith.constant 0 : i32
    return %arg0, %c0_i32, %arg1 : i32, i32, i32
  }
}

</mosaic_0001>

<llo_original>
// kernel: tpu_custom_call.1
$region0: #{tpu_custom_call.1}
  #allocation0 [shape = 'u32[]', space=smem, size = 0x4, offset = 0x4, fixed_abs, tag = 'smem constant byte address 0x4 - core index']
  #allocation1 [shape = 'u32[144,128]{1,0:T(1,128)}', space=vmem, size = 0x12000, scoped, tag = 'internal scratch']
  %s0 = inlined_call_operand.vmem [shape: f32[2,128,64], index: 0, kind: input, shape index: {}]
  %s1 = inlined_call_operand.vmem [shape: bf16[1,64,192], index: 1, kind: input, shape index: {}]
  %s2 = inlined_call_operand.vmem [shape: f32[1,1,192], index: 2, kind: input, shape index: {}]
  %s3 = inlined_call_operand.vmem [shape: bf16[128,16], index: 3, kind: input, shape index: {}]
  %s4 = inlined_call_operand.vmem [shape: f32[2,128,64], index: 4, kind: output, shape index: {}]
  %s5 = sld [smem:[#allocation0]]
  $region49: #{tpu_custom_call.1} parent=0
    _
  %s7 = ssub.s32 1, %s5
  %s8 = scalar_select 0, %s7, %s5
  loop: start=0, step=1, limit=4
  $region2: #{tpu_custom_call.1} parent=0 // loop_pre_header
    _
  $region3: #{tpu_custom_call.1} parent=0 // loop_header
    %s10 = sphi 0, %s14
    %p11 = scmp.ge.s32.totalorder %s10, 4
    %s17 = sphi 0, %s29
    %s18 = sphi 0, %s25
    %s19 = sphi 0, %s17
    %s20 = sphi 0, %s18
    %s21 = sphi 0, %s19
    %s22 = sphi 0, %s20
    %s32 = sphi 0, %s34
    %s35 = sphi 0, %s32
    %s36 = sphi 0, %s35
    %s52 = sphi 0, %s36
    %s58 = sphi 0, %s60
    %s61 = sphi 0, %s58
    %s62 = sphi 0, %s61
    %s78 = sphi 0, %s62
    %s84 = sphi 0, %s86
    %s87 = sphi 0, %s84
    %s88 = sphi 0, %s87
    %s104 = sphi 0, %s88
    %s108 = sphi 0, %s108
    %s110 = sphi 0, %s108
    %s111 = sphi 0, %s110
    %s125 = sphi 0, %s111
    %s133 = sphi 0, %s135
    %s136 = sphi 0, %s133
    %s137 = sphi 0, %s136
    %s153 = sphi 0, %s137
  $region4: #{tpu_custom_call.1} parent=0 // loop_header_branch
    %13 = sbr.rel (%p11) target = $region8
  $region5: #{tpu_custom_call.1} parent=0 // loop_body
    %s15 = ssub.s32 %s10, 1
    %s16 = ssub.s32 %s10, 2
    %s23 = sadd.s32 1, %s18
    %p24 = scmp.ge.s32.totalorder %s23, 1
    %s25 = scalar_select %p24, 0, %s23
    %s26 = sadd.s32 1, %s17
    %s27 = scalar_select %p24, %s26, %s17
    %p28 = scmp.ge.s32.totalorder %s27, 2
    %s29 = scalar_select %p28, 0, %s27
    %s30 = ssub.s32 %s17, %s29
    %p31 = scmp.eq.s32.totalorder %s30, 0
    %s33 = sadd.s32 %s32, 1
    %s34 = scalar_select %p31, %s32, %s33
    %p37 = pneg %p31
    %p38 = scmp.eq.s32.totalorder %s10, 1
    %p39 = por %p37, %p38
    %p40 = scmp.ne.s32.totalorder %s32, %s35
    %p41 = scmp.eq.s32.totalorder %s10, 0
    %p42 = por %p40, %p41
    %p43 = scmp.ne.s32.totalorder %s32, %s35
    %p44 = scmp.eq.s32.totalorder %s15, 1
    %p45 = por %p43, %p44
    %p46 = scmp.ne.s32.totalorder %s35, %s36
    %p47 = scmp.eq.s32.totalorder %s15, 0
    %p48 = por %p46, %p47
    %p49 = scmp.ne.s32.totalorder %s35, %s36
    %p50 = scmp.eq.s32.totalorder %s16, 1
    %p51 = por %p49, %p50
    %p53 = scmp.ne.s32.totalorder %s36, %s52
    %p54 = scmp.eq.s32.totalorder %s16, 0
    %p55 = por %p53, %p54
    %s56 = ssub.s32 %s18, %s25
    %p57 = scmp.eq.s32.totalorder %s56, 0
    %s59 = sadd.s32 %s58, 1
    %s60 = scalar_select %p57, %s58, %s59
    %p63 = pneg %p57
    %p64 = scmp.eq.s32.totalorder %s10, 1
    %p65 = por %p63, %p64
    %p66 = scmp.ne.s32.totalorder %s58, %s61
    %p67 = scmp.eq.s32.totalorder %s10, 0
    %p68 = por %p66, %p67
    %p69 = scmp.ne.s32.totalorder %s58, %s61
    %p70 = scmp.eq.s32.totalorder %s15, 1
    %p71 = por %p69, %p70
    %p72 = scmp.ne.s32.totalorder %s61, %s62
    %p73 = scmp.eq.s32.totalorder %s15, 0
    %p74 = por %p72, %p73
    %p75 = scmp.ne.s32.totalorder %s61, %s62
    %p76 = scmp.eq.s32.totalorder %s16, 1
    %p77 = por %p75, %p76
    %p79 = scmp.ne.s32.totalorder %s62, %s78
    %p80 = scmp.eq.s32.totalorder %s16, 0
    %p81 = por %p79, %p80
    %s82 = ssub.s32 %s18, %s25
    %p83 = scmp.eq.s32.totalorder %s82, 0
    %s85 = sadd.s32 %s84, 1
    %s86 = scalar_select %p83, %s84, %s85
    %p89 = pneg %p83
    %p90 = scmp.eq.s32.totalorder %s10, 1
    %p91 = por %p89, %p90
    %p92 = scmp.ne.s32.totalorder %s84, %s87
    %p93 = scmp.eq.s32.totalorder %s10, 0
    %p94 = por %p92, %p93
    %p95 = scmp.ne.s32.totalorder %s84, %s87
    %p96 = scmp.eq.s32.totalorder %s15, 1
    %p97 = por %p95, %p96
    %p98 = scmp.ne.s32.totalorder %s87, %s88
    %p99 = scmp.eq.s32.totalorder %s15, 0
    %p100 = por %p98, %p99
    %p101 = scmp.ne.s32.totalorder %s87, %s88
    %p102 = scmp.eq.s32.totalorder %s16, 1
    %p103 = por %p101, %p102
    %p105 = scmp.ne.s32.totalorder %s88, %s104
    %p106 = scmp.eq.s32.totalorder %s16, 0
    %p107 = por %p105, %p106
    %s109 = sadd.s32 %s108, 1
    %p112 = scmp.eq.s32.totalorder %s10, 1
    %p113 = scmp.ne.s32.totalorder %s108, %s110
    %p114 = scmp.eq.s32.totalorder %s10, 0
    %p115 = por %p113, %p114
    %p116 = scmp.ne.s32.totalorder %s108, %s110
    %p117 = scmp.eq.s32.totalorder %s15, 1
    %p118 = por %p116, %p117
    %p119 = scmp.ne.s32.totalorder %s110, %s111
    %p120 = scmp.eq.s32.totalorder %s15, 0
    %p121 = por %p119, %p120
    %p122 = scmp.ne.s32.totalorder %s110, %s111
    %p123 = scmp.eq.s32.totalorder %s16, 1
    %p124 = por %p122, %p123
    %p126 = scmp.ne.s32.totalorder %s111, %s125
    %p127 = scmp.eq.s32.totalorder %s16, 0
    %p128 = por %p126, %p127
    %s129 = ssub.s32 %s17, %s29
    %s130 = ssub.s32 %s18, %s25
    %s131 = sor.u32 %s129, %s130
    %p132 = scmp.eq.s32.totalorder %s131, 0
    %s134 = sadd.s32 %s133, 1
    %s135 = scalar_select %p132, %s133, %s134
    %p138 = pneg %p132
    %p139 = scmp.eq.s32.totalorder %s10, 1
    %p140 = por %p138, %p139
    %p141 = scmp.ne.s32.totalorder %s133, %s136
    %p142 = scmp.eq.s32.totalorder %s10, 0
    %p143 = por %p141, %p142
    %p144 = scmp.ne.s32.totalorder %s133, %s136
    %p145 = scmp.eq.s32.totalorder %s15, 1
    %p146 = por %p144, %p145
    %p147 = scmp.ne.s32.totalorder %s136, %s137
    %p148 = scmp.eq.s32.totalorder %s15, 0
    %p149 = por %p147, %p148
    %p150 = scmp.ne.s32.totalorder %s136, %s137
    %p151 = scmp.eq.s32.totalorder %s16, 1
    %p152 = por %p150, %p151
    %p154 = scmp.ne.s32.totalorder %s137, %s153
    %p155 = scmp.eq.s32.totalorder %s16, 0
    %p156 = por %p154, %p155
    %p157 = scmp.le.s32.totalorder 1, %s10
    %p158 = scmp.lt.s32.totalorder %s10, 3
    %p159 = pnand %p157, %p158
    %p160 = pneg %p159
    // Predicated region
    $region9: #{tpu_custom_call.1} parent=5 // pred_check
      _
    $region10: #{tpu_custom_call.1} parent=5 // pred_check_branch
      %162 = sbr.rel (%p159) target = $region12
    $region11: #{tpu_custom_call.1} parent=5 // pred_region
      %s163 = ssub.s32 %s10, 1
      // Predicated region
      $region13: #{tpu_custom_call.1} parent=11 // pred_check
        %p164 = pneg %p74
      $region14: #{tpu_custom_call.1} parent=11 // pred_check_branch
        %166 = sbr.rel (%p164) target = $region16
      $region15: #{tpu_custom_call.1} parent=11 // pred_region
        %p167 = scmp.lt.s32.totalorder %s20, 0
        %s168 = scalar_select %p167, %s20, 0
        %s169 = smul.addr %s168, 16
        %s170 = smul.addr %s169, 4
        %s171 = scalar_lea.vmem %s1, %s170
      $region16: #{tpu_custom_call.1} parent=11 // pred_fallthru
        _
      // Predicated region
      $region17: #{tpu_custom_call.1} parent=11 // pred_check
        %p172 = pneg %p100
      $region18: #{tpu_custom_call.1} parent=11 // pred_check_branch
        %174 = sbr.rel (%p172) target = $region20
      $region19: #{tpu_custom_call.1} parent=11 // pred_region
        %p175 = scmp.lt.s32.totalorder %s20, 0
        %s176 = scalar_select %p175, %s20, 0
        %s177 = smul.addr %s176, 2
        %s178 = scalar_lea.vmem %s2, %s177
      $region20: #{tpu_custom_call.1} parent=11 // pred_fallthru
        _
      // Predicated region
      $region21: #{tpu_custom_call.1} parent=11 // pred_check
        %p179 = pneg %p121
      $region22: #{tpu_custom_call.1} parent=11 // pred_check_branch
        %181 = sbr.rel (%p179) target = $region24
      $region23: #{tpu_custom_call.1} parent=11 // pred_region
        _
      $region24: #{tpu_custom_call.1} parent=11 // pred_fallthru
        _
    $region12: #{tpu_custom_call.1} parent=5 // pred_fallthru
      _
    %p182 = scmp.lt.s32.totalorder %s10, 2
    // Predicated region
    $region25: #{tpu_custom_call.1} parent=5 // pred_check
      %p183 = pneg %p182
    $region26: #{tpu_custom_call.1} parent=5 // pred_check_branch
      %185 = sbr.rel (%p183) target = $region28
    $region27: #{tpu_custom_call.1} parent=5 // pred_region
      // Predicated region
      $region29: #{tpu_custom_call.1} parent=27 // pred_check
        %p186 = pneg %p42
      $region30: #{tpu_custom_call.1} parent=27 // pred_check_branch
        %188 = sbr.rel (%p186) target = $region32
      $region31: #{tpu_custom_call.1} parent=27 // pred_region
        %p189 = scmp.lt.s32.totalorder %s17, 1
        %s190 = scalar_select %p189, %s17, 1
        %s191 = smul.addr %s190, 16
        %s192 = smul.addr %s191, 8
        %s193 = scalar_lea.vmem %s0, %s192
      $region32: #{tpu_custom_call.1} parent=27 // pred_fallthru
        _
    $region28: #{tpu_custom_call.1} parent=5 // pred_fallthru
      _
    %p194 = scmp.le.s32.totalorder 1, %s10
    %p195 = scmp.lt.s32.totalorder %s10, 3
    %p196 = pnand %p194, %p195
    %p197 = pneg %p196
    // Predicated region
    $region33: #{tpu_custom_call.1} parent=5 // pred_check
      _
    $region34: #{tpu_custom_call.1} parent=5 // pred_check_branch
      %199 = sbr.rel (%p196) target = $region36
    $region35: #{tpu_custom_call.1} parent=5 // pred_region
      %s200 = ssub.s32 %s10, 1
      %p201 = scmp.lt.s32.totalorder %s19, 1
      %s202 = scalar_select %p201, %s19, 1
      %s203 = smul.addr %s202, 16
      %s204 = smul.addr %s203, 8
      %s205 = scalar_lea.vmem %s0, %s204
      %p206 = pneg %p48
      %p207 = pneg %p45
      %p208 = scmp.lt.s32.totalorder %s20, 0
      %s209 = scalar_select %p208, %s20, 0
      %s210 = smul.addr %s209, 16
      %s211 = smul.addr %s210, 4
      %s212 = scalar_lea.vmem %s1, %s211
      %p213 = pneg %p74
      %p214 = pneg %p71
      %p215 = scmp.lt.s32.totalorder %s20, 0
      %s216 = scalar_select %p215, %s20, 0
      %s217 = smul.addr %s216, 2
      %s218 = scalar_lea.vmem %s2, %s217
      %p219 = pneg %p100
      %p220 = pneg %p97
      %p221 = pneg %p121
      %p222 = pneg %p118
      %p223 = pneg %p149
      %p224 = pneg %p146
      %p225 = scmp.lt.s32.totalorder %s19, 1
      %s226 = scalar_select %p225, %s19, 1
      %p227 = scmp.lt.s32.totalorder %s20, 0
      %s228 = scalar_select %p227, %s20, 0
      %s229 = smul.addr %s226, 16
      %s230 = sadd.s32 %s228, %s229
      %s231 = smul.addr %s230, 8
      %s232 = scalar_lea.vmem %s4, %s231
      %p233 = scmp.lt.s32.totalorder %s19, 1
      %s234 = scalar_select %p233, %s19, 1
      %s235 = smul.addr %s234, 16
      %s236 = smul.addr %s235, 8
      %s237 = scalar_lea.vmem %s0, %s236
      %p238 = scmp.lt.s32.totalorder %s20, 0
      %s239 = scalar_select %p238, %s20, 0
      %s240 = smul.addr %s239, 16
      %s241 = smul.addr %s240, 4
      %s242 = scalar_lea.vmem %s1, %s241
      %p243 = scmp.lt.s32.totalorder %s20, 0
      %s244 = scalar_select %p243, %s20, 0
      %s245 = smul.addr %s244, 2
      %s246 = scalar_lea.vmem %s2, %s245
      %p247 = scmp.lt.s32.totalorder %s19, 1
      %s248 = scalar_select %p247, %s19, 1
      %p249 = scmp.lt.s32.totalorder %s20, 0
      %s250 = scalar_select %p249, %s20, 0
      %s251 = smul.addr %s248, 16
      %s252 = sadd.s32 %s250, %s251
      %s253 = smul.addr %s252, 8
      %s254 = scalar_lea.vmem %s4, %s253
      %v256 = vld [vmem:[%s237] sm:$0xff]
      %v257 = vld [vmem:[%s237 + $0x8] sm:$0xff]
      %v258 = vld [vmem:[%s237 + $0x10] sm:$0xff]
      %v259 = vld [vmem:[%s237 + $0x18] sm:$0xff]
      %v260 = vld [vmem:[%s237 + $0x20] sm:$0xff]
      %v261 = vld [vmem:[%s237 + $0x28] sm:$0xff]
      %v262 = vld [vmem:[%s237 + $0x30] sm:$0xff]
      %v263 = vld [vmem:[%s237 + $0x38] sm:$0xff]
      %v264 = vld [vmem:[%s237 + $0x40] sm:$0xff]
      %v265 = vld [vmem:[%s237 + $0x48] sm:$0xff]
      %v266 = vld [vmem:[%s237 + $0x50] sm:$0xff]
      %v267 = vld [vmem:[%s237 + $0x58] sm:$0xff]
      %v268 = vld [vmem:[%s237 + $0x60] sm:$0xff]
      %v269 = vld [vmem:[%s237 + $0x68] sm:$0xff]
      %v270 = vld [vmem:[%s237 + $0x70] sm:$0xff]
      %v271 = vld [vmem:[%s237 + $0x78] sm:$0xff]
      %v272 = vpack.c.bf16 %v257, %v256
      %v273 = vpack.c.bf16 %v259, %v258
      %v274 = vpack.c.bf16 %v261, %v260
      %v275 = vpack.c.bf16 %v263, %v262
      %v276 = vpack.c.bf16 %v265, %v264
      %v277 = vpack.c.bf16 %v267, %v266
      %v278 = vpack.c.bf16 %v269, %v268
      %v279 = vpack.c.bf16 %v271, %v270
      %v280 = vld [vmem:[%s242] sm:$0xff]
      %v281 = vld [vmem:[%s242 + $0x8] sm:$0xff]
      %v282 = vld [vmem:[%s242 + $0x10] sm:$0xff]
      %v283 = vld [vmem:[%s242 + $0x18] sm:$0xff]
      %v284 = vld [vmem:[%s242 + $0x20] sm:$0xff]
      %v285 = vld [vmem:[%s242 + $0x28] sm:$0xff]
      %v286 = vld [vmem:[%s242 + $0x30] sm:$0xff]
      %v287 = vld [vmem:[%s242 + $0x38] sm:$0xff]
      %v288 = vld [vmem:[%s246] sm:$0x3]
      %v289 = vld [vmem:[%s3] sm:$0xf]
      %v290 = vld [vmem:[%s3 + $0x4] sm:$0xf]
      %v291 = vld [vmem:[%s3 + $0x8] sm:$0xf]
      %v292 = vld [vmem:[%s3 + $0xc] sm:$0xf]
      %v293 = vld [vmem:[%s3 + $0x10] sm:$0xf]
      %v294 = vld [vmem:[%s3 + $0x14] sm:$0xf]
      %v295 = vld [vmem:[%s3 + $0x18] sm:$0xf]
      %v296 = vld [vmem:[%s3 + $0x1c] sm:$0xf]
      %v297 = vld [vmem:[%s3 + $0x20] sm:$0xf]
      %v298 = vld [vmem:[%s3 + $0x24] sm:$0xf]
      %v299 = vld [vmem:[%s3 + $0x28] sm:$0xf]
      %v300 = vld [vmem:[%s3 + $0x2c] sm:$0xf]
      %v301 = vld [vmem:[%s3 + $0x30] sm:$0xf]
      %v302 = vld [vmem:[%s3 + $0x34] sm:$0xf]
      %v303 = vld [vmem:[%s3 + $0x38] sm:$0xf]
      %v304 = vld [vmem:[%s3 + $0x3c] sm:$0xf]
      %v306 = vlaneseq
      %v307 = vshrl.u32 %v306, 7
      %v308 = vsub.s32 0, %v307
      %v309 = vrot.slane %v288, %v308
      %v310 = vlaneseq
      %v311 = vshrl.u32 %v310, 7
      %v312 = vsub.s32 1, %v311
      %v313 = vrot.slane %v288, %v312
      %v324 = vunpack.c.l.b16 %v280
      %v325 = vunpack.c.h.b16 %v280
      %v326 = vunpack.c.l.b16 %v281
      %v327 = vunpack.c.h.b16 %v281
      %v328 = vunpack.c.l.b16 %v282
      %v329 = vunpack.c.h.b16 %v282
      %v330 = vunpack.c.l.b16 %v283
      %v331 = vunpack.c.h.b16 %v283
      %v332 = vunpack.c.l.b16 %v284
      %v333 = vunpack.c.h.b16 %v284
      %v334 = vunpack.c.l.b16 %v285
      %v335 = vunpack.c.h.b16 %v285
      %v336 = vunpack.c.l.b16 %v286
      %v337 = vunpack.c.h.b16 %v286
      %v338 = vunpack.c.l.b16 %v287
      %v339 = vunpack.c.h.b16 %v287
      %v340 = vpack.c.b16 %v326, %v324
      %v341 = vpack.c.b16 %v327, %v325
      %v342 = vpack.c.b16 %v330, %v328
      %v343 = vpack.c.b16 %v331, %v329
      %v344 = vpack.c.b16 %v334, %v332
      %v345 = vpack.c.b16 %v335, %v333
      %v346 = vpack.c.b16 %v338, %v336
      %v347 = vpack.c.b16 %v339, %v337
      %vm356 = vcmask 523264
      %v358 = vsel %vm356, %v272, 0
      %v361 = vsel %vm356, %v273, 0
      %v364 = vsel %vm356, %v274, 0
      %v367 = vsel %vm356, %v275, 0
      %v370 = vsel %vm356, %v276, 0
      %v373 = vsel %vm356, %v277, 0
      %v376 = vsel %vm356, %v278, 0
      %v379 = vsel %vm356, %v279, 0
      %381 = vmatprep.subr.bf16.mxu0 %v341
      %382 = vmatpush1.bf16.msra.mxu0 %v340
      %383 = vmatprep.subr.bf16.mxu0 %v343
      %384 = vmatpush1.bf16.msra.mxu0 %v342
      %385 = vmatprep.subr.bf16.mxu0 %v345
      %386 = vmatpush1.bf16.msra.mxu0 %v344
      %387 = vmatprep.subr.bf16.mxu0 %v347
      %388 = vmatpush1.bf16.msra.mxu0 %v346
      %389 = vmatprep.subr.bf16.mxu0 0
      %390 = vmatpush1.bf16.msra.mxu0 0
      %391 = vmatprep.subr.bf16.mxu0 0
      %392 = vmatpush1.bf16.msra.mxu0 0
      %393 = vmatprep.subr.bf16.mxu0 0
      %394 = vmatpush1.bf16.msra.mxu0 0
      %395 = vmatprep.subr.bf16.mxu0 0
      %396 = vmatpush1.bf16.msra.mxu0 0
      %397 = vmatprep.subr.bf16.mxu0 0
      %398 = vmatpush1.bf16.msra.mxu0 0
      %399 = vmatprep.subr.bf16.mxu0 0
      %400 = vmatpush1.bf16.msra.mxu0 0
      %401 = vmatprep.subr.bf16.mxu0 0
      %402 = vmatpush1.bf16.msra.mxu0 0
      %403 = vmatprep.subr.bf16.mxu0 0
      %404 = vmatpush1.bf16.msra.mxu0 0
      %405 = vmatprep.subr.bf16.mxu0 0
      %406 = vmatpush1.bf16.msra.mxu0 0
      %407 = vmatprep.subr.bf16.mxu0 0
      %408 = vmatpush1.bf16.msra.mxu0 0
      %409 = vmatprep.subr.bf16.mxu0 0
      %410 = vmatpush1.bf16.msra.mxu0 0
      %411 = vmatprep.subr.bf16.mxu0 0
      %412 = vmatpush1.bf16.msra.mxu0 0
      %413 = vmatprep.mubr.bf16.mxu0 0
      %414 = vmatmul.mubr.bf16.gmra.mrb[0].mxu0 %v358
      %v415 = vpop.f32.mrb[0].mxu0
      %v416 = vadd.f32 %v309, %v415
      %v417 = vpop.f32.mrb[0].mxu0
      %v418 = vadd.f32 %v313, %v417
      %v419 = vpop.f32.mrb[0].mxu0
      %v420 = vadd.f32 %v309, %v419
      %v421 = vpop.f32.mrb[0].mxu0
      %v422 = vadd.f32 %v313, %v421
      %423 = vmatprep.mubr.bf16.mxu0 0
      %424 = vmatmul.mubr.bf16.gmra.mrb[0].mxu0 %v361
      %v425 = vpop.f32.mrb[0].mxu0
      %v426 = vadd.f32 %v309, %v425
      %v427 = vpop.f32.mrb[0].mxu0
      %v428 = vadd.f32 %v313, %v427
      %v429 = vpop.f32.mrb[0].mxu0
      %v430 = vadd.f32 %v309, %v429
      %v431 = vpop.f32.mrb[0].mxu0
      %v432 = vadd.f32 %v313, %v431
      %433 = vmatprep.mubr.bf16.mxu0 0
      %434 = vmatmul.mubr.bf16.gmra.mrb[0].mxu0 %v364
      %v435 = vpop.f32.mrb[0].mxu0
      %v436 = vadd.f32 %v309, %v435
      %v437 = vpop.f32.mrb[0].mxu0
      %v438 = vadd.f32 %v313, %v437
      %v439 = vpop.f32.mrb[0].mxu0
      %v440 = vadd.f32 %v309, %v439
      %v441 = vpop.f32.mrb[0].mxu0
      %v442 = vadd.f32 %v313, %v441
      %443 = vmatprep.mubr.bf16.mxu0 0
      %444 = vmatmul.mubr.bf16.gmra.mrb[0].mxu0 %v367
      %v445 = vpop.f32.mrb[0].mxu0
      %v446 = vadd.f32 %v309, %v445
      %v447 = vpop.f32.mrb[0].mxu0
      %v448 = vadd.f32 %v313, %v447
      %v449 = vpop.f32.mrb[0].mxu0
      %v450 = vadd.f32 %v309, %v449
      %v451 = vpop.f32.mrb[0].mxu0
      %v452 = vadd.f32 %v313, %v451
      %453 = vmatprep.mubr.bf16.mxu0 0
      %454 = vmatmul.mubr.bf16.gmra.mrb[0].mxu0 %v370
      %v455 = vpop.f32.mrb[0].mxu0
      %v456 = vadd.f32 %v309, %v455
      %v457 = vpop.f32.mrb[0].mxu0
      %v458 = vadd.f32 %v313, %v457
      %v459 = vpop.f32.mrb[0].mxu0
      %v460 = vadd.f32 %v309, %v459
      %v461 = vpop.f32.mrb[0].mxu0
      %v462 = vadd.f32 %v313, %v461
      %463 = vmatprep.mubr.bf16.mxu0 0
      %464 = vmatmul.mubr.bf16.gmra.mrb[0].mxu0 %v373
      %v465 = vpop.f32.mrb[0].mxu0
      %v466 = vadd.f32 %v309, %v465
      %v467 = vpop.f32.mrb[0].mxu0
      %v468 = vadd.f32 %v313, %v467
      %v469 = vpop.f32.mrb[0].mxu0
      %v470 = vadd.f32 %v309, %v469
      %v471 = vpop.f32.mrb[0].mxu0
      %v472 = vadd.f32 %v313, %v471
      %473 = vmatprep.mubr.bf16.mxu0 0
      %474 = vmatmul.mubr.bf16.gmra.mrb[0].mxu0 %v376
      %v475 = vpop.f32.mrb[0].mxu0
      %v476 = vadd.f32 %v309, %v475
      %v477 = vpop.f32.mrb[0].mxu0
      %v478 = vadd.f32 %v313, %v477
      %v479 = vpop.f32.mrb[0].mxu0
      %v480 = vadd.f32 %v309, %v479
      %v481 = vpop.f32.mrb[0].mxu0
      %v482 = vadd.f32 %v313, %v481
      %483 = vmatprep.mubr.bf16.mxu0 0
      %484 = vmatmul.mubr.bf16.gmra.mrb[0].mxu0 %v379
      %v485 = vpop.f32.mrb[0].mxu0
      %v486 = vadd.f32 %v309, %v485
      %v487 = vpop.f32.mrb[0].mxu0
      %v488 = vadd.f32 %v313, %v487
      %v489 = vpop.f32.mrb[0].mxu0
      %v490 = vadd.f32 %v309, %v489
      %v491 = vpop.f32.mrb[0].mxu0
      %v492 = vadd.f32 %v313, %v491
      %493 = vdwg.mxu0
      %v494 = vlaneseq
      %v495 = vshrl.u32 %v494, 7
      %v496 = vadd.s32 %v495, 8
      %v497 = vadd.s32 %v495, 16
      %v498 = vadd.s32 %v495, 24
      %v499 = vadd.s32 %v495, 32
      %v500 = vadd.s32 %v495, 40
      %v501 = vadd.s32 %v495, 48
      %v502 = vadd.s32 %v495, 56
      %v503 = vadd.s32 %v495, 64
      %v504 = vadd.s32 %v495, 72
      %v505 = vadd.s32 %v495, 80
      %v506 = vadd.s32 %v495, 88
      %v507 = vadd.s32 %v495, 96
      %v508 = vadd.s32 %v495, 104
      %v509 = vadd.s32 %v495, 112
      %v510 = vadd.s32 %v495, 120
      %v511 = vlaneseq
      %v512 = vand.u32 %v511, 127
      %vm513 = vcmp.le.s32.totalorder %v512, %v495
      %vm514 = vcmp.le.s32.totalorder %v512, %v496
      %vm515 = vcmp.le.s32.totalorder %v512, %v497
      %vm516 = vcmp.le.s32.totalorder %v512, %v498
      %vm517 = vcmp.le.s32.totalorder %v512, %v499
      %vm518 = vcmp.le.s32.totalorder %v512, %v500
      %vm519 = vcmp.le.s32.totalorder %v512, %v501
      %vm520 = vcmp.le.s32.totalorder %v512, %v502
      %vm521 = vcmp.le.s32.totalorder %v512, %v503
      %vm522 = vcmp.le.s32.totalorder %v512, %v504
      %vm523 = vcmp.le.s32.totalorder %v512, %v505
      %vm524 = vcmp.le.s32.totalorder %v512, %v506
      %vm525 = vcmp.le.s32.totalorder %v512, %v507
      %vm526 = vcmp.le.s32.totalorder %v512, %v508
      %vm527 = vcmp.le.s32.totalorder %v512, %v509
      %vm528 = vcmp.le.s32.totalorder %v512, %v510
      %v529 = vmul.f32 %v416, 0.25
      %v530 = vmul.f32 %v420, 0.25
      %v531 = vmul.f32 %v426, 0.25
      %v532 = vmul.f32 %v430, 0.25
      %v533 = vmul.f32 %v436, 0.25
      %v534 = vmul.f32 %v440, 0.25
      %v535 = vmul.f32 %v446, 0.25
      %v536 = vmul.f32 %v450, 0.25
      %v537 = vmul.f32 %v456, 0.25
      %v538 = vmul.f32 %v460, 0.25
      %v539 = vmul.f32 %v466, 0.25
      %v540 = vmul.f32 %v470, 0.25
      %v541 = vmul.f32 %v476, 0.25
      %v542 = vmul.f32 %v480, 0.25
      %v543 = vmul.f32 %v486, 0.25
      %v544 = vmul.f32 %v490, 0.25
      %v545 = vpack.c.bf16 %v530, %v529
      %v546 = vpack.c.bf16 %v532, %v531
      %v547 = vpack.c.bf16 %v534, %v533
      %v548 = vpack.c.bf16 %v536, %v535
      %v549 = vpack.c.bf16 %v538, %v537
      %v550 = vpack.c.bf16 %v540, %v539
      %v551 = vpack.c.bf16 %v542, %v541
      %v552 = vpack.c.bf16 %v544, %v543
      %v553 = vpack.c.bf16 %v420, %v416
      %v554 = vpack.c.bf16 %v430, %v426
      %v555 = vpack.c.bf16 %v440, %v436
      %v556 = vpack.c.bf16 %v450, %v446
      %v557 = vpack.c.bf16 %v460, %v456
      %v558 = vpack.c.bf16 %v470, %v466
      %v559 = vpack.c.bf16 %v480, %v476
      %v560 = vpack.c.bf16 %v490, %v486
      %v577 = vunpack.c.l.b16 %v289
      %v578 = vunpack.c.l.b16 %v290
      %v579 = vunpack.c.l.b16 %v291
      %v580 = vunpack.c.l.b16 %v292
      %v581 = vunpack.c.l.b16 %v293
      %v582 = vunpack.c.l.b16 %v294
      %v583 = vunpack.c.l.b16 %v295
      %v584 = vunpack.c.l.b16 %v296
      %v585 = vunpack.c.l.b16 %v297
      %v586 = vunpack.c.l.b16 %v298
      %v587 = vunpack.c.l.b16 %v299
      %v588 = vunpack.c.l.b16 %v300
      %v589 = vunpack.c.l.b16 %v301
      %v590 = vunpack.c.l.b16 %v302
      %v591 = vunpack.c.l.b16 %v303
      %v592 = vunpack.c.l.b16 %v304
      %v593 = vpack.c.b16 %v578, %v577
      %v594 = vpack.c.b16 %v580, %v579
      %v595 = vpack.c.b16 %v582, %v581
      %v596 = vpack.c.b16 %v584, %v583
      %v597 = vpack.c.b16 %v586, %v585
      %v598 = vpack.c.b16 %v588, %v587
      %v599 = vpack.c.b16 %v590, %v589
      %v600 = vpack.c.b16 %v592, %v591
      %vm601 = vcmask 130048
      %v603 = vsel %vm601, %v545, 0
      %v606 = vsel %vm601, %v546, 0
      %v609 = vsel %vm601, %v547, 0
      %v612 = vsel %vm601, %v548, 0
      %v615 = vsel %vm601, %v549, 0
      %v618 = vsel %vm601, %v550, 0
      %v621 = vsel %vm601, %v551, 0
      %v624 = vsel %vm601, %v552, 0
      %v627 = vsel %vm601, %v593, 0
      %v630 = vsel %vm601, %v594, 0
      %v633 = vsel %vm601, %v595, 0
      %v636 = vsel %vm601, %v596, 0
      %v639 = vsel %vm601, %v597, 0
      %v642 = vsel %vm601, %v598, 0
      %v645 = vsel %vm601, %v599, 0
      %v648 = vsel %vm601, %v600, 0
      %650 = vmatprep.subr.bf16.mxu0 0
      %651 = vmatpush1.bf16.xpose.msra.mxu0 %v627
      %652 = vmatprep.subr.bf16.mxu0 0
      %653 = vmatpush1.bf16.xpose.msra.mxu0 %v630
      %654 = vmatprep.subr.bf16.mxu0 0
      %655 = vmatpush1.bf16.xpose.msra.mxu0 %v633
      %656 = vmatprep.subr.bf16.mxu0 0
      %657 = vmatpush1.bf16.xpose.msra.mxu0 %v636
      %658 = vmatprep.subr.bf16.mxu0 0
      %659 = vmatpush1.bf16.xpose.msra.mxu0 %v639
      %660 = vmatprep.subr.bf16.mxu0 0
      %661 = vmatpush1.bf16.xpose.msra.mxu0 %v642
      %662 = vmatprep.subr.bf16.mxu0 0
      %663 = vmatpush1.bf16.xpose.msra.mxu0 %v645
      %664 = vmatprep.subr.bf16.mxu0 0
      %665 = vmatpush1.bf16.xpose.msra.mxu0 %v648
      %666 = vmatprep.subr.bf16.mxu0 0
      %667 = vmatpush1.bf16.xpose.msra.mxu0 0
      %668 = vmatprep.subr.bf16.mxu0 0
      %669 = vmatpush1.bf16.xpose.msra.mxu0 0
      %670 = vmatprep.subr.bf16.mxu0 0
      %671 = vmatpush1.bf16.xpose.msra.mxu0 0
      %672 = vmatprep.subr.bf16.mxu0 0
      %673 = vmatpush1.bf16.xpose.msra.mxu0 0
      %674 = vmatprep.subr.bf16.mxu0 0
      %675 = vmatpush1.bf16.xpose.msra.mxu0 0
      %676 = vmatprep.subr.bf16.mxu0 0
      %677 = vmatpush1.bf16.xpose.msra.mxu0 0
      %678 = vmatprep.subr.bf16.mxu0 0
      %679 = vmatpush1.bf16.xpose.msra.mxu0 0
      %680 = vmatprep.subr.bf16.mxu0 0
      %681 = vmatpush1.bf16.xpose.msra.mxu0 0
      %682 = vmatprep.mubr.bf16.mxu0 0
      %683 = vmatmul.mubr.bf16.gmra.mrb[0].mxu0 %v603
      %v684 = vpop.f32.mrb[0].mxu0
      %v685 = vadd.f32 0.0, %v684
      %v686 = vpop.f32.mrb[0].mxu0
      %v687 = vpop.f32.mrb[0].mxu0
      %v688 = vadd.f32 0.0, %v687
      %v689 = vpop.f32.mrb[0].mxu0
      %690 = vmatprep.mubr.bf16.mxu0 0
      %691 = vmatmul.mubr.bf16.gmra.mrb[0].mxu0 %v606
      %v692 = vpop.f32.mrb[0].mxu0
      %v693 = vadd.f32 0.0, %v692
      %v694 = vpop.f32.mrb[0].mxu0
      %v695 = vpop.f32.mrb[0].mxu0
      %v696 = vadd.f32 0.0, %v695
      %v697 = vpop.f32.mrb[0].mxu0
      %698 = vmatprep.mubr.bf16.mxu0 0
      %699 = vmatmul.mubr.bf16.gmra.mrb[0].mxu0 %v609
      %v700 = vpop.f32.mrb[0].mxu0
      %v701 = vadd.f32 0.0, %v700
      %v702 = vpop.f32.mrb[0].mxu0
      %v703 = vpop.f32.mrb[0].mxu0
      %v704 = vadd.f32 0.0, %v703
      %v705 = vpop.f32.mrb[0].mxu0
      %706 = vmatprep.mubr.bf16.mxu0 0
      %707 = vmatmul.mubr.bf16.gmra.mrb[0].mxu0 %v612
      %v708 = vpop.f32.mrb[0].mxu0
      %v709 = vadd.f32 0.0, %v708
      %v710 = vpop.f32.mrb[0].mxu0
      %v711 = vpop.f32.mrb[0].mxu0
      %v712 = vadd.f32 0.0, %v711
      %v713 = vpop.f32.mrb[0].mxu0
      %714 = vmatprep.mubr.bf16.mxu0 0
      %715 = vmatmul.mubr.bf16.gmra.mrb[0].mxu0 %v615
      %v716 = vpop.f32.mrb[0].mxu0
      %v717 = vadd.f32 0.0, %v716
      %v718 = vpop.f32.mrb[0].mxu0
      %v719 = vpop.f32.mrb[0].mxu0
      %v720 = vadd.f32 0.0, %v719
      %v721 = vpop.f32.mrb[0].mxu0
      %722 = vmatprep.mubr.bf16.mxu0 0
      %723 = vmatmul.mubr.bf16.gmra.mrb[0].mxu0 %v618
      %v724 = vpop.f32.mrb[0].mxu0
      %v725 = vadd.f32 0.0, %v724
      %v726 = vpop.f32.mrb[0].mxu0
      %v727 = vpop.f32.mrb[0].mxu0
      %v728 = vadd.f32 0.0, %v727
      %v729 = vpop.f32.mrb[0].mxu0
      %730 = vmatprep.mubr.bf16.mxu0 0
      %731 = vmatmul.mubr.bf16.gmra.mrb[0].mxu0 %v621
      %v732 = vpop.f32.mrb[0].mxu0
      %v733 = vadd.f32 0.0, %v732
      %v734 = vpop.f32.mrb[0].mxu0
      %v735 = vpop.f32.mrb[0].mxu0
      %v736 = vadd.f32 0.0, %v735
      %v737 = vpop.f32.mrb[0].mxu0
      %738 = vmatprep.mubr.bf16.mxu0 0
      %739 = vmatmul.mubr.bf16.gmra.mrb[0].mxu0 %v624
      %v740 = vpop.f32.mrb[0].mxu0
      %v741 = vadd.f32 0.0, %v740
      %v742 = vpop.f32.mrb[0].mxu0
      %v743 = vpop.f32.mrb[0].mxu0
      %v744 = vadd.f32 0.0, %v743
      %v745 = vpop.f32.mrb[0].mxu0
      %746 = vdwg.mxu0
      %s748 = sor.u32 256, 1
      %749 = vrot.lane.b32.xlu0 %v685, %s748
      %v750 = vpop.permute.xlu0 %749
      %s752 = sor.u32 256, 9
      %753 = vrot.lane.b32.xlu0 %v688, %s752
      %v754 = vpop.permute.xlu0 %753
      %s756 = sor.u32 256, 17
      %757 = vrot.lane.b32.xlu0 %v693, %s756
      %v758 = vpop.permute.xlu0 %757
      %s760 = sor.u32 256, 25
      %761 = vrot.lane.b32.xlu0 %v696, %s760
      %v762 = vpop.permute.xlu0 %761
      %s764 = sor.u32 256, 33
      %765 = vrot.lane.b32.xlu0 %v701, %s764
      %v766 = vpop.permute.xlu0 %765
      %s768 = sor.u32 256, 41
      %769 = vrot.lane.b32.xlu0 %v704, %s768
      %v770 = vpop.permute.xlu0 %769
      %s772 = sor.u32 256, 49
      %773 = vrot.lane.b32.xlu0 %v709, %s772
      %v774 = vpop.permute.xlu0 %773
      %s776 = sor.u32 256, 57
      %777 = vrot.lane.b32.xlu0 %v712, %s776
      %v778 = vpop.permute.xlu0 %777
      %s780 = sor.u32 256, 65
      %781 = vrot.lane.b32.xlu0 %v717, %s780
      %v782 = vpop.permute.xlu0 %781
      %s784 = sor.u32 256, 73
      %785 = vrot.lane.b32.xlu0 %v720, %s784
      %v786 = vpop.permute.xlu0 %785
      %s788 = sor.u32 256, 81
      %789 = vrot.lane.b32.xlu0 %v725, %s788
      %v790 = vpop.permute.xlu0 %789
      %s792 = sor.u32 256, 89
      %793 = vrot.lane.b32.xlu0 %v728, %s792
      %v794 = vpop.permute.xlu0 %793
      %s796 = sor.u32 256, 97
      %797 = vrot.lane.b32.xlu0 %v733, %s796
      %v798 = vpop.permute.xlu0 %797
      %s800 = sor.u32 256, 105
      %801 = vrot.lane.b32.xlu0 %v736, %s800
      %v802 = vpop.permute.xlu0 %801
      %s804 = sor.u32 256, 113
      %805 = vrot.lane.b32.xlu0 %v741, %s804
      %v806 = vpop.permute.xlu0 %805
      %s808 = sor.u32 256, 121
      %809 = vrot.lane.b32.xlu0 %v744, %s808
      %v810 = vpop.permute.xlu0 %809
      %819 = vrot.lane.b32.xlu0 %v553, 112
      %v820 = vpop.permute.xlu0 %819
      %821 = vrot.lane.b32.xlu0 %v554, 112
      %v822 = vpop.permute.xlu0 %821
      %823 = vrot.lane.b32.xlu0 %v555, 112
      %v824 = vpop.permute.xlu0 %823
      %825 = vrot.lane.b32.xlu0 %v556, 112
      %v826 = vpop.permute.xlu0 %825
      %827 = vrot.lane.b32.xlu0 %v557, 112
      %v828 = vpop.permute.xlu0 %827
      %829 = vrot.lane.b32.xlu0 %v558, 112
      %v830 = vpop.permute.xlu0 %829
      %831 = vrot.lane.b32.xlu0 %v559, 112
      %v832 = vpop.permute.xlu0 %831
      %833 = vrot.lane.b32.xlu0 %v560, 112
      %v834 = vpop.permute.xlu0 %833
      %v836 = vsel %vm601, %v820, 0
      %v839 = vsel %vm601, %v822, 0
      %v842 = vsel %vm601, %v824, 0
      %v845 = vsel %vm601, %v826, 0
      %v848 = vsel %vm601, %v828, 0
      %v851 = vsel %vm601, %v830, 0
      %v854 = vsel %vm601, %v832, 0
      %v857 = vsel %vm601, %v834, 0
      %859 = vmatprep.subr.bf16.mxu0 0
      %860 = vmatpush1.bf16.xpose.msra.mxu0 %v836
      %861 = vmatprep.subr.bf16.mxu0 0
      %862 = vmatpush1.bf16.xpose.msra.mxu0 %v839
      %863 = vmatprep.subr.bf16.mxu0 0
      %864 = vmatpush1.bf16.xpose.msra.mxu0 %v842
      %865 = vmatprep.subr.bf16.mxu0 0
      %866 = vmatpush1.bf16.xpose.msra.mxu0 %v845
      %867 = vmatprep.subr.bf16.mxu0 0
      %868 = vmatpush1.bf16.xpose.msra.mxu0 %v848
      %869 = vmatprep.subr.bf16.mxu0 0
      %870 = vmatpush1.bf16.xpose.msra.mxu0 %v851
      %871 = vmatprep.subr.bf16.mxu0 0
      %872 = vmatpush1.bf16.xpose.msra.mxu0 %v854
      %873 = vmatprep.subr.bf16.mxu0 0
      %874 = vmatpush1.bf16.xpose.msra.mxu0 %v857
      %875 = vmatprep.subr.bf16.mxu0 0
      %876 = vmatpush1.bf16.xpose.msra.mxu0 0
      %877 = vmatprep.subr.bf16.mxu0 0
      %878 = vmatpush1.bf16.xpose.msra.mxu0 0
      %879 = vmatprep.subr.bf16.mxu0 0
      %880 = vmatpush1.bf16.xpose.msra.mxu0 0
      %881 = vmatprep.subr.bf16.mxu0 0
      %882 = vmatpush1.bf16.xpose.msra.mxu0 0
      %883 = vmatprep.subr.bf16.mxu0 0
      %884 = vmatpush1.bf16.xpose.msra.mxu0 0
      %885 = vmatprep.subr.bf16.mxu0 0
      %886 = vmatpush1.bf16.xpose.msra.mxu0 0
      %887 = vmatprep.subr.bf16.mxu0 0
      %888 = vmatpush1.bf16.xpose.msra.mxu0 0
      %889 = vmatprep.subr.bf16.mxu0 0
      %890 = vmatpush1.bf16.xpose.msra.mxu0 0
      %891 = vmatprep.mubr.bf16.mxu0 0
      %892 = vmatmul.mubr.bf16.gmra.mrb[0].mxu0 %v603
      %v893 = vpop.f32.mrb[0].mxu0
      %v894 = vadd.f32 %v750, %v893
      %v895 = vpop.f32.mrb[0].mxu0
      %v896 = vpop.f32.mrb[0].mxu0
      %v897 = vadd.f32 %v754, %v896
      %v898 = vpop.f32.mrb[0].mxu0
      %899 = vmatprep.mubr.bf16.mxu0 0
      %900 = vmatmul.mubr.bf16.gmra.mrb[0].mxu0 %v606
      %v901 = vpop.f32.mrb[0].mxu0
      %v902 = vadd.f32 %v758, %v901
      %v903 = vpop.f32.mrb[0].mxu0
      %v904 = vpop.f32.mrb[0].mxu0
      %v905 = vadd.f32 %v762, %v904
      %v906 = vpop.f32.mrb[0].mxu0
      %907 = vmatprep.mubr.bf16.mxu0 0
      %908 = vmatmul.mubr.bf16.gmra.mrb[0].mxu0 %v609
      %v909 = vpop.f32.mrb[0].mxu0
      %v910 = vadd.f32 %v766, %v909
      %v911 = vpop.f32.mrb[0].mxu0
      %v912 = vpop.f32.mrb[0].mxu0
      %v913 = vadd.f32 %v770, %v912
      %v914 = vpop.f32.mrb[0].mxu0
      %915 = vmatprep.mubr.bf16.mxu0 0
      %916 = vmatmul.mubr.bf16.gmra.mrb[0].mxu0 %v612
      %v917 = vpop.f32.mrb[0].mxu0
      %v918 = vadd.f32 %v774, %v917
      %v919 = vpop.f32.mrb[0].mxu0
      %v920 = vpop.f32.mrb[0].mxu0
      %v921 = vadd.f32 %v778, %v920
      %v922 = vpop.f32.mrb[0].mxu0
      %923 = vmatprep.mubr.bf16.mxu0 0
      %924 = vmatmul.mubr.bf16.gmra.mrb[0].mxu0 %v615
      %v925 = vpop.f32.mrb[0].mxu0
      %v926 = vadd.f32 %v782, %v925
      %v927 = vpop.f32.mrb[0].mxu0
      %v928 = vpop.f32.mrb[0].mxu0
      %v929 = vadd.f32 %v786, %v928
      %v930 = vpop.f32.mrb[0].mxu0
      %931 = vmatprep.mubr.bf16.mxu0 0
      %932 = vmatmul.mubr.bf16.gmra.mrb[0].mxu0 %v618
      %v933 = vpop.f32.mrb[0].mxu0
      %v934 = vadd.f32 %v790, %v933
      %v935 = vpop.f32.mrb[0].mxu0
      %v936 = vpop.f32.mrb[0].mxu0
      %v937 = vadd.f32 %v794, %v936
      %v938 = vpop.f32.mrb[0].mxu0
      %939 = vmatprep.mubr.bf16.mxu0 0
      %940 = vmatmul.mubr.bf16.gmra.mrb[0].mxu0 %v621
      %v941 = vpop.f32.mrb[0].mxu0
      %v942 = vadd.f32 %v798, %v941
      %v943 = vpop.f32.mrb[0].mxu0
      %v944 = vpop.f32.mrb[0].mxu0
      %v945 = vadd.f32 %v802, %v944
      %v946 = vpop.f32.mrb[0].mxu0
      %947 = vmatprep.mubr.bf16.mxu0 0
      %948 = vmatmul.mubr.bf16.gmra.mrb[0].mxu0 %v624
      %v949 = vpop.f32.mrb[0].mxu0
      %v950 = vadd.f32 %v806, %v949
      %v951 = vpop.f32.mrb[0].mxu0
      %v952 = vpop.f32.mrb[0].mxu0
      %v953 = vadd.f32 %v810, %v952
      %v954 = vpop.f32.mrb[0].mxu0
      %955 = vdwg.mxu0
      %v956 = vsel %vm513, %v894, -1e+30
      %v957 = vsel %vm514, %v897, -1e+30
      %v958 = vsel %vm515, %v902, -1e+30
      %v959 = vsel %vm516, %v905, -1e+30
      %v960 = vsel %vm517, %v910, -1e+30
      %v961 = vsel %vm518, %v913, -1e+30
      %v962 = vsel %vm519, %v918, -1e+30
      %v963 = vsel %vm520, %v921, -1e+30
      %v964 = vsel %vm521, %v926, -1e+30
      %v965 = vsel %vm522, %v929, -1e+30
      %v966 = vsel %vm523, %v934, -1e+30
      %v967 = vsel %vm524, %v937, -1e+30
      %v968 = vsel %vm525, %v942, -1e+30
      %v969 = vsel %vm526, %v945, -1e+30
      %v970 = vsel %vm527, %v950, -1e+30
      %v971 = vsel %vm528, %v953, -1e+30
      %972 = vmax.xlane.f32.xlu0 %v956
      %v973 = vpop.xlane.xlu0 %972
      %974 = vmax.xlane.f32.xlu0 %v957
      %v975 = vpop.xlane.xlu0 %974
      %976 = vmax.xlane.f32.xlu0 %v958
      %v977 = vpop.xlane.xlu0 %976
      %978 = vmax.xlane.f32.xlu0 %v959
      %v979 = vpop.xlane.xlu0 %978
      %980 = vmax.xlane.f32.xlu0 %v960
      %v981 = vpop.xlane.xlu0 %980
      %982 = vmax.xlane.f32.xlu0 %v961
      %v983 = vpop.xlane.xlu0 %982
      %984 = vmax.xlane.f32.xlu0 %v962
      %v985 = vpop.xlane.xlu0 %984
      %986 = vmax.xlane.f32.xlu0 %v963
      %v987 = vpop.xlane.xlu0 %986
      %988 = vmax.xlane.f32.xlu0 %v964
      %v989 = vpop.xlane.xlu0 %988
      %990 = vmax.xlane.f32.xlu0 %v965
      %v991 = vpop.xlane.xlu0 %990
      %992 = vmax.xlane.f32.xlu0 %v966
      %v993 = vpop.xlane.xlu0 %992
      %994 = vmax.xlane.f32.xlu0 %v967
      %v995 = vpop.xlane.xlu0 %994
      %996 = vmax.xlane.f32.xlu0 %v968
      %v997 = vpop.xlane.xlu0 %996
      %998 = vmax.xlane.f32.xlu0 %v969
      %v999 = vpop.xlane.xlu0 %998
      %1000 = vmax.xlane.f32.xlu0 %v970
      %v1001 = vpop.xlane.xlu0 %1000
      %1002 = vmax.xlane.f32.xlu0 %v971
      %v1003 = vpop.xlane.xlu0 %1002
      %v1004 = vsub.f32 %v956, %v973
      %v1005 = vsub.f32 %v957, %v975
      %v1006 = vsub.f32 %v958, %v977
      %v1007 = vsub.f32 %v959, %v979
      %v1008 = vsub.f32 %v960, %v981
      %v1009 = vsub.f32 %v961, %v983
      %v1010 = vsub.f32 %v962, %v985
      %v1011 = vsub.f32 %v963, %v987
      %v1012 = vsub.f32 %v964, %v989
      %v1013 = vsub.f32 %v965, %v991
      %v1014 = vsub.f32 %v966, %v993
      %v1015 = vsub.f32 %v967, %v995
      %v1016 = vsub.f32 %v968, %v997
      %v1017 = vsub.f32 %v969, %v999
      %v1018 = vsub.f32 %v970, %v1001
      %v1019 = vsub.f32 %v971, %v1003
      %v1020 = vmul.f32 %v1004, 1.442695
      %v1021 = vpow.pop %v1020
      %v1022 = vmul.f32 %v1005, 1.442695
      %v1023 = vpow.pop %v1022
      %v1024 = vmul.f32 %v1006, 1.442695
      %v1025 = vpow.pop %v1024
      %v1026 = vmul.f32 %v1007, 1.442695
      %v1027 = vpow.pop %v1026
      %v1028 = vmul.f32 %v1008, 1.442695
      %v1029 = vpow.pop %v1028
      %v1030 = vmul.f32 %v1009, 1.442695
      %v1031 = vpow.pop %v1030
      %v1032 = vmul.f32 %v1010, 1.442695
      %v1033 = vpow.pop %v1032
      %v1034 = vmul.f32 %v1011, 1.442695
      %v1035 = vpow.pop %v1034
      %v1036 = vmul.f32 %v1012, 1.442695
      %v1037 = vpow.pop %v1036
      %v1038 = vmul.f32 %v1013, 1.442695
      %v1039 = vpow.pop %v1038
      %v1040 = vmul.f32 %v1014, 1.442695
      %v1041 = vpow.pop %v1040
      %v1042 = vmul.f32 %v1015, 1.442695
      %v1043 = vpow.pop %v1042
      %v1044 = vmul.f32 %v1016, 1.442695
      %v1045 = vpow.pop %v1044
      %v1046 = vmul.f32 %v1017, 1.442695
      %v1047 = vpow.pop %v1046
      %v1048 = vmul.f32 %v1018, 1.442695
      %v1049 = vpow.pop %v1048
      %v1050 = vmul.f32 %v1019, 1.442695
      %v1051 = vpow.pop %v1050
      %1052 = vadd.xlane.f32.xlu0 %v1021
      %v1053 = vpop.xlane.xlu0 %1052
      %1054 = vadd.xlane.f32.xlu0 %v1023
      %v1055 = vpop.xlane.xlu0 %1054
      %1056 = vadd.xlane.f32.xlu0 %v1025
      %v1057 = vpop.xlane.xlu0 %1056
      %1058 = vadd.xlane.f32.xlu0 %v1027
      %v1059 = vpop.xlane.xlu0 %1058
      %1060 = vadd.xlane.f32.xlu0 %v1029
      %v1061 = vpop.xlane.xlu0 %1060
      %1062 = vadd.xlane.f32.xlu0 %v1031
      %v1063 = vpop.xlane.xlu0 %1062
      %1064 = vadd.xlane.f32.xlu0 %v1033
      %v1065 = vpop.xlane.xlu0 %1064
      %1066 = vadd.xlane.f32.xlu0 %v1035
      %v1067 = vpop.xlane.xlu0 %1066
      %1068 = vadd.xlane.f32.xlu0 %v1037
      %v1069 = vpop.xlane.xlu0 %1068
      %1070 = vadd.xlane.f32.xlu0 %v1039
      %v1071 = vpop.xlane.xlu0 %1070
      %1072 = vadd.xlane.f32.xlu0 %v1041
      %v1073 = vpop.xlane.xlu0 %1072
      %1074 = vadd.xlane.f32.xlu0 %v1043
      %v1075 = vpop.xlane.xlu0 %1074
      %1076 = vadd.xlane.f32.xlu0 %v1045
      %v1077 = vpop.xlane.xlu0 %1076
      %1078 = vadd.xlane.f32.xlu0 %v1047
      %v1079 = vpop.xlane.xlu0 %1078
      %1080 = vadd.xlane.f32.xlu0 %v1049
      %v1081 = vpop.xlane.xlu0 %1080
      %1082 = vadd.xlane.f32.xlu0 %v1051
      %v1083 = vpop.xlane.xlu0 %1082
      %v1084 = vpack.c.bf16 %v1023, %v1021
      %v1085 = vpack.c.bf16 %v1027, %v1025
      %v1086 = vpack.c.bf16 %v1031, %v1029
      %v1087 = vpack.c.bf16 %v1035, %v1033
      %v1088 = vpack.c.bf16 %v1039, %v1037
      %v1089 = vpack.c.bf16 %v1043, %v1041
      %v1090 = vpack.c.bf16 %v1047, %v1045
      %v1091 = vpack.c.bf16 %v1051, %v1049
      %1092 = vrot.lane.b32.xlu0 %v553, 96
      %v1093 = vpop.permute.xlu0 %1092
      %1094 = vrot.lane.b32.xlu0 %v554, 96
      %v1095 = vpop.permute.xlu0 %1094
      %1096 = vrot.lane.b32.xlu0 %v555, 96
      %v1097 = vpop.permute.xlu0 %1096
      %1098 = vrot.lane.b32.xlu0 %v556, 96
      %v1099 = vpop.permute.xlu0 %1098
      %1100 = vrot.lane.b32.xlu0 %v557, 96
      %v1101 = vpop.permute.xlu0 %1100
      %1102 = vrot.lane.b32.xlu0 %v558, 96
      %v1103 = vpop.permute.xlu0 %1102
      %1104 = vrot.lane.b32.xlu0 %v559, 96
      %v1105 = vpop.permute.xlu0 %1104
      %1106 = vrot.lane.b32.xlu0 %v560, 96
      %v1107 = vpop.permute.xlu0 %1106
      %1116 = vmatprep.subr.bf16.mxu0 0
      %1117 = vmatpush1.bf16.msra.mxu0 %v1093
      %1118 = vmatprep.subr.bf16.mxu0 0
      %1119 = vmatpush1.bf16.msra.mxu0 %v1095
      %1120 = vmatprep.subr.bf16.mxu0 0
      %1121 = vmatpush1.bf16.msra.mxu0 %v1097
      %1122 = vmatprep.subr.bf16.mxu0 0
      %1123 = vmatpush1.bf16.msra.mxu0 %v1099
      %1124 = vmatprep.subr.bf16.mxu0 0
      %1125 = vmatpush1.bf16.msra.mxu0 %v1101
      %1126 = vmatprep.subr.bf16.mxu0 0
      %1127 = vmatpush1.bf16.msra.mxu0 %v1103
      %1128 = vmatprep.subr.bf16.mxu0 0
      %1129 = vmatpush1.bf16.msra.mxu0 %v1105
      %1130 = vmatprep.subr.bf16.mxu0 0
      %1131 = vmatpush1.bf16.msra.mxu0 %v1107
      %1132 = vmatprep.subr.bf16.mxu0 0
      %1133 = vmatpush1.bf16.msra.mxu0 0
      %1134 = vmatprep.subr.bf16.mxu0 0
      %1135 = vmatpush1.bf16.msra.mxu0 0
      %1136 = vmatprep.subr.bf16.mxu0 0
      %1137 = vmatpush1.bf16.msra.mxu0 0
      %1138 = vmatprep.subr.bf16.mxu0 0
      %1139 = vmatpush1.bf16.msra.mxu0 0
      %1140 = vmatprep.subr.bf16.mxu0 0
      %1141 = vmatpush1.bf16.msra.mxu0 0
      %1142 = vmatprep.subr.bf16.mxu0 0
      %1143 = vmatpush1.bf16.msra.mxu0 0
      %1144 = vmatprep.subr.bf16.mxu0 0
      %1145 = vmatpush1.bf16.msra.mxu0 0
      %1146 = vmatprep.subr.bf16.mxu0 0
      %1147 = vmatpush1.bf16.msra.mxu0 0
      %1148 = vmatprep.mubr.bf16.mxu0 0
      %1149 = vmatmul.mubr.bf16.gmra.mrb[0].mxu0 %v1084
      %v1150 = vpop.f32.mrb[0].mxu0
      %v1151 = vadd.f32 0.0, %v1150
      %v1152 = vpop.f32.mrb[0].mxu0
      %v1153 = vpop.f32.mrb[0].mxu0
      %v1154 = vadd.f32 0.0, %v1153
      %v1155 = vpop.f32.mrb[0].mxu0
      %1156 = vmatprep.mubr.bf16.mxu0 0
      %1157 = vmatmul.mubr.bf16.gmra.mrb[0].mxu0 %v1085
      %v1158 = vpop.f32.mrb[0].mxu0
      %v1159 = vadd.f32 0.0, %v1158
      %v1160 = vpop.f32.mrb[0].mxu0
      %v1161 = vpop.f32.mrb[0].mxu0
      %v1162 = vadd.f32 0.0, %v1161
      %v1163 = vpop.f32.mrb[0].mxu0
      %1164 = vmatprep.mubr.bf16.mxu0 0
      %1165 = vmatmul.mubr.bf16.gmra.mrb[0].mxu0 %v1086
      %v1166 = vpop.f32.mrb[0].mxu0
      %v1167 = vadd.f32 0.0, %v1166
      %v1168 = vpop.f32.mrb[0].mxu0
      %v1169 = vpop.f32.mrb[0].mxu0
      %v1170 = vadd.f32 0.0, %v1169
      %v1171 = vpop.f32.mrb[0].mxu0
      %1172 = vmatprep.mubr.bf16.mxu0 0
      %1173 = vmatmul.mubr.bf16.gmra.mrb[0].mxu0 %v1087
      %v1174 = vpop.f32.mrb[0].mxu0
      %v1175 = vadd.f32 0.0, %v1174
      %v1176 = vpop.f32.mrb[0].mxu0
      %v1177 = vpop.f32.mrb[0].mxu0
      %v1178 = vadd.f32 0.0, %v1177
      %v1179 = vpop.f32.mrb[0].mxu0
      %1180 = vmatprep.mubr.bf16.mxu0 0
      %1181 = vmatmul.mubr.bf16.gmra.mrb[0].mxu0 %v1088
      %v1182 = vpop.f32.mrb[0].mxu0
      %v1183 = vadd.f32 0.0, %v1182
      %v1184 = vpop.f32.mrb[0].mxu0
      %v1185 = vpop.f32.mrb[0].mxu0
      %v1186 = vadd.f32 0.0, %v1185
      %v1187 = vpop.f32.mrb[0].mxu0
      %1188 = vmatprep.mubr.bf16.mxu0 0
      %1189 = vmatmul.mubr.bf16.gmra.mrb[0].mxu0 %v1089
      %v1190 = vpop.f32.mrb[0].mxu0
      %v1191 = vadd.f32 0.0, %v1190
      %v1192 = vpop.f32.mrb[0].mxu0
      %v1193 = vpop.f32.mrb[0].mxu0
      %v1194 = vadd.f32 0.0, %v1193
      %v1195 = vpop.f32.mrb[0].mxu0
      %1196 = vmatprep.mubr.bf16.mxu0 0
      %1197 = vmatmul.mubr.bf16.gmra.mrb[0].mxu0 %v1090
      %v1198 = vpop.f32.mrb[0].mxu0
      %v1199 = vadd.f32 0.0, %v1198
      %v1200 = vpop.f32.mrb[0].mxu0
      %v1201 = vpop.f32.mrb[0].mxu0
      %v1202 = vadd.f32 0.0, %v1201
      %v1203 = vpop.f32.mrb[0].mxu0
      %1204 = vmatprep.mubr.bf16.mxu0 0
      %1205 = vmatmul.mubr.bf16.gmra.mrb[0].mxu0 %v1091
      %v1206 = vpop.f32.mrb[0].mxu0
      %v1207 = vadd.f32 0.0, %v1206
      %v1208 = vpop.f32.mrb[0].mxu0
      %v1209 = vpop.f32.mrb[0].mxu0
      %v1210 = vadd.f32 0.0, %v1209
      %v1211 = vpop.f32.mrb[0].mxu0
      %1212 = vdwg.mxu0
      %v1213 = vrcp.pop %v1053
      %v1214 = vrcp.pop %v1055
      %v1215 = vrcp.pop %v1057
      %v1216 = vrcp.pop %v1059
      %v1217 = vrcp.pop %v1061
      %v1218 = vrcp.pop %v1063
      %v1219 = vrcp.pop %v1065
      %v1220 = vrcp.pop %v1067
      %v1221 = vrcp.pop %v1069
      %v1222 = vrcp.pop %v1071
      %v1223 = vrcp.pop %v1073
      %v1224 = vrcp.pop %v1075
      %v1225 = vrcp.pop %v1077
      %v1226 = vrcp.pop %v1079
      %v1227 = vrcp.pop %v1081
      %v1228 = vrcp.pop %v1083
      %v1229 = vmul.f32 %v1151, %v1213
      %v1230 = vmul.f32 %v1154, %v1214
      %v1231 = vmul.f32 %v1159, %v1215
      %v1232 = vmul.f32 %v1162, %v1216
      %v1233 = vmul.f32 %v1167, %v1217
      %v1234 = vmul.f32 %v1170, %v1218
      %v1235 = vmul.f32 %v1175, %v1219
      %v1236 = vmul.f32 %v1178, %v1220
      %v1237 = vmul.f32 %v1183, %v1221
      %v1238 = vmul.f32 %v1186, %v1222
      %v1239 = vmul.f32 %v1191, %v1223
      %v1240 = vmul.f32 %v1194, %v1224
      %v1241 = vmul.f32 %v1199, %v1225
      %v1242 = vmul.f32 %v1202, %v1226
      %v1243 = vmul.f32 %v1207, %v1227
      %v1244 = vmul.f32 %v1210, %v1228
      %1253 = vrot.lane.b32.xlu0 %v545, 80
      %v1254 = vpop.permute.xlu0 %1253
      %1255 = vrot.lane.b32.xlu0 %v546, 80
      %v1256 = vpop.permute.xlu0 %1255
      %1257 = vrot.lane.b32.xlu0 %v547, 80
      %v1258 = vpop.permute.xlu0 %1257
      %1259 = vrot.lane.b32.xlu0 %v548, 80
      %v1260 = vpop.permute.xlu0 %1259
      %1261 = vrot.lane.b32.xlu0 %v549, 80
      %v1262 = vpop.permute.xlu0 %1261
      %1263 = vrot.lane.b32.xlu0 %v550, 80
      %v1264 = vpop.permute.xlu0 %1263
      %1265 = vrot.lane.b32.xlu0 %v551, 80
      %v1266 = vpop.permute.xlu0 %1265
      %1267 = vrot.lane.b32.xlu0 %v552, 80
      %v1268 = vpop.permute.xlu0 %1267
      %v1270 = vsel %vm601, %v1254, 0
      %v1273 = vsel %vm601, %v1256, 0
      %v1276 = vsel %vm601, %v1258, 0
      %v1279 = vsel %vm601, %v1260, 0
      %v1282 = vsel %vm601, %v1262, 0
      %v1285 = vsel %vm601, %v1264, 0
      %v1288 = vsel %vm601, %v1266, 0
      %v1291 = vsel %vm601, %v1268, 0
      %1293 = vmatprep.subr.bf16.mxu0 0
      %1294 = vmatpush1.bf16.xpose.msra.mxu0 %v627
      %1295 = vmatprep.subr.bf16.mxu0 0
      %1296 = vmatpush1.bf16.xpose.msra.mxu0 %v630
      %1297 = vmatprep.subr.bf16.mxu0 0
      %1298 = vmatpush1.bf16.xpose.msra.mxu0 %v633
      %1299 = vmatprep.subr.bf16.mxu0 0
      %1300 = vmatpush1.bf16.xpose.msra.mxu0 %v636
      %1301 = vmatprep.subr.bf16.mxu0 0
      %1302 = vmatpush1.bf16.xpose.msra.mxu0 %v639
      %1303 = vmatprep.subr.bf16.mxu0 0
      %1304 = vmatpush1.bf16.xpose.msra.mxu0 %v642
      %1305 = vmatprep.subr.bf16.mxu0 0
      %1306 = vmatpush1.bf16.xpose.msra.mxu0 %v645
      %1307 = vmatprep.subr.bf16.mxu0 0
      %1308 = vmatpush1.bf16.xpose.msra.mxu0 %v648
      %1309 = vmatprep.subr.bf16.mxu0 0
      %1310 = vmatpush1.bf16.xpose.msra.mxu0 0
      %1311 = vmatprep.subr.bf16.mxu0 0
      %1312 = vmatpush1.bf16.xpose.msra.mxu0 0
      %1313 = vmatprep.subr.bf16.mxu0 0
      %1314 = vmatpush1.bf16.xpose.msra.mxu0 0
      %1315 = vmatprep.subr.bf16.mxu0 0
      %1316 = vmatpush1.bf16.xpose.msra.mxu0 0
      %1317 = vmatprep.subr.bf16.mxu0 0
      %1318 = vmatpush1.bf16.xpose.msra.mxu0 0
      %1319 = vmatprep.subr.bf16.mxu0 0
      %1320 = vmatpush1.bf16.xpose.msra.mxu0 0
      %1321 = vmatprep.subr.bf16.mxu0 0
      %1322 = vmatpush1.bf16.xpose.msra.mxu0 0
      %1323 = vmatprep.subr.bf16.mxu0 0
      %1324 = vmatpush1.bf16.xpose.msra.mxu0 0
      %1325 = vmatprep.mubr.bf16.mxu0 0
      %1326 = vmatmul.mubr.bf16.gmra.mrb[0].mxu0 %v1270
      %v1327 = vpop.f32.mrb[0].mxu0
      %v1328 = vadd.f32 0.0, %v1327
      %v1329 = vpop.f32.mrb[0].mxu0
      %v1330 = vpop.f32.mrb[0].mxu0
      %v1331 = vadd.f32 0.0, %v1330
      %v1332 = vpop.f32.mrb[0].mxu0
      %1333 = vmatprep.mubr.bf16.mxu0 0
      %1334 = vmatmul.mubr.bf16.gmra.mrb[0].mxu0 %v1273
      %v1335 = vpop.f32.mrb[0].mxu0
      %v1336 = vadd.f32 0.0, %v1335
      %v1337 = vpop.f32.mrb[0].mxu0
      %v1338 = vpop.f32.mrb[0].mxu0
      %v1339 = vadd.f32 0.0, %v1338
      %v1340 = vpop.f32.mrb[0].mxu0
      %1341 = vmatprep.mubr.bf16.mxu0 0
      %1342 = vmatmul.mubr.bf16.gmra.mrb[0].mxu0 %v1276
      %v1343 = vpop.f32.mrb[0].mxu0
      %v1344 = vadd.f32 0.0, %v1343
      %v1345 = vpop.f32.mrb[0].mxu0
      %v1346 = vpop.f32.mrb[0].mxu0
      %v1347 = vadd.f32 0.0, %v1346
      %v1348 = vpop.f32.mrb[0].mxu0
      %1349 = vmatprep.mubr.bf16.mxu0 0
      %1350 = vmatmul.mubr.bf16.gmra.mrb[0].mxu0 %v1279
      %v1351 = vpop.f32.mrb[0].mxu0
      %v1352 = vadd.f32 0.0, %v1351
      %v1353 = vpop.f32.mrb[0].mxu0
      %v1354 = vpop.f32.mrb[0].mxu0
      %v1355 = vadd.f32 0.0, %v1354
      %v1356 = vpop.f32.mrb[0].mxu0
      %1357 = vmatprep.mubr.bf16.mxu0 0
      %1358 = vmatmul.mubr.bf16.gmra.mrb[0].mxu0 %v1282
      %v1359 = vpop.f32.mrb[0].mxu0
      %v1360 = vadd.f32 0.0, %v1359
      %v1361 = vpop.f32.mrb[0].mxu0
      %v1362 = vpop.f32.mrb[0].mxu0
      %v1363 = vadd.f32 0.0, %v1362
      %v1364 = vpop.f32.mrb[0].mxu0
      %1365 = vmatprep.mubr.bf16.mxu0 0
      %1366 = vmatmul.mubr.bf16.gmra.mrb[0].mxu0 %v1285
      %v1367 = vpop.f32.mrb[0].mxu0
      %v1368 = vadd.f32 0.0, %v1367
      %v1369 = vpop.f32.mrb[0].mxu0
      %v1370 = vpop.f32.mrb[0].mxu0
      %v1371 = vadd.f32 0.0, %v1370
      %v1372 = vpop.f32.mrb[0].mxu0
      %1373 = vmatprep.mubr.bf16.mxu0 0
      %1374 = vmatmul.mubr.bf16.gmra.mrb[0].mxu0 %v1288
      %v1375 = vpop.f32.mrb[0].mxu0
      %v1376 = vadd.f32 0.0, %v1375
      %v1377 = vpop.f32.mrb[0].mxu0
      %v1378 = vpop.f32.mrb[0].mxu0
      %v1379 = vadd.f32 0.0, %v1378
      %v1380 = vpop.f32.mrb[0].mxu0
      %1381 = vmatprep.mubr.bf16.mxu0 0
      %1382 = vmatmul.mubr.bf16.gmra.mrb[0].mxu0 %v1291
      %v1383 = vpop.f32.mrb[0].mxu0
      %v1384 = vadd.f32 0.0, %v1383
      %v1385 = vpop.f32.mrb[0].mxu0
      %v1386 = vpop.f32.mrb[0].mxu0
      %v1387 = vadd.f32 0.0, %v1386
      %v1388 = vpop.f32.mrb[0].mxu0
      %1389 = vdwg.mxu0
      %s1391 = sor.u32 256, 1
      %1392 = vrot.lane.b32.xlu0 %v1328, %s1391
      %v1393 = vpop.permute.xlu0 %1392
      %s1395 = sor.u32 256, 9
      %1396 = vrot.lane.b32.xlu0 %v1331, %s1395
      %v1397 = vpop.permute.xlu0 %1396
      %s1399 = sor.u32 256, 17
      %1400 = vrot.lane.b32.xlu0 %v1336, %s1399
      %v1401 = vpop.permute.xlu0 %1400
      %s1403 = sor.u32 256, 25
      %1404 = vrot.lane.b32.xlu0 %v1339, %s1403
      %v1405 = vpop.permute.xlu0 %1404
      %s1407 = sor.u32 256, 33
      %1408 = vrot.lane.b32.xlu0 %v1344, %s1407
      %v1409 = vpop.permute.xlu0 %1408
      %s1411 = sor.u32 256, 41
      %1412 = vrot.lane.b32.xlu0 %v1347, %s1411
      %v1413 = vpop.permute.xlu0 %1412
      %s1415 = sor.u32 256, 49
      %1416 = vrot.lane.b32.xlu0 %v1352, %s1415
      %v1417 = vpop.permute.xlu0 %1416
      %s1419 = sor.u32 256, 57
      %1420 = vrot.lane.b32.xlu0 %v1355, %s1419
      %v1421 = vpop.permute.xlu0 %1420
      %s1423 = sor.u32 256, 65
      %1424 = vrot.lane.b32.xlu0 %v1360, %s1423
      %v1425 = vpop.permute.xlu0 %1424
      %s1427 = sor.u32 256, 73
      %1428 = vrot.lane.b32.xlu0 %v1363, %s1427
      %v1429 = vpop.permute.xlu0 %1428
      %s1431 = sor.u32 256, 81
      %1432 = vrot.lane.b32.xlu0 %v1368, %s1431
      %v1433 = vpop.permute.xlu0 %1432
      %s1435 = sor.u32 256, 89
      %1436 = vrot.lane.b32.xlu0 %v1371, %s1435
      %v1437 = vpop.permute.xlu0 %1436
      %s1439 = sor.u32 256, 97
      %1440 = vrot.lane.b32.xlu0 %v1376, %s1439
      %v1441 = vpop.permute.xlu0 %1440
      %s1443 = sor.u32 256, 105
      %1444 = vrot.lane.b32.xlu0 %v1379, %s1443
      %v1445 = vpop.permute.xlu0 %1444
      %s1447 = sor.u32 256, 113
      %1448 = vrot.lane.b32.xlu0 %v1384, %s1447
      %v1449 = vpop.permute.xlu0 %1448
      %s1451 = sor.u32 256, 121
      %1452 = vrot.lane.b32.xlu0 %v1387, %s1451
      %v1453 = vpop.permute.xlu0 %1452
      %1454 = vrot.lane.b32.xlu0 %v553, 64
      %v1455 = vpop.permute.xlu0 %1454
      %1456 = vrot.lane.b32.xlu0 %v554, 64
      %v1457 = vpop.permute.xlu0 %1456
      %1458 = vrot.lane.b32.xlu0 %v555, 64
      %v1459 = vpop.permute.xlu0 %1458
      %1460 = vrot.lane.b32.xlu0 %v556, 64
      %v1461 = vpop.permute.xlu0 %1460
      %1462 = vrot.lane.b32.xlu0 %v557, 64
      %v1463 = vpop.permute.xlu0 %1462
      %1464 = vrot.lane.b32.xlu0 %v558, 64
      %v1465 = vpop.permute.xlu0 %1464
      %1466 = vrot.lane.b32.xlu0 %v559, 64
      %v1467 = vpop.permute.xlu0 %1466
      %1468 = vrot.lane.b32.xlu0 %v560, 64
      %v1469 = vpop.permute.xlu0 %1468
      %v1471 = vsel %vm601, %v1455, 0
      %v1474 = vsel %vm601, %v1457, 0
      %v1477 = vsel %vm601, %v1459, 0
      %v1480 = vsel %vm601, %v1461, 0
      %v1483 = vsel %vm601, %v1463, 0
      %v1486 = vsel %vm601, %v1465, 0
      %v1489 = vsel %vm601, %v1467, 0
      %v1492 = vsel %vm601, %v1469, 0
      %1494 = vmatprep.subr.bf16.mxu0 0
      %1495 = vmatpush1.bf16.xpose.msra.mxu0 %v1471
      %1496 = vmatprep.subr.bf16.mxu0 0
      %1497 = vmatpush1.bf16.xpose.msra.mxu0 %v1474
      %1498 = vmatprep.subr.bf16.mxu0 0
      %1499 = vmatpush1.bf16.xpose.msra.mxu0 %v1477
      %1500 = vmatprep.subr.bf16.mxu0 0
      %1501 = vmatpush1.bf16.xpose.msra.mxu0 %v1480
      %1502 = vmatprep.subr.bf16.mxu0 0
      %1503 = vmatpush1.bf16.xpose.msra.mxu0 %v1483
      %1504 = vmatprep.subr.bf16.mxu0 0
      %1505 = vmatpush1.bf16.xpose.msra.mxu0 %v1486
      %1506 = vmatprep.subr.bf16.mxu0 0
      %1507 = vmatpush1.bf16.xpose.msra.mxu0 %v1489
      %1508 = vmatprep.subr.bf16.mxu0 0
      %1509 = vmatpush1.bf16.xpose.msra.mxu0 %v1492
      %1510 = vmatprep.subr.bf16.mxu0 0
      %1511 = vmatpush1.bf16.xpose.msra.mxu0 0
      %1512 = vmatprep.subr.bf16.mxu0 0
      %1513 = vmatpush1.bf16.xpose.msra.mxu0 0
      %1514 = vmatprep.subr.bf16.mxu0 0
      %1515 = vmatpush1.bf16.xpose.msra.mxu0 0
      %1516 = vmatprep.subr.bf16.mxu0 0
      %1517 = vmatpush1.bf16.xpose.msra.mxu0 0
      %1518 = vmatprep.subr.bf16.mxu0 0
      %1519 = vmatpush1.bf16.xpose.msra.mxu0 0
      %1520 = vmatprep.subr.bf16.mxu0 0
      %1521 = vmatpush1.bf16.xpose.msra.mxu0 0
      %1522 = vmatprep.subr.bf16.mxu0 0
      %1523 = vmatpush1.bf16.xpose.msra.mxu0 0
      %1524 = vmatprep.subr.bf16.mxu0 0
      %1525 = vmatpush1.bf16.xpose.msra.mxu0 0
      %1526 = vmatprep.mubr.bf16.mxu0 0
      %1527 = vmatmul.mubr.bf16.gmra.mrb[0].mxu0 %v1270
      %v1528 = vpop.f32.mrb[0].mxu0
      %v1529 = vadd.f32 %v1393, %v1528
      %v1530 = vpop.f32.mrb[0].mxu0
      %v1531 = vpop.f32.mrb[0].mxu0
      %v1532 = vadd.f32 %v1397, %v1531
      %v1533 = vpop.f32.mrb[0].mxu0
      %1534 = vmatprep.mubr.bf16.mxu0 0
      %1535 = vmatmul.mubr.bf16.gmra.mrb[0].mxu0 %v1273
      %v1536 = vpop.f32.mrb[0].mxu0
      %v1537 = vadd.f32 %v1401, %v1536
      %v1538 = vpop.f32.mrb[0].mxu0
      %v1539 = vpop.f32.mrb[0].mxu0
      %v1540 = vadd.f32 %v1405, %v1539
      %v1541 = vpop.f32.mrb[0].mxu0
      %1542 = vmatprep.mubr.bf16.mxu0 0
      %1543 = vmatmul.mubr.bf16.gmra.mrb[0].mxu0 %v1276
      %v1544 = vpop.f32.mrb[0].mxu0
      %v1545 = vadd.f32 %v1409, %v1544
      %v1546 = vpop.f32.mrb[0].mxu0
      %v1547 = vpop.f32.mrb[0].mxu0
      %v1548 = vadd.f32 %v1413, %v1547
      %v1549 = vpop.f32.mrb[0].mxu0
      %1550 = vmatprep.mubr.bf16.mxu0 0
      %1551 = vmatmul.mubr.bf16.gmra.mrb[0].mxu0 %v1279
      %v1552 = vpop.f32.mrb[0].mxu0
      %v1553 = vadd.f32 %v1417, %v1552
      %v1554 = vpop.f32.mrb[0].mxu0
      %v1555 = vpop.f32.mrb[0].mxu0
      %v1556 = vadd.f32 %v1421, %v1555
      %v1557 = vpop.f32.mrb[0].mxu0
      %1558 = vmatprep.mubr.bf16.mxu0 0
      %1559 = vmatmul.mubr.bf16.gmra.mrb[0].mxu0 %v1282
      %v1560 = vpop.f32.mrb[0].mxu0
      %v1561 = vadd.f32 %v1425, %v1560
      %v1562 = vpop.f32.mrb[0].mxu0
      %v1563 = vpop.f32.mrb[0].mxu0
      %v1564 = vadd.f32 %v1429, %v1563
      %v1565 = vpop.f32.mrb[0].mxu0
      %1566 = vmatprep.mubr.bf16.mxu0 0
      %1567 = vmatmul.mubr.bf16.gmra.mrb[0].mxu0 %v1285
      %v1568 = vpop.f32.mrb[0].mxu0
      %v1569 = vadd.f32 %v1433, %v1568
      %v1570 = vpop.f32.mrb[0].mxu0
      %v1571 = vpop.f32.mrb[0].mxu0
      %v1572 = vadd.f32 %v1437, %v1571
      %v1573 = vpop.f32.mrb[0].mxu0
      %1574 = vmatprep.mubr.bf16.mxu0 0
      %1575 = vmatmul.mubr.bf16.gmra.mrb[0].mxu0 %v1288
      %v1576 = vpop.f32.mrb[0].mxu0
      %v1577 = vadd.f32 %v1441, %v1576
      %v1578 = vpop.f32.mrb[0].mxu0
      %v1579 = vpop.f32.mrb[0].mxu0
      %v1580 = vadd.f32 %v1445, %v1579
      %v1581 = vpop.f32.mrb[0].mxu0
      %1582 = vmatprep.mubr.bf16.mxu0 0
      %1583 = vmatmul.mubr.bf16.gmra.mrb[0].mxu0 %v1291
      %v1584 = vpop.f32.mrb[0].mxu0
      %v1585 = vadd.f32 %v1449, %v1584
      %v1586 = vpop.f32.mrb[0].mxu0
      %v1587 = vpop.f32.mrb[0].mxu0
      %v1588 = vadd.f32 %v1453, %v1587
      %v1589 = vpop.f32.mrb[0].mxu0
      %1590 = vdwg.mxu0
      %v1591 = vsel %vm513, %v1529, -1e+30
      %v1592 = vsel %vm514, %v1532, -1e+30
      %v1593 = vsel %vm515, %v1537, -1e+30
      %v1594 = vsel %vm516, %v1540, -1e+30
      %v1595 = vsel %vm517, %v1545, -1e+30
      %v1596 = vsel %vm518, %v1548, -1e+30
      %v1597 = vsel %vm519, %v1553, -1e+30
      %v1598 = vsel %vm520, %v1556, -1e+30
      %v1599 = vsel %vm521, %v1561, -1e+30
      %v1600 = vsel %vm522, %v1564, -1e+30
      %v1601 = vsel %vm523, %v1569, -1e+30
      %v1602 = vsel %vm524, %v1572, -1e+30
      %v1603 = vsel %vm525, %v1577, -1e+30
      %v1604 = vsel %vm526, %v1580, -1e+30
      %v1605 = vsel %vm527, %v1585, -1e+30
      %v1606 = vsel %vm528, %v1588, -1e+30
      %1607 = vmax.xlane.f32.xlu0 %v1591
      %v1608 = vpop.xlane.xlu0 %1607
      %1609 = vmax.xlane.f32.xlu0 %v1592
      %v1610 = vpop.xlane.xlu0 %1609
      %1611 = vmax.xlane.f32.xlu0 %v1593
      %v1612 = vpop.xlane.xlu0 %1611
      %1613 = vmax.xlane.f32.xlu0 %v1594
      %v1614 = vpop.xlane.xlu0 %1613
      %1615 = vmax.xlane.f32.xlu0 %v1595
      %v1616 = vpop.xlane.xlu0 %1615
      %1617 = vmax.xlane.f32.xlu0 %v1596
      %v1618 = vpop.xlane.xlu0 %1617
      %1619 = vmax.xlane.f32.xlu0 %v1597
      %v1620 = vpop.xlane.xlu0 %1619
      %1621 = vmax.xlane.f32.xlu0 %v1598
      %v1622 = vpop.xlane.xlu0 %1621
      %1623 = vmax.xlane.f32.xlu0 %v1599
      %v1624 = vpop.xlane.xlu0 %1623
      %1625 = vmax.xlane.f32.xlu0 %v1600
      %v1626 = vpop.xlane.xlu0 %1625
      %1627 = vmax.xlane.f32.xlu0 %v1601
      %v1628 = vpop.xlane.xlu0 %1627
      %1629 = vmax.xlane.f32.xlu0 %v1602
      %v1630 = vpop.xlane.xlu0 %1629
      %1631 = vmax.xlane.f32.xlu0 %v1603
      %v1632 = vpop.xlane.xlu0 %1631
      %1633 = vmax.xlane.f32.xlu0 %v1604
      %v1634 = vpop.xlane.xlu0 %1633
      %1635 = vmax.xlane.f32.xlu0 %v1605
      %v1636 = vpop.xlane.xlu0 %1635
      %1637 = vmax.xlane.f32.xlu0 %v1606
      %v1638 = vpop.xlane.xlu0 %1637
      %v1639 = vsub.f32 %v1591, %v1608
      %v1640 = vsub.f32 %v1592, %v1610
      %v1641 = vsub.f32 %v1593, %v1612
      %v1642 = vsub.f32 %v1594, %v1614
      %v1643 = vsub.f32 %v1595, %v1616
      %v1644 = vsub.f32 %v1596, %v1618
      %v1645 = vsub.f32 %v1597, %v1620
      %v1646 = vsub.f32 %v1598, %v1622
      %v1647 = vsub.f32 %v1599, %v1624
      %v1648 = vsub.f32 %v1600, %v1626
      %v1649 = vsub.f32 %v1601, %v1628
      %v1650 = vsub.f32 %v1602, %v1630
      %v1651 = vsub.f32 %v1603, %v1632
      %v1652 = vsub.f32 %v1604, %v1634
      %v1653 = vsub.f32 %v1605, %v1636
      %v1654 = vsub.f32 %v1606, %v1638
      %v1655 = vmul.f32 %v1639, 1.442695
      %v1656 = vpow.pop %v1655
      %v1657 = vmul.f32 %v1640, 1.442695
      %v1658 = vpow.pop %v1657
      %v1659 = vmul.f32 %v1641, 1.442695
      %v1660 = vpow.pop %v1659
      %v1661 = vmul.f32 %v1642, 1.442695
      %v1662 = vpow.pop %v1661
      %v1663 = vmul.f32 %v1643, 1.442695
      %v1664 = vpow.pop %v1663
      %v1665 = vmul.f32 %v1644, 1.442695
      %v1666 = vpow.pop %v1665
      %v1667 = vmul.f32 %v1645, 1.442695
      %v1668 = vpow.pop %v1667
      %v1669 = vmul.f32 %v1646, 1.442695
      %v1670 = vpow.pop %v1669
      %v1671 = vmul.f32 %v1647, 1.442695
      %v1672 = vpow.pop %v1671
      %v1673 = vmul.f32 %v1648, 1.442695
      %v1674 = vpow.pop %v1673
      %v1675 = vmul.f32 %v1649, 1.442695
      %v1676 = vpow.pop %v1675
      %v1677 = vmul.f32 %v1650, 1.442695
      %v1678 = vpow.pop %v1677
      %v1679 = vmul.f32 %v1651, 1.442695
      %v1680 = vpow.pop %v1679
      %v1681 = vmul.f32 %v1652, 1.442695
      %v1682 = vpow.pop %v1681
      %v1683 = vmul.f32 %v1653, 1.442695
      %v1684 = vpow.pop %v1683
      %v1685 = vmul.f32 %v1654, 1.442695
      %v1686 = vpow.pop %v1685
      %1687 = vadd.xlane.f32.xlu0 %v1656
      %v1688 = vpop.xlane.xlu0 %1687
      %1689 = vadd.xlane.f32.xlu0 %v1658
      %v1690 = vpop.xlane.xlu0 %1689
      %1691 = vadd.xlane.f32.xlu0 %v1660
      %v1692 = vpop.xlane.xlu0 %1691
      %1693 = vadd.xlane.f32.xlu0 %v1662
      %v1694 = vpop.xlane.xlu0 %1693
      %1695 = vadd.xlane.f32.xlu0 %v1664
      %v1696 = vpop.xlane.xlu0 %1695
      %1697 = vadd.xlane.f32.xlu0 %v1666
      %v1698 = vpop.xlane.xlu0 %1697
      %1699 = vadd.xlane.f32.xlu0 %v1668
      %v1700 = vpop.xlane.xlu0 %1699
      %1701 = vadd.xlane.f32.xlu0 %v1670
      %v1702 = vpop.xlane.xlu0 %1701
      %1703 = vadd.xlane.f32.xlu0 %v1672
      %v1704 = vpop.xlane.xlu0 %1703
      %1705 = vadd.xlane.f32.xlu0 %v1674
      %v1706 = vpop.xlane.xlu0 %1705
      %1707 = vadd.xlane.f32.xlu0 %v1676
      %v1708 = vpop.xlane.xlu0 %1707
      %1709 = vadd.xlane.f32.xlu0 %v1678
      %v1710 = vpop.xlane.xlu0 %1709
      %1711 = vadd.xlane.f32.xlu0 %v1680
      %v1712 = vpop.xlane.xlu0 %1711
      %1713 = vadd.xlane.f32.xlu0 %v1682
      %v1714 = vpop.xlane.xlu0 %1713
      %1715 = vadd.xlane.f32.xlu0 %v1684
      %v1716 = vpop.xlane.xlu0 %1715
      %1717 = vadd.xlane.f32.xlu0 %v1686
      %v1718 = vpop.xlane.xlu0 %1717
      %v1719 = vpack.c.bf16 %v1658, %v1656
      %v1720 = vpack.c.bf16 %v1662, %v1660
      %v1721 = vpack.c.bf16 %v1666, %v1664
      %v1722 = vpack.c.bf16 %v1670, %v1668
      %v1723 = vpack.c.bf16 %v1674, %v1672
      %v1724 = vpack.c.bf16 %v1678, %v1676
      %v1725 = vpack.c.bf16 %v1682, %v1680
      %v1726 = vpack.c.bf16 %v1686, %v1684
      %1727 = vrot.lane.b32.xlu0 %v553, 48
      %v1728 = vpop.permute.xlu0 %1727
      %1729 = vrot.lane.b32.xlu0 %v554, 48
      %v1730 = vpop.permute.xlu0 %1729
      %1731 = vrot.lane.b32.xlu0 %v555, 48
      %v1732 = vpop.permute.xlu0 %1731
      %1733 = vrot.lane.b32.xlu0 %v556, 48
      %v1734 = vpop.permute.xlu0 %1733
      %1735 = vrot.lane.b32.xlu0 %v557, 48
      %v1736 = vpop.permute.xlu0 %1735
      %1737 = vrot.lane.b32.xlu0 %v558, 48
      %v1738 = vpop.permute.xlu0 %1737
      %1739 = vrot.lane.b32.xlu0 %v559, 48
      %v1740 = vpop.permute.xlu0 %1739
      %1741 = vrot.lane.b32.xlu0 %v560, 48
      %v1742 = vpop.permute.xlu0 %1741
      %1751 = vmatprep.subr.bf16.mxu0 0
      %1752 = vmatpush1.bf16.msra.mxu0 %v1728
      %1753 = vmatprep.subr.bf16.mxu0 0
      %1754 = vmatpush1.bf16.msra.mxu0 %v1730
      %1755 = vmatprep.subr.bf16.mxu0 0
      %1756 = vmatpush1.bf16.msra.mxu0 %v1732
      %1757 = vmatprep.subr.bf16.mxu0 0
      %1758 = vmatpush1.bf16.msra.mxu0 %v1734
      %1759 = vmatprep.subr.bf16.mxu0 0
      %1760 = vmatpush1.bf16.msra.mxu0 %v1736
      %1761 = vmatprep.subr.bf16.mxu0 0
      %1762 = vmatpush1.bf16.msra.mxu0 %v1738
      %1763 = vmatprep.subr.bf16.mxu0 0
      %1764 = vmatpush1.bf16.msra.mxu0 %v1740
      %1765 = vmatprep.subr.bf16.mxu0 0
      %1766 = vmatpush1.bf16.msra.mxu0 %v1742
      %1767 = vmatprep.subr.bf16.mxu0 0
      %1768 = vmatpush1.bf16.msra.mxu0 0
      %1769 = vmatprep.subr.bf16.mxu0 0
      %1770 = vmatpush1.bf16.msra.mxu0 0
      %1771 = vmatprep.subr.bf16.mxu0 0
      %1772 = vmatpush1.bf16.msra.mxu0 0
      %1773 = vmatprep.subr.bf16.mxu0 0
      %1774 = vmatpush1.bf16.msra.mxu0 0
      %1775 = vmatprep.subr.bf16.mxu0 0
      %1776 = vmatpush1.bf16.msra.mxu0 0
      %1777 = vmatprep.subr.bf16.mxu0 0
      %1778 = vmatpush1.bf16.msra.mxu0 0
      %1779 = vmatprep.subr.bf16.mxu0 0
      %1780 = vmatpush1.bf16.msra.mxu0 0
      %1781 = vmatprep.subr.bf16.mxu0 0
      %1782 = vmatpush1.bf16.msra.mxu0 0
      %1783 = vmatprep.mubr.bf16.mxu0 0
      %1784 = vmatmul.mubr.bf16.gmra.mrb[0].mxu0 %v1719
      %v1785 = vpop.f32.mrb[0].mxu0
      %v1786 = vadd.f32 0.0, %v1785
      %v1787 = vpop.f32.mrb[0].mxu0
      %v1788 = vpop.f32.mrb[0].mxu0
      %v1789 = vadd.f32 0.0, %v1788
      %v1790 = vpop.f32.mrb[0].mxu0
      %1791 = vmatprep.mubr.bf16.mxu0 0
      %1792 = vmatmul.mubr.bf16.gmra.mrb[0].mxu0 %v1720
      %v1793 = vpop.f32.mrb[0].mxu0
      %v1794 = vadd.f32 0.0, %v1793
      %v1795 = vpop.f32.mrb[0].mxu0
      %v1796 = vpop.f32.mrb[0].mxu0
      %v1797 = vadd.f32 0.0, %v1796
      %v1798 = vpop.f32.mrb[0].mxu0
      %1799 = vmatprep.mubr.bf16.mxu0 0
      %1800 = vmatmul.mubr.bf16.gmra.mrb[0].mxu0 %v1721
      %v1801 = vpop.f32.mrb[0].mxu0
      %v1802 = vadd.f32 0.0, %v1801
      %v1803 = vpop.f32.mrb[0].mxu0
      %v1804 = vpop.f32.mrb[0].mxu0
      %v1805 = vadd.f32 0.0, %v1804
      %v1806 = vpop.f32.mrb[0].mxu0
      %1807 = vmatprep.mubr.bf16.mxu0 0
      %1808 = vmatmul.mubr.bf16.gmra.mrb[0].mxu0 %v1722
      %v1809 = vpop.f32.mrb[0].mxu0
      %v1810 = vadd.f32 0.0, %v1809
      %v1811 = vpop.f32.mrb[0].mxu0
      %v1812 = vpop.f32.mrb[0].mxu0
      %v1813 = vadd.f32 0.0, %v1812
      %v1814 = vpop.f32.mrb[0].mxu0
      %1815 = vmatprep.mubr.bf16.mxu0 0
      %1816 = vmatmul.mubr.bf16.gmra.mrb[0].mxu0 %v1723
      %v1817 = vpop.f32.mrb[0].mxu0
      %v1818 = vadd.f32 0.0, %v1817
      %v1819 = vpop.f32.mrb[0].mxu0
      %v1820 = vpop.f32.mrb[0].mxu0
      %v1821 = vadd.f32 0.0, %v1820
      %v1822 = vpop.f32.mrb[0].mxu0
      %1823 = vmatprep.mubr.bf16.mxu0 0
      %1824 = vmatmul.mubr.bf16.gmra.mrb[0].mxu0 %v1724
      %v1825 = vpop.f32.mrb[0].mxu0
      %v1826 = vadd.f32 0.0, %v1825
      %v1827 = vpop.f32.mrb[0].mxu0
      %v1828 = vpop.f32.mrb[0].mxu0
      %v1829 = vadd.f32 0.0, %v1828
      %v1830 = vpop.f32.mrb[0].mxu0
      %1831 = vmatprep.mubr.bf16.mxu0 0
      %1832 = vmatmul.mubr.bf16.gmra.mrb[0].mxu0 %v1725
      %v1833 = vpop.f32.mrb[0].mxu0
      %v1834 = vadd.f32 0.0, %v1833
      %v1835 = vpop.f32.mrb[0].mxu0
      %v1836 = vpop.f32.mrb[0].mxu0
      %v1837 = vadd.f32 0.0, %v1836
      %v1838 = vpop.f32.mrb[0].mxu0
      %1839 = vmatprep.mubr.bf16.mxu0 0
      %1840 = vmatmul.mubr.bf16.gmra.mrb[0].mxu0 %v1726
      %v1841 = vpop.f32.mrb[0].mxu0
      %v1842 = vadd.f32 0.0, %v1841
      %v1843 = vpop.f32.mrb[0].mxu0
      %v1844 = vpop.f32.mrb[0].mxu0
      %v1845 = vadd.f32 0.0, %v1844
      %v1846 = vpop.f32.mrb[0].mxu0
      %1847 = vdwg.mxu0
      %v1848 = vrcp.pop %v1688
      %v1849 = vrcp.pop %v1690
      %v1850 = vrcp.pop %v1692
      %v1851 = vrcp.pop %v1694
      %v1852 = vrcp.pop %v1696
      %v1853 = vrcp.pop %v1698
      %v1854 = vrcp.pop %v1700
      %v1855 = vrcp.pop %v1702
      %v1856 = vrcp.pop %v1704
      %v1857 = vrcp.pop %v1706
      %v1858 = vrcp.pop %v1708
      %v1859 = vrcp.pop %v1710
      %v1860 = vrcp.pop %v1712
      %v1861 = vrcp.pop %v1714
      %v1862 = vrcp.pop %v1716
      %v1863 = vrcp.pop %v1718
      %v1864 = vmul.f32 %v1786, %v1848
      %v1865 = vmul.f32 %v1789, %v1849
      %v1866 = vmul.f32 %v1794, %v1850
      %v1867 = vmul.f32 %v1797, %v1851
      %v1868 = vmul.f32 %v1802, %v1852
      %v1869 = vmul.f32 %v1805, %v1853
      %v1870 = vmul.f32 %v1810, %v1854
      %v1871 = vmul.f32 %v1813, %v1855
      %v1872 = vmul.f32 %v1818, %v1856
      %v1873 = vmul.f32 %v1821, %v1857
      %v1874 = vmul.f32 %v1826, %v1858
      %v1875 = vmul.f32 %v1829, %v1859
      %v1876 = vmul.f32 %v1834, %v1860
      %v1877 = vmul.f32 %v1837, %v1861
      %v1878 = vmul.f32 %v1842, %v1862
      %v1879 = vmul.f32 %v1845, %v1863
      %v1880 = vpack.c.bf16 %v422, %v418
      %v1881 = vpack.c.bf16 %v432, %v428
      %v1882 = vpack.c.bf16 %v442, %v438
      %v1883 = vpack.c.bf16 %v452, %v448
      %v1884 = vpack.c.bf16 %v462, %v458
      %v1885 = vpack.c.bf16 %v472, %v468
      %v1886 = vpack.c.bf16 %v482, %v478
      %v1887 = vpack.c.bf16 %v492, %v488
      %1888 = vrot.lane.b32.xlu0 %v545, 32
      %v1889 = vpop.permute.xlu0 %1888
      %1890 = vrot.lane.b32.xlu0 %v546, 32
      %v1891 = vpop.permute.xlu0 %1890
      %1892 = vrot.lane.b32.xlu0 %v547, 32
      %v1893 = vpop.permute.xlu0 %1892
      %1894 = vrot.lane.b32.xlu0 %v548, 32
      %v1895 = vpop.permute.xlu0 %1894
      %1896 = vrot.lane.b32.xlu0 %v549, 32
      %v1897 = vpop.permute.xlu0 %1896
      %1898 = vrot.lane.b32.xlu0 %v550, 32
      %v1899 = vpop.permute.xlu0 %1898
      %1900 = vrot.lane.b32.xlu0 %v551, 32
      %v1901 = vpop.permute.xlu0 %1900
      %1902 = vrot.lane.b32.xlu0 %v552, 32
      %v1903 = vpop.permute.xlu0 %1902
      %v1905 = vsel %vm601, %v1889, 0
      %v1908 = vsel %vm601, %v1891, 0
      %v1911 = vsel %vm601, %v1893, 0
      %v1914 = vsel %vm601, %v1895, 0
      %v1917 = vsel %vm601, %v1897, 0
      %v1920 = vsel %vm601, %v1899, 0
      %v1923 = vsel %vm601, %v1901, 0
      %v1926 = vsel %vm601, %v1903, 0
      %1928 = vmatprep.subr.bf16.mxu0 0
      %1929 = vmatpush1.bf16.xpose.msra.mxu0 %v627
      %1930 = vmatprep.subr.bf16.mxu0 0
      %1931 = vmatpush1.bf16.xpose.msra.mxu0 %v630
      %1932 = vmatprep.subr.bf16.mxu0 0
      %1933 = vmatpush1.bf16.xpose.msra.mxu0 %v633
      %1934 = vmatprep.subr.bf16.mxu0 0
      %1935 = vmatpush1.bf16.xpose.msra.mxu0 %v636
      %1936 = vmatprep.subr.bf16.mxu0 0
      %1937 = vmatpush1.bf16.xpose.msra.mxu0 %v639
      %1938 = vmatprep.subr.bf16.mxu0 0
      %1939 = vmatpush1.bf16.xpose.msra.mxu0 %v642
      %1940 = vmatprep.subr.bf16.mxu0 0
      %1941 = vmatpush1.bf16.xpose.msra.mxu0 %v645
      %1942 = vmatprep.subr.bf16.mxu0 0
      %1943 = vmatpush1.bf16.xpose.msra.mxu0 %v648
      %1944 = vmatprep.subr.bf16.mxu0 0
      %1945 = vmatpush1.bf16.xpose.msra.mxu0 0
      %1946 = vmatprep.subr.bf16.mxu0 0
      %1947 = vmatpush1.bf16.xpose.msra.mxu0 0
      %1948 = vmatprep.subr.bf16.mxu0 0
      %1949 = vmatpush1.bf16.xpose.msra.mxu0 0
      %1950 = vmatprep.subr.bf16.mxu0 0
      %1951 = vmatpush1.bf16.xpose.msra.mxu0 0
      %1952 = vmatprep.subr.bf16.mxu0 0
      %1953 = vmatpush1.bf16.xpose.msra.mxu0 0
      %1954 = vmatprep.subr.bf16.mxu0 0
      %1955 = vmatpush1.bf16.xpose.msra.mxu0 0
      %1956 = vmatprep.subr.bf16.mxu0 0
      %1957 = vmatpush1.bf16.xpose.msra.mxu0 0
      %1958 = vmatprep.subr.bf16.mxu0 0
      %1959 = vmatpush1.bf16.xpose.msra.mxu0 0
      %1960 = vmatprep.mubr.bf16.mxu0 0
      %1961 = vmatmul.mubr.bf16.gmra.mrb[0].mxu0 %v1905
      %v1962 = vpop.f32.mrb[0].mxu0
      %v1963 = vadd.f32 0.0, %v1962
      %v1964 = vpop.f32.mrb[0].mxu0
      %v1965 = vpop.f32.mrb[0].mxu0
      %v1966 = vadd.f32 0.0, %v1965
      %v1967 = vpop.f32.mrb[0].mxu0
      %1968 = vmatprep.mubr.bf16.mxu0 0
      %1969 = vmatmul.mubr.bf16.gmra.mrb[0].mxu0 %v1908
      %v1970 = vpop.f32.mrb[0].mxu0
      %v1971 = vadd.f32 0.0, %v1970
      %v1972 = vpop.f32.mrb[0].mxu0
      %v1973 = vpop.f32.mrb[0].mxu0
      %v1974 = vadd.f32 0.0, %v1973
      %v1975 = vpop.f32.mrb[0].mxu0
      %1976 = vmatprep.mubr.bf16.mxu0 0
      %1977 = vmatmul.mubr.bf16.gmra.mrb[0].mxu0 %v1911
      %v1978 = vpop.f32.mrb[0].mxu0
      %v1979 = vadd.f32 0.0, %v1978
      %v1980 = vpop.f32.mrb[0].mxu0
      %v1981 = vpop.f32.mrb[0].mxu0
      %v1982 = vadd.f32 0.0, %v1981
      %v1983 = vpop.f32.mrb[0].mxu0
      %1984 = vmatprep.mubr.bf16.mxu0 0
      %1985 = vmatmul.mubr.bf16.gmra.mrb[0].mxu0 %v1914
      %v1986 = vpop.f32.mrb[0].mxu0
      %v1987 = vadd.f32 0.0, %v1986
      %v1988 = vpop.f32.mrb[0].mxu0
      %v1989 = vpop.f32.mrb[0].mxu0
      %v1990 = vadd.f32 0.0, %v1989
      %v1991 = vpop.f32.mrb[0].mxu0
      %1992 = vmatprep.mubr.bf16.mxu0 0
      %1993 = vmatmul.mubr.bf16.gmra.mrb[0].mxu0 %v1917
      %v1994 = vpop.f32.mrb[0].mxu0
      %v1995 = vadd.f32 0.0, %v1994
      %v1996 = vpop.f32.mrb[0].mxu0
      %v1997 = vpop.f32.mrb[0].mxu0
      %v1998 = vadd.f32 0.0, %v1997
      %v1999 = vpop.f32.mrb[0].mxu0
      %2000 = vmatprep.mubr.bf16.mxu0 0
      %2001 = vmatmul.mubr.bf16.gmra.mrb[0].mxu0 %v1920
      %v2002 = vpop.f32.mrb[0].mxu0
      %v2003 = vadd.f32 0.0, %v2002
      %v2004 = vpop.f32.mrb[0].mxu0
      %v2005 = vpop.f32.mrb[0].mxu0
      %v2006 = vadd.f32 0.0, %v2005
      %v2007 = vpop.f32.mrb[0].mxu0
      %2008 = vmatprep.mubr.bf16.mxu0 0
      %2009 = vmatmul.mubr.bf16.gmra.mrb[0].mxu0 %v1923
      %v2010 = vpop.f32.mrb[0].mxu0
      %v2011 = vadd.f32 0.0, %v2010
      %v2012 = vpop.f32.mrb[0].mxu0
      %v2013 = vpop.f32.mrb[0].mxu0
      %v2014 = vadd.f32 0.0, %v2013
      %v2015 = vpop.f32.mrb[0].mxu0
      %2016 = vmatprep.mubr.bf16.mxu0 0
      %2017 = vmatmul.mubr.bf16.gmra.mrb[0].mxu0 %v1926
      %v2018 = vpop.f32.mrb[0].mxu0
      %v2019 = vadd.f32 0.0, %v2018
      %v2020 = vpop.f32.mrb[0].mxu0
      %v2021 = vpop.f32.mrb[0].mxu0
      %v2022 = vadd.f32 0.0, %v2021
      %v2023 = vpop.f32.mrb[0].mxu0
      %2024 = vdwg.mxu0
      %s2026 = sor.u32 256, 1
      %2027 = vrot.lane.b32.xlu0 %v1963, %s2026
      %v2028 = vpop.permute.xlu0 %2027
      %s2030 = sor.u32 256, 9
      %2031 = vrot.lane.b32.xlu0 %v1966, %s2030
      %v2032 = vpop.permute.xlu0 %2031
      %s2034 = sor.u32 256, 17
      %2035 = vrot.lane.b32.xlu0 %v1971, %s2034
      %v2036 = vpop.permute.xlu0 %2035
      %s2038 = sor.u32 256, 25
      %2039 = vrot.lane.b32.xlu0 %v1974, %s2038
      %v2040 = vpop.permute.xlu0 %2039
      %s2042 = sor.u32 256, 33
      %2043 = vrot.lane.b32.xlu0 %v1979, %s2042
      %v2044 = vpop.permute.xlu0 %2043
      %s2046 = sor.u32 256, 41
      %2047 = vrot.lane.b32.xlu0 %v1982, %s2046
      %v2048 = vpop.permute.xlu0 %2047
      %s2050 = sor.u32 256, 49
      %2051 = vrot.lane.b32.xlu0 %v1987, %s2050
      %v2052 = vpop.permute.xlu0 %2051
      %s2054 = sor.u32 256, 57
      %2055 = vrot.lane.b32.xlu0 %v1990, %s2054
      %v2056 = vpop.permute.xlu0 %2055
      %s2058 = sor.u32 256, 65
      %2059 = vrot.lane.b32.xlu0 %v1995, %s2058
      %v2060 = vpop.permute.xlu0 %2059
      %s2062 = sor.u32 256, 73
      %2063 = vrot.lane.b32.xlu0 %v1998, %s2062
      %v2064 = vpop.permute.xlu0 %2063
      %s2066 = sor.u32 256, 81
      %2067 = vrot.lane.b32.xlu0 %v2003, %s2066
      %v2068 = vpop.permute.xlu0 %2067
      %s2070 = sor.u32 256, 89
      %2071 = vrot.lane.b32.xlu0 %v2006, %s2070
      %v2072 = vpop.permute.xlu0 %2071
      %s2074 = sor.u32 256, 97
      %2075 = vrot.lane.b32.xlu0 %v2011, %s2074
      %v2076 = vpop.permute.xlu0 %2075
      %s2078 = sor.u32 256, 105
      %2079 = vrot.lane.b32.xlu0 %v2014, %s2078
      %v2080 = vpop.permute.xlu0 %2079
      %s2082 = sor.u32 256, 113
      %2083 = vrot.lane.b32.xlu0 %v2019, %s2082
      %v2084 = vpop.permute.xlu0 %2083
      %s2086 = sor.u32 256, 121
      %2087 = vrot.lane.b32.xlu0 %v2022, %s2086
      %v2088 = vpop.permute.xlu0 %2087
      %2089 = vrot.lane.b32.xlu0 %v553, 16
      %v2090 = vpop.permute.xlu0 %2089
      %2091 = vrot.lane.b32.xlu0 %v554, 16
      %v2092 = vpop.permute.xlu0 %2091
      %2093 = vrot.lane.b32.xlu0 %v555, 16
      %v2094 = vpop.permute.xlu0 %2093
      %2095 = vrot.lane.b32.xlu0 %v556, 16
      %v2096 = vpop.permute.xlu0 %2095
      %2097 = vrot.lane.b32.xlu0 %v557, 16
      %v2098 = vpop.permute.xlu0 %2097
      %2099 = vrot.lane.b32.xlu0 %v558, 16
      %v2100 = vpop.permute.xlu0 %2099
      %2101 = vrot.lane.b32.xlu0 %v559, 16
      %v2102 = vpop.permute.xlu0 %2101
      %2103 = vrot.lane.b32.xlu0 %v560, 16
      %v2104 = vpop.permute.xlu0 %2103
      %v2106 = vsel %vm601, %v2090, 0
      %v2109 = vsel %vm601, %v2092, 0
      %v2112 = vsel %vm601, %v2094, 0
      %v2115 = vsel %vm601, %v2096, 0
      %v2118 = vsel %vm601, %v2098, 0
      %v2121 = vsel %vm601, %v2100, 0
      %v2124 = vsel %vm601, %v2102, 0
      %v2127 = vsel %vm601, %v2104, 0
      %2129 = vmatprep.subr.bf16.mxu0 0
      %2130 = vmatpush1.bf16.xpose.msra.mxu0 %v2106
      %2131 = vmatprep.subr.bf16.mxu0 0
      %2132 = vmatpush1.bf16.xpose.msra.mxu0 %v2109
      %2133 = vmatprep.subr.bf16.mxu0 0
      %2134 = vmatpush1.bf16.xpose.msra.mxu0 %v2112
      %2135 = vmatprep.subr.bf16.mxu0 0
      %2136 = vmatpush1.bf16.xpose.msra.mxu0 %v2115
      %2137 = vmatprep.subr.bf16.mxu0 0
      %2138 = vmatpush1.bf16.xpose.msra.mxu0 %v2118
      %2139 = vmatprep.subr.bf16.mxu0 0
      %2140 = vmatpush1.bf16.xpose.msra.mxu0 %v2121
      %2141 = vmatprep.subr.bf16.mxu0 0
      %2142 = vmatpush1.bf16.xpose.msra.mxu0 %v2124
      %2143 = vmatprep.subr.bf16.mxu0 0
      %2144 = vmatpush1.bf16.xpose.msra.mxu0 %v2127
      %2145 = vmatprep.subr.bf16.mxu0 0
      %2146 = vmatpush1.bf16.xpose.msra.mxu0 0
      %2147 = vmatprep.subr.bf16.mxu0 0
      %2148 = vmatpush1.bf16.xpose.msra.mxu0 0
      %2149 = vmatprep.subr.bf16.mxu0 0
      %2150 = vmatpush1.bf16.xpose.msra.mxu0 0
      %2151 = vmatprep.subr.bf16.mxu0 0
      %2152 = vmatpush1.bf16.xpose.msra.mxu0 0
      %2153 = vmatprep.subr.bf16.mxu0 0
      %2154 = vmatpush1.bf16.xpose.msra.mxu0 0
      %2155 = vmatprep.subr.bf16.mxu0 0
      %2156 = vmatpush1.bf16.xpose.msra.mxu0 0
      %2157 = vmatprep.subr.bf16.mxu0 0
      %2158 = vmatpush1.bf16.xpose.msra.mxu0 0
      %2159 = vmatprep.subr.bf16.mxu0 0
      %2160 = vmatpush1.bf16.xpose.msra.mxu0 0
      %2161 = vmatprep.mubr.bf16.mxu0 0
      %2162 = vmatmul.mubr.bf16.gmra.mrb[0].mxu0 %v1905
      %v2163 = vpop.f32.mrb[0].mxu0
      %v2164 = vadd.f32 %v2028, %v2163
      %v2165 = vpop.f32.mrb[0].mxu0
      %v2166 = vpop.f32.mrb[0].mxu0
      %v2167 = vadd.f32 %v2032, %v2166
      %v2168 = vpop.f32.mrb[0].mxu0
      %2169 = vmatprep.mubr.bf16.mxu0 0
      %2170 = vmatmul.mubr.bf16.gmra.mrb[0].mxu0 %v1908
      %v2171 = vpop.f32.mrb[0].mxu0
      %v2172 = vadd.f32 %v2036, %v2171
      %v2173 = vpop.f32.mrb[0].mxu0
      %v2174 = vpop.f32.mrb[0].mxu0
      %v2175 = vadd.f32 %v2040, %v2174
      %v2176 = vpop.f32.mrb[0].mxu0
      %2177 = vmatprep.mubr.bf16.mxu0 0
      %2178 = vmatmul.mubr.bf16.gmra.mrb[0].mxu0 %v1911
      %v2179 = vpop.f32.mrb[0].mxu0
      %v2180 = vadd.f32 %v2044, %v2179
      %v2181 = vpop.f32.mrb[0].mxu0
      %v2182 = vpop.f32.mrb[0].mxu0
      %v2183 = vadd.f32 %v2048, %v2182
      %v2184 = vpop.f32.mrb[0].mxu0
      %2185 = vmatprep.mubr.bf16.mxu0 0
      %2186 = vmatmul.mubr.bf16.gmra.mrb[0].mxu0 %v1914
      %v2187 = vpop.f32.mrb[0].mxu0
      %v2188 = vadd.f32 %v2052, %v2187
      %v2189 = vpop.f32.mrb[0].mxu0
      %v2190 = vpop.f32.mrb[0].mxu0
      %v2191 = vadd.f32 %v2056, %v2190
      %v2192 = vpop.f32.mrb[0].mxu0
      %2193 = vmatprep.mubr.bf16.mxu0 0
      %2194 = vmatmul.mubr.bf16.gmra.mrb[0].mxu0 %v1917
      %v2195 = vpop.f32.mrb[0].mxu0
      %v2196 = vadd.f32 %v2060, %v2195
      %v2197 = vpop.f32.mrb[0].mxu0
      %v2198 = vpop.f32.mrb[0].mxu0
      %v2199 = vadd.f32 %v2064, %v2198
      %v2200 = vpop.f32.mrb[0].mxu0
      %2201 = vmatprep.mubr.bf16.mxu0 0
      %2202 = vmatmul.mubr.bf16.gmra.mrb[0].mxu0 %v1920
      %v2203 = vpop.f32.mrb[0].mxu0
      %v2204 = vadd.f32 %v2068, %v2203
      %v2205 = vpop.f32.mrb[0].mxu0
      %v2206 = vpop.f32.mrb[0].mxu0
      %v2207 = vadd.f32 %v2072, %v2206
      %v2208 = vpop.f32.mrb[0].mxu0
      %2209 = vmatprep.mubr.bf16.mxu0 0
      %2210 = vmatmul.mubr.bf16.gmra.mrb[0].mxu0 %v1923
      %v2211 = vpop.f32.mrb[0].mxu0
      %v2212 = vadd.f32 %v2076, %v2211
      %v2213 = vpop.f32.mrb[0].mxu0
      %v2214 = vpop.f32.mrb[0].mxu0
      %v2215 = vadd.f32 %v2080, %v2214
      %v2216 = vpop.f32.mrb[0].mxu0
      %2217 = vmatprep.mubr.bf16.mxu0 0
      %2218 = vmatmul.mubr.bf16.gmra.mrb[0].mxu0 %v1926
      %v2219 = vpop.f32.mrb[0].mxu0
      %v2220 = vadd.f32 %v2084, %v2219
      %v2221 = vpop.f32.mrb[0].mxu0
      %v2222 = vpop.f32.mrb[0].mxu0
      %v2223 = vadd.f32 %v2088, %v2222
      %v2224 = vpop.f32.mrb[0].mxu0
      %2225 = vdwg.mxu0
      %v2226 = vsel %vm513, %v2164, -1e+30
      %v2227 = vsel %vm514, %v2167, -1e+30
      %v2228 = vsel %vm515, %v2172, -1e+30
      %v2229 = vsel %vm516, %v2175, -1e+30
      %v2230 = vsel %vm517, %v2180, -1e+30
      %v2231 = vsel %vm518, %v2183, -1e+30
      %v2232 = vsel %vm519, %v2188, -1e+30
      %v2233 = vsel %vm520, %v2191, -1e+30
      %v2234 = vsel %vm521, %v2196, -1e+30
      %v2235 = vsel %vm522, %v2199, -1e+30
      %v2236 = vsel %vm523, %v2204, -1e+30
      %v2237 = vsel %vm524, %v2207, -1e+30
      %v2238 = vsel %vm525, %v2212, -1e+30
      %v2239 = vsel %vm526, %v2215, -1e+30
      %v2240 = vsel %vm527, %v2220, -1e+30
      %v2241 = vsel %vm528, %v2223, -1e+30
      %2242 = vmax.xlane.f32.xlu0 %v2226
      %v2243 = vpop.xlane.xlu0 %2242
      %2244 = vmax.xlane.f32.xlu0 %v2227
      %v2245 = vpop.xlane.xlu0 %2244
      %2246 = vmax.xlane.f32.xlu0 %v2228
      %v2247 = vpop.xlane.xlu0 %2246
      %2248 = vmax.xlane.f32.xlu0 %v2229
      %v2249 = vpop.xlane.xlu0 %2248
      %2250 = vmax.xlane.f32.xlu0 %v2230
      %v2251 = vpop.xlane.xlu0 %2250
      %2252 = vmax.xlane.f32.xlu0 %v2231
      %v2253 = vpop.xlane.xlu0 %2252
      %2254 = vmax.xlane.f32.xlu0 %v2232
      %v2255 = vpop.xlane.xlu0 %2254
      %2256 = vmax.xlane.f32.xlu0 %v2233
      %v2257 = vpop.xlane.xlu0 %2256
      %2258 = vmax.xlane.f32.xlu0 %v2234
      %v2259 = vpop.xlane.xlu0 %2258
      %2260 = vmax.xlane.f32.xlu0 %v2235
      %v2261 = vpop.xlane.xlu0 %2260
      %2262 = vmax.xlane.f32.xlu0 %v2236
      %v2263 = vpop.xlane.xlu0 %2262
      %2264 = vmax.xlane.f32.xlu0 %v2237
      %v2265 = vpop.xlane.xlu0 %2264
      %2266 = vmax.xlane.f32.xlu0 %v2238
      %v2267 = vpop.xlane.xlu0 %2266
      %2268 = vmax.xlane.f32.xlu0 %v2239
      %v2269 = vpop.xlane.xlu0 %2268
      %2270 = vmax.xlane.f32.xlu0 %v2240
      %v2271 = vpop.xlane.xlu0 %2270
      %2272 = vmax.xlane.f32.xlu0 %v2241
      %v2273 = vpop.xlane.xlu0 %2272
      %v2274 = vsub.f32 %v2226, %v2243
      %v2275 = vsub.f32 %v2227, %v2245
      %v2276 = vsub.f32 %v2228, %v2247
      %v2277 = vsub.f32 %v2229, %v2249
      %v2278 = vsub.f32 %v2230, %v2251
      %v2279 = vsub.f32 %v2231, %v2253
      %v2280 = vsub.f32 %v2232, %v2255
      %v2281 = vsub.f32 %v2233, %v2257
      %v2282 = vsub.f32 %v2234, %v2259
      %v2283 = vsub.f32 %v2235, %v2261
      %v2284 = vsub.f32 %v2236, %v2263
      %v2285 = vsub.f32 %v2237, %v2265
      %v2286 = vsub.f32 %v2238, %v2267
      %v2287 = vsub.f32 %v2239, %v2269
      %v2288 = vsub.f32 %v2240, %v2271
      %v2289 = vsub.f32 %v2241, %v2273
      %v2290 = vmul.f32 %v2274, 1.442695
      %v2291 = vpow.pop %v2290
      %v2292 = vmul.f32 %v2275, 1.442695
      %v2293 = vpow.pop %v2292
      %v2294 = vmul.f32 %v2276, 1.442695
      %v2295 = vpow.pop %v2294
      %v2296 = vmul.f32 %v2277, 1.442695
      %v2297 = vpow.pop %v2296
      %v2298 = vmul.f32 %v2278, 1.442695
      %v2299 = vpow.pop %v2298
      %v2300 = vmul.f32 %v2279, 1.442695
      %v2301 = vpow.pop %v2300
      %v2302 = vmul.f32 %v2280, 1.442695
      %v2303 = vpow.pop %v2302
      %v2304 = vmul.f32 %v2281, 1.442695
      %v2305 = vpow.pop %v2304
      %v2306 = vmul.f32 %v2282, 1.442695
      %v2307 = vpow.pop %v2306
      %v2308 = vmul.f32 %v2283, 1.442695
      %v2309 = vpow.pop %v2308
      %v2310 = vmul.f32 %v2284, 1.442695
      %v2311 = vpow.pop %v2310
      %v2312 = vmul.f32 %v2285, 1.442695
      %v2313 = vpow.pop %v2312
      %v2314 = vmul.f32 %v2286, 1.442695
      %v2315 = vpow.pop %v2314
      %v2316 = vmul.f32 %v2287, 1.442695
      %v2317 = vpow.pop %v2316
      %v2318 = vmul.f32 %v2288, 1.442695
      %v2319 = vpow.pop %v2318
      %v2320 = vmul.f32 %v2289, 1.442695
      %v2321 = vpow.pop %v2320
      %2322 = vadd.xlane.f32.xlu0 %v2291
      %v2323 = vpop.xlane.xlu0 %2322
      %2324 = vadd.xlane.f32.xlu0 %v2293
      %v2325 = vpop.xlane.xlu0 %2324
      %2326 = vadd.xlane.f32.xlu0 %v2295
      %v2327 = vpop.xlane.xlu0 %2326
      %2328 = vadd.xlane.f32.xlu0 %v2297
      %v2329 = vpop.xlane.xlu0 %2328
      %2330 = vadd.xlane.f32.xlu0 %v2299
      %v2331 = vpop.xlane.xlu0 %2330
      %2332 = vadd.xlane.f32.xlu0 %v2301
      %v2333 = vpop.xlane.xlu0 %2332
      %2334 = vadd.xlane.f32.xlu0 %v2303
      %v2335 = vpop.xlane.xlu0 %2334
      %2336 = vadd.xlane.f32.xlu0 %v2305
      %v2337 = vpop.xlane.xlu0 %2336
      %2338 = vadd.xlane.f32.xlu0 %v2307
      %v2339 = vpop.xlane.xlu0 %2338
      %2340 = vadd.xlane.f32.xlu0 %v2309
      %v2341 = vpop.xlane.xlu0 %2340
      %2342 = vadd.xlane.f32.xlu0 %v2311
      %v2343 = vpop.xlane.xlu0 %2342
      %2344 = vadd.xlane.f32.xlu0 %v2313
      %v2345 = vpop.xlane.xlu0 %2344
      %2346 = vadd.xlane.f32.xlu0 %v2315
      %v2347 = vpop.xlane.xlu0 %2346
      %2348 = vadd.xlane.f32.xlu0 %v2317
      %v2349 = vpop.xlane.xlu0 %2348
      %2350 = vadd.xlane.f32.xlu0 %v2319
      %v2351 = vpop.xlane.xlu0 %2350
      %2352 = vadd.xlane.f32.xlu0 %v2321
      %v2353 = vpop.xlane.xlu0 %2352
      %v2354 = vpack.c.bf16 %v2293, %v2291
      %v2355 = vpack.c.bf16 %v2297, %v2295
      %v2356 = vpack.c.bf16 %v2301, %v2299
      %v2357 = vpack.c.bf16 %v2305, %v2303
      %v2358 = vpack.c.bf16 %v2309, %v2307
      %v2359 = vpack.c.bf16 %v2313, %v2311
      %v2360 = vpack.c.bf16 %v2317, %v2315
      %v2361 = vpack.c.bf16 %v2321, %v2319
      %2362 = vmatprep.subr.bf16.mxu0 0
      %2363 = vmatpush1.bf16.msra.mxu0 %v1880
      %2364 = vmatprep.subr.bf16.mxu0 0
      %2365 = vmatpush1.bf16.msra.mxu0 %v1881
      %2366 = vmatprep.subr.bf16.mxu0 0
      %2367 = vmatpush1.bf16.msra.mxu0 %v1882
      %2368 = vmatprep.subr.bf16.mxu0 0
      %2369 = vmatpush1.bf16.msra.mxu0 %v1883
      %2370 = vmatprep.subr.bf16.mxu0 0
      %2371 = vmatpush1.bf16.msra.mxu0 %v1884
      %2372 = vmatprep.subr.bf16.mxu0 0
      %2373 = vmatpush1.bf16.msra.mxu0 %v1885
      %2374 = vmatprep.subr.bf16.mxu0 0
      %2375 = vmatpush1.bf16.msra.mxu0 %v1886
      %2376 = vmatprep.subr.bf16.mxu0 0
      %2377 = vmatpush1.bf16.msra.mxu0 %v1887
      %2378 = vmatprep.subr.bf16.mxu0 0
      %2379 = vmatpush1.bf16.msra.mxu0 0
      %2380 = vmatprep.subr.bf16.mxu0 0
      %2381 = vmatpush1.bf16.msra.mxu0 0
      %2382 = vmatprep.subr.bf16.mxu0 0
      %2383 = vmatpush1.bf16.msra.mxu0 0
      %2384 = vmatprep.subr.bf16.mxu0 0
      %2385 = vmatpush1.bf16.msra.mxu0 0
      %2386 = vmatprep.subr.bf16.mxu0 0
      %2387 = vmatpush1.bf16.msra.mxu0 0
      %2388 = vmatprep.subr.bf16.mxu0 0
      %2389 = vmatpush1.bf16.msra.mxu0 0
      %2390 = vmatprep.subr.bf16.mxu0 0
      %2391 = vmatpush1.bf16.msra.mxu0 0
      %2392 = vmatprep.subr.bf16.mxu0 0
      %2393 = vmatpush1.bf16.msra.mxu0 0
      %2394 = vmatprep.mubr.bf16.mxu0 0
      %2395 = vmatmul.mubr.bf16.gmra.mrb[0].mxu0 %v2354
      %v2396 = vpop.f32.mrb[0].mxu0
      %v2397 = vadd.f32 0.0, %v2396
      %v2398 = vpop.f32.mrb[0].mxu0
      %v2399 = vpop.f32.mrb[0].mxu0
      %v2400 = vadd.f32 0.0, %v2399
      %v2401 = vpop.f32.mrb[0].mxu0
      %2402 = vmatprep.mubr.bf16.mxu0 0
      %2403 = vmatmul.mubr.bf16.gmra.mrb[0].mxu0 %v2355
      %v2404 = vpop.f32.mrb[0].mxu0
      %v2405 = vadd.f32 0.0, %v2404
      %v2406 = vpop.f32.mrb[0].mxu0
      %v2407 = vpop.f32.mrb[0].mxu0
      %v2408 = vadd.f32 0.0, %v2407
      %v2409 = vpop.f32.mrb[0].mxu0
      %2410 = vmatprep.mubr.bf16.mxu0 0
      %2411 = vmatmul.mubr.bf16.gmra.mrb[0].mxu0 %v2356
      %v2412 = vpop.f32.mrb[0].mxu0
      %v2413 = vadd.f32 0.0, %v2412
      %v2414 = vpop.f32.mrb[0].mxu0
      %v2415 = vpop.f32.mrb[0].mxu0
      %v2416 = vadd.f32 0.0, %v2415
      %v2417 = vpop.f32.mrb[0].mxu0
      %2418 = vmatprep.mubr.bf16.mxu0 0
      %2419 = vmatmul.mubr.bf16.gmra.mrb[0].mxu0 %v2357
      %v2420 = vpop.f32.mrb[0].mxu0
      %v2421 = vadd.f32 0.0, %v2420
      %v2422 = vpop.f32.mrb[0].mxu0
      %v2423 = vpop.f32.mrb[0].mxu0
      %v2424 = vadd.f32 0.0, %v2423
      %v2425 = vpop.f32.mrb[0].mxu0
      %2426 = vmatprep.mubr.bf16.mxu0 0
      %2427 = vmatmul.mubr.bf16.gmra.mrb[0].mxu0 %v2358
      %v2428 = vpop.f32.mrb[0].mxu0
      %v2429 = vadd.f32 0.0, %v2428
      %v2430 = vpop.f32.mrb[0].mxu0
      %v2431 = vpop.f32.mrb[0].mxu0
      %v2432 = vadd.f32 0.0, %v2431
      %v2433 = vpop.f32.mrb[0].mxu0
      %2434 = vmatprep.mubr.bf16.mxu0 0
      %2435 = vmatmul.mubr.bf16.gmra.mrb[0].mxu0 %v2359
      %v2436 = vpop.f32.mrb[0].mxu0
      %v2437 = vadd.f32 0.0, %v2436
      %v2438 = vpop.f32.mrb[0].mxu0
      %v2439 = vpop.f32.mrb[0].mxu0
      %v2440 = vadd.f32 0.0, %v2439
      %v2441 = vpop.f32.mrb[0].mxu0
      %2442 = vmatprep.mubr.bf16.mxu0 0
      %2443 = vmatmul.mubr.bf16.gmra.mrb[0].mxu0 %v2360
      %v2444 = vpop.f32.mrb[0].mxu0
      %v2445 = vadd.f32 0.0, %v2444
      %v2446 = vpop.f32.mrb[0].mxu0
      %v2447 = vpop.f32.mrb[0].mxu0
      %v2448 = vadd.f32 0.0, %v2447
      %v2449 = vpop.f32.mrb[0].mxu0
      %2450 = vmatprep.mubr.bf16.mxu0 0
      %2451 = vmatmul.mubr.bf16.gmra.mrb[0].mxu0 %v2361
      %v2452 = vpop.f32.mrb[0].mxu0
      %v2453 = vadd.f32 0.0, %v2452
      %v2454 = vpop.f32.mrb[0].mxu0
      %v2455 = vpop.f32.mrb[0].mxu0
      %v2456 = vadd.f32 0.0, %v2455
      %v2457 = vpop.f32.mrb[0].mxu0
      %2458 = vdwg.mxu0
      %v2459 = vrcp.pop %v2323
      %v2460 = vrcp.pop %v2325
      %v2461 = vrcp.pop %v2327
      %v2462 = vrcp.pop %v2329
      %v2463 = vrcp.pop %v2331
      %v2464 = vrcp.pop %v2333
      %v2465 = vrcp.pop %v2335
      %v2466 = vrcp.pop %v2337
      %v2467 = vrcp.pop %v2339
      %v2468 = vrcp.pop %v2341
      %v2469 = vrcp.pop %v2343
      %v2470 = vrcp.pop %v2345
      %v2471 = vrcp.pop %v2347
      %v2472 = vrcp.pop %v2349
      %v2473 = vrcp.pop %v2351
      %v2474 = vrcp.pop %v2353
      %v2475 = vmul.f32 %v2397, %v2459
      %v2476 = vmul.f32 %v2400, %v2460
      %v2477 = vmul.f32 %v2405, %v2461
      %v2478 = vmul.f32 %v2408, %v2462
      %v2479 = vmul.f32 %v2413, %v2463
      %v2480 = vmul.f32 %v2416, %v2464
      %v2481 = vmul.f32 %v2421, %v2465
      %v2482 = vmul.f32 %v2424, %v2466
      %v2483 = vmul.f32 %v2429, %v2467
      %v2484 = vmul.f32 %v2432, %v2468
      %v2485 = vmul.f32 %v2437, %v2469
      %v2486 = vmul.f32 %v2440, %v2470
      %v2487 = vmul.f32 %v2445, %v2471
      %v2488 = vmul.f32 %v2448, %v2472
      %v2489 = vmul.f32 %v2453, %v2473
      %v2490 = vmul.f32 %v2456, %v2474
      %v2491 = vmul.f32 %v418, 0.25
      %v2492 = vmul.f32 %v422, 0.25
      %v2493 = vmul.f32 %v428, 0.25
      %v2494 = vmul.f32 %v432, 0.25
      %v2495 = vmul.f32 %v438, 0.25
      %v2496 = vmul.f32 %v442, 0.25
      %v2497 = vmul.f32 %v448, 0.25
      %v2498 = vmul.f32 %v452, 0.25
      %v2499 = vmul.f32 %v458, 0.25
      %v2500 = vmul.f32 %v462, 0.25
      %v2501 = vmul.f32 %v468, 0.25
      %v2502 = vmul.f32 %v472, 0.25
      %v2503 = vmul.f32 %v478, 0.25
      %v2504 = vmul.f32 %v482, 0.25
      %v2505 = vmul.f32 %v488, 0.25
      %v2506 = vmul.f32 %v492, 0.25
      %v2507 = vpack.c.bf16 %v2492, %v2491
      %v2508 = vpack.c.bf16 %v2494, %v2493
      %v2509 = vpack.c.bf16 %v2496, %v2495
      %v2510 = vpack.c.bf16 %v2498, %v2497
      %v2511 = vpack.c.bf16 %v2500, %v2499
      %v2512 = vpack.c.bf16 %v2502, %v2501
      %v2513 = vpack.c.bf16 %v2504, %v2503
      %v2514 = vpack.c.bf16 %v2506, %v2505
      %2523 = vrot.lane.b32.xlu0 %v2507, 112
      %v2524 = vpop.permute.xlu0 %2523
      %2525 = vrot.lane.b32.xlu0 %v2508, 112
      %v2526 = vpop.permute.xlu0 %2525
      %2527 = vrot.lane.b32.xlu0 %v2509, 112
      %v2528 = vpop.permute.xlu0 %2527
      %2529 = vrot.lane.b32.xlu0 %v2510, 112
      %v2530 = vpop.permute.xlu0 %2529
      %2531 = vrot.lane.b32.xlu0 %v2511, 112
      %v2532 = vpop.permute.xlu0 %2531
      %2533 = vrot.lane.b32.xlu0 %v2512, 112
      %v2534 = vpop.permute.xlu0 %2533
      %2535 = vrot.lane.b32.xlu0 %v2513, 112
      %v2536 = vpop.permute.xlu0 %2535
      %2537 = vrot.lane.b32.xlu0 %v2514, 112
      %v2538 = vpop.permute.xlu0 %2537
      %v2540 = vsel %vm601, %v2524, 0
      %v2543 = vsel %vm601, %v2526, 0
      %v2546 = vsel %vm601, %v2528, 0
      %v2549 = vsel %vm601, %v2530, 0
      %v2552 = vsel %vm601, %v2532, 0
      %v2555 = vsel %vm601, %v2534, 0
      %v2558 = vsel %vm601, %v2536, 0
      %v2561 = vsel %vm601, %v2538, 0
      %2563 = vmatprep.subr.bf16.mxu0 0
      %2564 = vmatpush1.bf16.xpose.msra.mxu0 %v627
      %2565 = vmatprep.subr.bf16.mxu0 0
      %2566 = vmatpush1.bf16.xpose.msra.mxu0 %v630
      %2567 = vmatprep.subr.bf16.mxu0 0
      %2568 = vmatpush1.bf16.xpose.msra.mxu0 %v633
      %2569 = vmatprep.subr.bf16.mxu0 0
      %2570 = vmatpush1.bf16.xpose.msra.mxu0 %v636
      %2571 = vmatprep.subr.bf16.mxu0 0
      %2572 = vmatpush1.bf16.xpose.msra.mxu0 %v639
      %2573 = vmatprep.subr.bf16.mxu0 0
      %2574 = vmatpush1.bf16.xpose.msra.mxu0 %v642
      %2575 = vmatprep.subr.bf16.mxu0 0
      %2576 = vmatpush1.bf16.xpose.msra.mxu0 %v645
      %2577 = vmatprep.subr.bf16.mxu0 0
      %2578 = vmatpush1.bf16.xpose.msra.mxu0 %v648
      %2579 = vmatprep.subr.bf16.mxu0 0
      %2580 = vmatpush1.bf16.xpose.msra.mxu0 0
      %2581 = vmatprep.subr.bf16.mxu0 0
      %2582 = vmatpush1.bf16.xpose.msra.mxu0 0
      %2583 = vmatprep.subr.bf16.mxu0 0
      %2584 = vmatpush1.bf16.xpose.msra.mxu0 0
      %2585 = vmatprep.subr.bf16.mxu0 0
      %2586 = vmatpush1.bf16.xpose.msra.mxu0 0
      %2587 = vmatprep.subr.bf16.mxu0 0
      %2588 = vmatpush1.bf16.xpose.msra.mxu0 0
      %2589 = vmatprep.subr.bf16.mxu0 0
      %2590 = vmatpush1.bf16.xpose.msra.mxu0 0
      %2591 = vmatprep.subr.bf16.mxu0 0
      %2592 = vmatpush1.bf16.xpose.msra.mxu0 0
      %2593 = vmatprep.subr.bf16.mxu0 0
      %2594 = vmatpush1.bf16.xpose.msra.mxu0 0
      %2595 = vmatprep.mubr.bf16.mxu0 0
      %2596 = vmatmul.mubr.bf16.gmra.mrb[0].mxu0 %v2540
      %v2597 = vpop.f32.mrb[0].mxu0
      %v2598 = vadd.f32 0.0, %v2597
      %v2599 = vpop.f32.mrb[0].mxu0
      %v2600 = vpop.f32.mrb[0].mxu0
      %v2601 = vadd.f32 0.0, %v2600
      %v2602 = vpop.f32.mrb[0].mxu0
      %2603 = vmatprep.mubr.bf16.mxu0 0
      %2604 = vmatmul.mubr.bf16.gmra.mrb[0].mxu0 %v2543
      %v2605 = vpop.f32.mrb[0].mxu0
      %v2606 = vadd.f32 0.0, %v2605
      %v2607 = vpop.f32.mrb[0].mxu0
      %v2608 = vpop.f32.mrb[0].mxu0
      %v2609 = vadd.f32 0.0, %v2608
      %v2610 = vpop.f32.mrb[0].mxu0
      %2611 = vmatprep.mubr.bf16.mxu0 0
      %2612 = vmatmul.mubr.bf16.gmra.mrb[0].mxu0 %v2546
      %v2613 = vpop.f32.mrb[0].mxu0
      %v2614 = vadd.f32 0.0, %v2613
      %v2615 = vpop.f32.mrb[0].mxu0
      %v2616 = vpop.f32.mrb[0].mxu0
      %v2617 = vadd.f32 0.0, %v2616
      %v2618 = vpop.f32.mrb[0].mxu0
      %2619 = vmatprep.mubr.bf16.mxu0 0
      %2620 = vmatmul.mubr.bf16.gmra.mrb[0].mxu0 %v2549
      %v2621 = vpop.f32.mrb[0].mxu0
      %v2622 = vadd.f32 0.0, %v2621
      %v2623 = vpop.f32.mrb[0].mxu0
      %v2624 = vpop.f32.mrb[0].mxu0
      %v2625 = vadd.f32 0.0, %v2624
      %v2626 = vpop.f32.mrb[0].mxu0
      %2627 = vmatprep.mubr.bf16.mxu0 0
      %2628 = vmatmul.mubr.bf16.gmra.mrb[0].mxu0 %v2552
      %v2629 = vpop.f32.mrb[0].mxu0
      %v2630 = vadd.f32 0.0, %v2629
      %v2631 = vpop.f32.mrb[0].mxu0
      %v2632 = vpop.f32.mrb[0].mxu0
      %v2633 = vadd.f32 0.0, %v2632
      %v2634 = vpop.f32.mrb[0].mxu0
      %2635 = vmatprep.mubr.bf16.mxu0 0
      %2636 = vmatmul.mubr.bf16.gmra.mrb[0].mxu0 %v2555
      %v2637 = vpop.f32.mrb[0].mxu0
      %v2638 = vadd.f32 0.0, %v2637
      %v2639 = vpop.f32.mrb[0].mxu0
      %v2640 = vpop.f32.mrb[0].mxu0
      %v2641 = vadd.f32 0.0, %v2640
      %v2642 = vpop.f32.mrb[0].mxu0
      %2643 = vmatprep.mubr.bf16.mxu0 0
      %2644 = vmatmul.mubr.bf16.gmra.mrb[0].mxu0 %v2558
      %v2645 = vpop.f32.mrb[0].mxu0
      %v2646 = vadd.f32 0.0, %v2645
      %v2647 = vpop.f32.mrb[0].mxu0
      %v2648 = vpop.f32.mrb[0].mxu0
      %v2649 = vadd.f32 0.0, %v2648
      %v2650 = vpop.f32.mrb[0].mxu0
      %2651 = vmatprep.mubr.bf16.mxu0 0
      %2652 = vmatmul.mubr.bf16.gmra.mrb[0].mxu0 %v2561
      %v2653 = vpop.f32.mrb[0].mxu0
      %v2654 = vadd.f32 0.0, %v2653
      %v2655 = vpop.f32.mrb[0].mxu0
      %v2656 = vpop.f32.mrb[0].mxu0
      %v2657 = vadd.f32 0.0, %v2656
      %v2658 = vpop.f32.mrb[0].mxu0
      %2659 = vdwg.mxu0
      %s2661 = sor.u32 256, 1
      %2662 = vrot.lane.b32.xlu0 %v2598, %s2661
      %v2663 = vpop.permute.xlu0 %2662
      %s2665 = sor.u32 256, 9
      %2666 = vrot.lane.b32.xlu0 %v2601, %s2665
      %v2667 = vpop.permute.xlu0 %2666
      %s2669 = sor.u32 256, 17
      %2670 = vrot.lane.b32.xlu0 %v2606, %s2669
      %v2671 = vpop.permute.xlu0 %2670
      %s2673 = sor.u32 256, 25
      %2674 = vrot.lane.b32.xlu0 %v2609, %s2673
      %v2675 = vpop.permute.xlu0 %2674
      %s2677 = sor.u32 256, 33
      %2678 = vrot.lane.b32.xlu0 %v2614, %s2677
      %v2679 = vpop.permute.xlu0 %2678
      %s2681 = sor.u32 256, 41
      %2682 = vrot.lane.b32.xlu0 %v2617, %s2681
      %v2683 = vpop.permute.xlu0 %2682
      %s2685 = sor.u32 256, 49
      %2686 = vrot.lane.b32.xlu0 %v2622, %s2685
      %v2687 = vpop.permute.xlu0 %2686
      %s2689 = sor.u32 256, 57
      %2690 = vrot.lane.b32.xlu0 %v2625, %s2689
      %v2691 = vpop.permute.xlu0 %2690
      %s2693 = sor.u32 256, 65
      %2694 = vrot.lane.b32.xlu0 %v2630, %s2693
      %v2695 = vpop.permute.xlu0 %2694
      %s2697 = sor.u32 256, 73
      %2698 = vrot.lane.b32.xlu0 %v2633, %s2697
      %v2699 = vpop.permute.xlu0 %2698
      %s2701 = sor.u32 256, 81
      %2702 = vrot.lane.b32.xlu0 %v2638, %s2701
      %v2703 = vpop.permute.xlu0 %2702
      %s2705 = sor.u32 256, 89
      %2706 = vrot.lane.b32.xlu0 %v2641, %s2705
      %v2707 = vpop.permute.xlu0 %2706
      %s2709 = sor.u32 256, 97
      %2710 = vrot.lane.b32.xlu0 %v2646, %s2709
      %v2711 = vpop.permute.xlu0 %2710
      %s2713 = sor.u32 256, 105
      %2714 = vrot.lane.b32.xlu0 %v2649, %s2713
      %v2715 = vpop.permute.xlu0 %2714
      %s2717 = sor.u32 256, 113
      %2718 = vrot.lane.b32.xlu0 %v2654, %s2717
      %v2719 = vpop.permute.xlu0 %2718
      %s2721 = sor.u32 256, 121
      %2722 = vrot.lane.b32.xlu0 %v2657, %s2721
      %v2723 = vpop.permute.xlu0 %2722
      %2732 = vrot.lane.b32.xlu0 %v1880, 96
      %v2733 = vpop.permute.xlu0 %2732
      %2734 = vrot.lane.b32.xlu0 %v1881, 96
      %v2735 = vpop.permute.xlu0 %2734
      %2736 = vrot.lane.b32.xlu0 %v1882, 96
      %v2737 = vpop.permute.xlu0 %2736
      %2738 = vrot.lane.b32.xlu0 %v1883, 96
      %v2739 = vpop.permute.xlu0 %2738
      %2740 = vrot.lane.b32.xlu0 %v1884, 96
      %v2741 = vpop.permute.xlu0 %2740
      %2742 = vrot.lane.b32.xlu0 %v1885, 96
      %v2743 = vpop.permute.xlu0 %2742
      %2744 = vrot.lane.b32.xlu0 %v1886, 96
      %v2745 = vpop.permute.xlu0 %2744
      %2746 = vrot.lane.b32.xlu0 %v1887, 96
      %v2747 = vpop.permute.xlu0 %2746
      %v2749 = vsel %vm601, %v2733, 0
      %v2752 = vsel %vm601, %v2735, 0
      %v2755 = vsel %vm601, %v2737, 0
      %v2758 = vsel %vm601, %v2739, 0
      %v2761 = vsel %vm601, %v2741, 0
      %v2764 = vsel %vm601, %v2743, 0
      %v2767 = vsel %vm601, %v2745, 0
      %v2770 = vsel %vm601, %v2747, 0
      %2772 = vmatprep.subr.bf16.mxu0 0
      %2773 = vmatpush1.bf16.xpose.msra.mxu0 %v2749
      %2774 = vmatprep.subr.bf16.mxu0 0
      %2775 = vmatpush1.bf16.xpose.msra.mxu0 %v2752
      %2776 = vmatprep.subr.bf16.mxu0 0
      %2777 = vmatpush1.bf16.xpose.msra.mxu0 %v2755
      %2778 = vmatprep.subr.bf16.mxu0 0
      %2779 = vmatpush1.bf16.xpose.msra.mxu0 %v2758
      %2780 = vmatprep.subr.bf16.mxu0 0
      %2781 = vmatpush1.bf16.xpose.msra.mxu0 %v2761
      %2782 = vmatprep.subr.bf16.mxu0 0
      %2783 = vmatpush1.bf16.xpose.msra.mxu0 %v2764
      %2784 = vmatprep.subr.bf16.mxu0 0
      %2785 = vmatpush1.bf16.xpose.msra.mxu0 %v2767
      %2786 = vmatprep.subr.bf16.mxu0 0
      %2787 = vmatpush1.bf16.xpose.msra.mxu0 %v2770
      %2788 = vmatprep.subr.bf16.mxu0 0
      %2789 = vmatpush1.bf16.xpose.msra.mxu0 0
      %2790 = vmatprep.subr.bf16.mxu0 0
      %2791 = vmatpush1.bf16.xpose.msra.mxu0 0
      %2792 = vmatprep.subr.bf16.mxu0 0
      %2793 = vmatpush1.bf16.xpose.msra.mxu0 0
      %2794 = vmatprep.subr.bf16.mxu0 0
      %2795 = vmatpush1.bf16.xpose.msra.mxu0 0
      %2796 = vmatprep.subr.bf16.mxu0 0
      %2797 = vmatpush1.bf16.xpose.msra.mxu0 0
      %2798 = vmatprep.subr.bf16.mxu0 0
      %2799 = vmatpush1.bf16.xpose.msra.mxu0 0
      %2800 = vmatprep.subr.bf16.mxu0 0
      %2801 = vmatpush1.bf16.xpose.msra.mxu0 0
      %2802 = vmatprep.subr.bf16.mxu0 0
      %2803 = vmatpush1.bf16.xpose.msra.mxu0 0
      %2804 = vmatprep.mubr.bf16.mxu0 0
      %2805 = vmatmul.mubr.bf16.gmra.mrb[0].mxu0 %v2540
      %v2806 = vpop.f32.mrb[0].mxu0
      %v2807 = vadd.f32 %v2663, %v2806
      %v2808 = vpop.f32.mrb[0].mxu0
      %v2809 = vpop.f32.mrb[0].mxu0
      %v2810 = vadd.f32 %v2667, %v2809
      %v2811 = vpop.f32.mrb[0].mxu0
      %2812 = vmatprep.mubr.bf16.mxu0 0
      %2813 = vmatmul.mubr.bf16.gmra.mrb[0].mxu0 %v2543
      %v2814 = vpop.f32.mrb[0].mxu0
      %v2815 = vadd.f32 %v2671, %v2814
      %v2816 = vpop.f32.mrb[0].mxu0
      %v2817 = vpop.f32.mrb[0].mxu0
      %v2818 = vadd.f32 %v2675, %v2817
      %v2819 = vpop.f32.mrb[0].mxu0
      %2820 = vmatprep.mubr.bf16.mxu0 0
      %2821 = vmatmul.mubr.bf16.gmra.mrb[0].mxu0 %v2546
      %v2822 = vpop.f32.mrb[0].mxu0
      %v2823 = vadd.f32 %v2679, %v2822
      %v2824 = vpop.f32.mrb[0].mxu0
      %v2825 = vpop.f32.mrb[0].mxu0
      %v2826 = vadd.f32 %v2683, %v2825
      %v2827 = vpop.f32.mrb[0].mxu0
      %2828 = vmatprep.mubr.bf16.mxu0 0
      %2829 = vmatmul.mubr.bf16.gmra.mrb[0].mxu0 %v2549
      %v2830 = vpop.f32.mrb[0].mxu0
      %v2831 = vadd.f32 %v2687, %v2830
      %v2832 = vpop.f32.mrb[0].mxu0
      %v2833 = vpop.f32.mrb[0].mxu0
      %v2834 = vadd.f32 %v2691, %v2833
      %v2835 = vpop.f32.mrb[0].mxu0
      %2836 = vmatprep.mubr.bf16.mxu0 0
      %2837 = vmatmul.mubr.bf16.gmra.mrb[0].mxu0 %v2552
      %v2838 = vpop.f32.mrb[0].mxu0
      %v2839 = vadd.f32 %v2695, %v2838
      %v2840 = vpop.f32.mrb[0].mxu0
      %v2841 = vpop.f32.mrb[0].mxu0
      %v2842 = vadd.f32 %v2699, %v2841
      %v2843 = vpop.f32.mrb[0].mxu0
      %2844 = vmatprep.mubr.bf16.mxu0 0
      %2845 = vmatmul.mubr.bf16.gmra.mrb[0].mxu0 %v2555
      %v2846 = vpop.f32.mrb[0].mxu0
      %v2847 = vadd.f32 %v2703, %v2846
      %v2848 = vpop.f32.mrb[0].mxu0
      %v2849 = vpop.f32.mrb[0].mxu0
      %v2850 = vadd.f32 %v2707, %v2849
      %v2851 = vpop.f32.mrb[0].mxu0
      %2852 = vmatprep.mubr.bf16.mxu0 0
      %2853 = vmatmul.mubr.bf16.gmra.mrb[0].mxu0 %v2558
      %v2854 = vpop.f32.mrb[0].mxu0
      %v2855 = vadd.f32 %v2711, %v2854
      %v2856 = vpop.f32.mrb[0].mxu0
      %v2857 = vpop.f32.mrb[0].mxu0
      %v2858 = vadd.f32 %v2715, %v2857
      %v2859 = vpop.f32.mrb[0].mxu0
      %2860 = vmatprep.mubr.bf16.mxu0 0
      %2861 = vmatmul.mubr.bf16.gmra.mrb[0].mxu0 %v2561
      %v2862 = vpop.f32.mrb[0].mxu0
      %v2863 = vadd.f32 %v2719, %v2862
      %v2864 = vpop.f32.mrb[0].mxu0
      %v2865 = vpop.f32.mrb[0].mxu0
      %v2866 = vadd.f32 %v2723, %v2865
      %v2867 = vpop.f32.mrb[0].mxu0
      %2868 = vdwg.mxu0
      %v2869 = vsel %vm513, %v2807, -1e+30
      %v2870 = vsel %vm514, %v2810, -1e+30
      %v2871 = vsel %vm515, %v2815, -1e+30
      %v2872 = vsel %vm516, %v2818, -1e+30
      %v2873 = vsel %vm517, %v2823, -1e+30
      %v2874 = vsel %vm518, %v2826, -1e+30
      %v2875 = vsel %vm519, %v2831, -1e+30
      %v2876 = vsel %vm520, %v2834, -1e+30
      %v2877 = vsel %vm521, %v2839, -1e+30
      %v2878 = vsel %vm522, %v2842, -1e+30
      %v2879 = vsel %vm523, %v2847, -1e+30
      %v2880 = vsel %vm524, %v2850, -1e+30
      %v2881 = vsel %vm525, %v2855, -1e+30
      %v2882 = vsel %vm526, %v2858, -1e+30
      %v2883 = vsel %vm527, %v2863, -1e+30
      %v2884 = vsel %vm528, %v2866, -1e+30
      %2885 = vmax.xlane.f32.xlu0 %v2869
      %v2886 = vpop.xlane.xlu0 %2885
      %2887 = vmax.xlane.f32.xlu0 %v2870
      %v2888 = vpop.xlane.xlu0 %2887
      %2889 = vmax.xlane.f32.xlu0 %v2871
      %v2890 = vpop.xlane.xlu0 %2889
      %2891 = vmax.xlane.f32.xlu0 %v2872
      %v2892 = vpop.xlane.xlu0 %2891
      %2893 = vmax.xlane.f32.xlu0 %v2873
      %v2894 = vpop.xlane.xlu0 %2893
      %2895 = vmax.xlane.f32.xlu0 %v2874
      %v2896 = vpop.xlane.xlu0 %2895
      %2897 = vmax.xlane.f32.xlu0 %v2875
      %v2898 = vpop.xlane.xlu0 %2897
      %2899 = vmax.xlane.f32.xlu0 %v2876
      %v2900 = vpop.xlane.xlu0 %2899
      %2901 = vmax.xlane.f32.xlu0 %v2877
      %v2902 = vpop.xlane.xlu0 %2901
      %2903 = vmax.xlane.f32.xlu0 %v2878
      %v2904 = vpop.xlane.xlu0 %2903
      %2905 = vmax.xlane.f32.xlu0 %v2879
      %v2906 = vpop.xlane.xlu0 %2905
      %2907 = vmax.xlane.f32.xlu0 %v2880
      %v2908 = vpop.xlane.xlu0 %2907
      %2909 = vmax.xlane.f32.xlu0 %v2881
      %v2910 = vpop.xlane.xlu0 %2909
      %2911 = vmax.xlane.f32.xlu0 %v2882
      %v2912 = vpop.xlane.xlu0 %2911
      %2913 = vmax.xlane.f32.xlu0 %v2883
      %v2914 = vpop.xlane.xlu0 %2913
      %2915 = vmax.xlane.f32.xlu0 %v2884
      %v2916 = vpop.xlane.xlu0 %2915
      %v2917 = vsub.f32 %v2869, %v2886
      %v2918 = vsub.f32 %v2870, %v2888
      %v2919 = vsub.f32 %v2871, %v2890
      %v2920 = vsub.f32 %v2872, %v2892
      %v2921 = vsub.f32 %v2873, %v2894
      %v2922 = vsub.f32 %v2874, %v2896
      %v2923 = vsub.f32 %v2875, %v2898
      %v2924 = vsub.f32 %v2876, %v2900
      %v2925 = vsub.f32 %v2877, %v2902
      %v2926 = vsub.f32 %v2878, %v2904
      %v2927 = vsub.f32 %v2879, %v2906
      %v2928 = vsub.f32 %v2880, %v2908
      %v2929 = vsub.f32 %v2881, %v2910
      %v2930 = vsub.f32 %v2882, %v2912
      %v2931 = vsub.f32 %v2883, %v2914
      %v2932 = vsub.f32 %v2884, %v2916
      %v2933 = vmul.f32 %v2917, 1.442695
      %v2934 = vpow.pop %v2933
      %v2935 = vmul.f32 %v2918, 1.442695
      %v2936 = vpow.pop %v2935
      %v2937 = vmul.f32 %v2919, 1.442695
      %v2938 = vpow.pop %v2937
      %v2939 = vmul.f32 %v2920, 1.442695
      %v2940 = vpow.pop %v2939
      %v2941 = vmul.f32 %v2921, 1.442695
      %v2942 = vpow.pop %v2941
      %v2943 = vmul.f32 %v2922, 1.442695
      %v2944 = vpow.pop %v2943
      %v2945 = vmul.f32 %v2923, 1.442695
      %v2946 = vpow.pop %v2945
      %v2947 = vmul.f32 %v2924, 1.442695
      %v2948 = vpow.pop %v2947
      %v2949 = vmul.f32 %v2925, 1.442695
      %v2950 = vpow.pop %v2949
      %v2951 = vmul.f32 %v2926, 1.442695
      %v2952 = vpow.pop %v2951
      %v2953 = vmul.f32 %v2927, 1.442695
      %v2954 = vpow.pop %v2953
      %v2955 = vmul.f32 %v2928, 1.442695
      %v2956 = vpow.pop %v2955
      %v2957 = vmul.f32 %v2929, 1.442695
      %v2958 = vpow.pop %v2957
      %v2959 = vmul.f32 %v2930, 1.442695
      %v2960 = vpow.pop %v2959
      %v2961 = vmul.f32 %v2931, 1.442695
      %v2962 = vpow.pop %v2961
      %v2963 = vmul.f32 %v2932, 1.442695
      %v2964 = vpow.pop %v2963
      %2965 = vadd.xlane.f32.xlu0 %v2934
      %v2966 = vpop.xlane.xlu0 %2965
      %2967 = vadd.xlane.f32.xlu0 %v2936
      %v2968 = vpop.xlane.xlu0 %2967
      %2969 = vadd.xlane.f32.xlu0 %v2938
      %v2970 = vpop.xlane.xlu0 %2969
      %2971 = vadd.xlane.f32.xlu0 %v2940
      %v2972 = vpop.xlane.xlu0 %2971
      %2973 = vadd.xlane.f32.xlu0 %v2942
      %v2974 = vpop.xlane.xlu0 %2973
      %2975 = vadd.xlane.f32.xlu0 %v2944
      %v2976 = vpop.xlane.xlu0 %2975
      %2977 = vadd.xlane.f32.xlu0 %v2946
      %v2978 = vpop.xlane.xlu0 %2977
      %2979 = vadd.xlane.f32.xlu0 %v2948
      %v2980 = vpop.xlane.xlu0 %2979
      %2981 = vadd.xlane.f32.xlu0 %v2950
      %v2982 = vpop.xlane.xlu0 %2981
      %2983 = vadd.xlane.f32.xlu0 %v2952
      %v2984 = vpop.xlane.xlu0 %2983
      %2985 = vadd.xlane.f32.xlu0 %v2954
      %v2986 = vpop.xlane.xlu0 %2985
      %2987 = vadd.xlane.f32.xlu0 %v2956
      %v2988 = vpop.xlane.xlu0 %2987
      %2989 = vadd.xlane.f32.xlu0 %v2958
      %v2990 = vpop.xlane.xlu0 %2989
      %2991 = vadd.xlane.f32.xlu0 %v2960
      %v2992 = vpop.xlane.xlu0 %2991
      %2993 = vadd.xlane.f32.xlu0 %v2962
      %v2994 = vpop.xlane.xlu0 %2993
      %2995 = vadd.xlane.f32.xlu0 %v2964
      %v2996 = vpop.xlane.xlu0 %2995
      %v2997 = vpack.c.bf16 %v2936, %v2934
      %v2998 = vpack.c.bf16 %v2940, %v2938
      %v2999 = vpack.c.bf16 %v2944, %v2942
      %v3000 = vpack.c.bf16 %v2948, %v2946
      %v3001 = vpack.c.bf16 %v2952, %v2950
      %v3002 = vpack.c.bf16 %v2956, %v2954
      %v3003 = vpack.c.bf16 %v2960, %v2958
      %v3004 = vpack.c.bf16 %v2964, %v2962
      %3005 = vrot.lane.b32.xlu0 %v1880, 80
      %v3006 = vpop.permute.xlu0 %3005
      %3007 = vrot.lane.b32.xlu0 %v1881, 80
      %v3008 = vpop.permute.xlu0 %3007
      %3009 = vrot.lane.b32.xlu0 %v1882, 80
      %v3010 = vpop.permute.xlu0 %3009
      %3011 = vrot.lane.b32.xlu0 %v1883, 80
      %v3012 = vpop.permute.xlu0 %3011
      %3013 = vrot.lane.b32.xlu0 %v1884, 80
      %v3014 = vpop.permute.xlu0 %3013
      %3015 = vrot.lane.b32.xlu0 %v1885, 80
      %v3016 = vpop.permute.xlu0 %3015
      %3017 = vrot.lane.b32.xlu0 %v1886, 80
      %v3018 = vpop.permute.xlu0 %3017
      %3019 = vrot.lane.b32.xlu0 %v1887, 80
      %v3020 = vpop.permute.xlu0 %3019
      %3029 = vmatprep.subr.bf16.mxu0 0
      %3030 = vmatpush1.bf16.msra.mxu0 %v3006
      %3031 = vmatprep.subr.bf16.mxu0 0
      %3032 = vmatpush1.bf16.msra.mxu0 %v3008
      %3033 = vmatprep.subr.bf16.mxu0 0
      %3034 = vmatpush1.bf16.msra.mxu0 %v3010
      %3035 = vmatprep.subr.bf16.mxu0 0
      %3036 = vmatpush1.bf16.msra.mxu0 %v3012
      %3037 = vmatprep.subr.bf16.mxu0 0
      %3038 = vmatpush1.bf16.msra.mxu0 %v3014
      %3039 = vmatprep.subr.bf16.mxu0 0
      %3040 = vmatpush1.bf16.msra.mxu0 %v3016
      %3041 = vmatprep.subr.bf16.mxu0 0
      %3042 = vmatpush1.bf16.msra.mxu0 %v3018
      %3043 = vmatprep.subr.bf16.mxu0 0
      %3044 = vmatpush1.bf16.msra.mxu0 %v3020
      %3045 = vmatprep.subr.bf16.mxu0 0
      %3046 = vmatpush1.bf16.msra.mxu0 0
      %3047 = vmatprep.subr.bf16.mxu0 0
      %3048 = vmatpush1.bf16.msra.mxu0 0
      %3049 = vmatprep.subr.bf16.mxu0 0
      %3050 = vmatpush1.bf16.msra.mxu0 0
      %3051 = vmatprep.subr.bf16.mxu0 0
      %3052 = vmatpush1.bf16.msra.mxu0 0
      %3053 = vmatprep.subr.bf16.mxu0 0
      %3054 = vmatpush1.bf16.msra.mxu0 0
      %3055 = vmatprep.subr.bf16.mxu0 0
      %3056 = vmatpush1.bf16.msra.mxu0 0
      %3057 = vmatprep.subr.bf16.mxu0 0
      %3058 = vmatpush1.bf16.msra.mxu0 0
      %3059 = vmatprep.subr.bf16.mxu0 0
      %3060 = vmatpush1.bf16.msra.mxu0 0
      %3061 = vmatprep.mubr.bf16.mxu0 0
      %3062 = vmatmul.mubr.bf16.gmra.mrb[0].mxu0 %v2997
      %v3063 = vpop.f32.mrb[0].mxu0
      %v3064 = vadd.f32 0.0, %v3063
      %v3065 = vpop.f32.mrb[0].mxu0
      %v3066 = vpop.f32.mrb[0].mxu0
      %v3067 = vadd.f32 0.0, %v3066
      %v3068 = vpop.f32.mrb[0].mxu0
      %3069 = vmatprep.mubr.bf16.mxu0 0
      %3070 = vmatmul.mubr.bf16.gmra.mrb[0].mxu0 %v2998
      %v3071 = vpop.f32.mrb[0].mxu0
      %v3072 = vadd.f32 0.0, %v3071
      %v3073 = vpop.f32.mrb[0].mxu0
      %v3074 = vpop.f32.mrb[0].mxu0
      %v3075 = vadd.f32 0.0, %v3074
      %v3076 = vpop.f32.mrb[0].mxu0
      %3077 = vmatprep.mubr.bf16.mxu0 0
      %3078 = vmatmul.mubr.bf16.gmra.mrb[0].mxu0 %v2999
      %v3079 = vpop.f32.mrb[0].mxu0
      %v3080 = vadd.f32 0.0, %v3079
      %v3081 = vpop.f32.mrb[0].mxu0
      %v3082 = vpop.f32.mrb[0].mxu0
      %v3083 = vadd.f32 0.0, %v3082
      %v3084 = vpop.f32.mrb[0].mxu0
      %3085 = vmatprep.mubr.bf16.mxu0 0
      %3086 = vmatmul.mubr.bf16.gmra.mrb[0].mxu0 %v3000
      %v3087 = vpop.f32.mrb[0].mxu0
      %v3088 = vadd.f32 0.0, %v3087
      %v3089 = vpop.f32.mrb[0].mxu0
      %v3090 = vpop.f32.mrb[0].mxu0
      %v3091 = vadd.f32 0.0, %v3090
      %v3092 = vpop.f32.mrb[0].mxu0
      %3093 = vmatprep.mubr.bf16.mxu0 0
      %3094 = vmatmul.mubr.bf16.gmra.mrb[0].mxu0 %v3001
      %v3095 = vpop.f32.mrb[0].mxu0
      %v3096 = vadd.f32 0.0, %v3095
      %v3097 = vpop.f32.mrb[0].mxu0
      %v3098 = vpop.f32.mrb[0].mxu0
      %v3099 = vadd.f32 0.0, %v3098
      %v3100 = vpop.f32.mrb[0].mxu0
      %3101 = vmatprep.mubr.bf16.mxu0 0
      %3102 = vmatmul.mubr.bf16.gmra.mrb[0].mxu0 %v3002
      %v3103 = vpop.f32.mrb[0].mxu0
      %v3104 = vadd.f32 0.0, %v3103
      %v3105 = vpop.f32.mrb[0].mxu0
      %v3106 = vpop.f32.mrb[0].mxu0
      %v3107 = vadd.f32 0.0, %v3106
      %v3108 = vpop.f32.mrb[0].mxu0
      %3109 = vmatprep.mubr.bf16.mxu0 0
      %3110 = vmatmul.mubr.bf16.gmra.mrb[0].mxu0 %v3003
      %v3111 = vpop.f32.mrb[0].mxu0
      %v3112 = vadd.f32 0.0, %v3111
      %v3113 = vpop.f32.mrb[0].mxu0
      %v3114 = vpop.f32.mrb[0].mxu0
      %v3115 = vadd.f32 0.0, %v3114
      %v3116 = vpop.f32.mrb[0].mxu0
      %3117 = vmatprep.mubr.bf16.mxu0 0
      %3118 = vmatmul.mubr.bf16.gmra.mrb[0].mxu0 %v3004
      %v3119 = vpop.f32.mrb[0].mxu0
      %v3120 = vadd.f32 0.0, %v3119
      %v3121 = vpop.f32.mrb[0].mxu0
      %v3122 = vpop.f32.mrb[0].mxu0
      %v3123 = vadd.f32 0.0, %v3122
      %v3124 = vpop.f32.mrb[0].mxu0
      %3125 = vdwg.mxu0
      %v3126 = vrcp.pop %v2966
      %v3127 = vrcp.pop %v2968
      %v3128 = vrcp.pop %v2970
      %v3129 = vrcp.pop %v2972
      %v3130 = vrcp.pop %v2974
      %v3131 = vrcp.pop %v2976
      %v3132 = vrcp.pop %v2978
      %v3133 = vrcp.pop %v2980
      %v3134 = vrcp.pop %v2982
      %v3135 = vrcp.pop %v2984
      %v3136 = vrcp.pop %v2986
      %v3137 = vrcp.pop %v2988
      %v3138 = vrcp.pop %v2990
      %v3139 = vrcp.pop %v2992
      %v3140 = vrcp.pop %v2994
      %v3141 = vrcp.pop %v2996
      %v3142 = vmul.f32 %v3064, %v3126
      %v3143 = vmul.f32 %v3067, %v3127
      %v3144 = vmul.f32 %v3072, %v3128
      %v3145 = vmul.f32 %v3075, %v3129
      %v3146 = vmul.f32 %v3080, %v3130
      %v3147 = vmul.f32 %v3083, %v3131
      %v3148 = vmul.f32 %v3088, %v3132
      %v3149 = vmul.f32 %v3091, %v3133
      %v3150 = vmul.f32 %v3096, %v3134
      %v3151 = vmul.f32 %v3099, %v3135
      %v3152 = vmul.f32 %v3104, %v3136
      %v3153 = vmul.f32 %v3107, %v3137
      %v3154 = vmul.f32 %v3112, %v3138
      %v3155 = vmul.f32 %v3115, %v3139
      %v3156 = vmul.f32 %v3120, %v3140
      %v3157 = vmul.f32 %v3123, %v3141
      %3174 = vrot.lane.b32.xlu0 %v1864, 16
      %v3175 = vpop.permute.xlu0 %3174
      %3176 = vrot.lane.b32.xlu0 %v1865, 16
      %v3177 = vpop.permute.xlu0 %3176
      %3178 = vrot.lane.b32.xlu0 %v1866, 16
      %v3179 = vpop.permute.xlu0 %3178
      %3180 = vrot.lane.b32.xlu0 %v1867, 16
      %v3181 = vpop.permute.xlu0 %3180
      %3182 = vrot.lane.b32.xlu0 %v1868, 16
      %v3183 = vpop.permute.xlu0 %3182
      %3184 = vrot.lane.b32.xlu0 %v1869, 16
      %v3185 = vpop.permute.xlu0 %3184
      %3186 = vrot.lane.b32.xlu0 %v1870, 16
      %v3187 = vpop.permute.xlu0 %3186
      %3188 = vrot.lane.b32.xlu0 %v1871, 16
      %v3189 = vpop.permute.xlu0 %3188
      %3190 = vrot.lane.b32.xlu0 %v1872, 16
      %v3191 = vpop.permute.xlu0 %3190
      %3192 = vrot.lane.b32.xlu0 %v1873, 16
      %v3193 = vpop.permute.xlu0 %3192
      %3194 = vrot.lane.b32.xlu0 %v1874, 16
      %v3195 = vpop.permute.xlu0 %3194
      %3196 = vrot.lane.b32.xlu0 %v1875, 16
      %v3197 = vpop.permute.xlu0 %3196
      %3198 = vrot.lane.b32.xlu0 %v1876, 16
      %v3199 = vpop.permute.xlu0 %3198
      %3200 = vrot.lane.b32.xlu0 %v1877, 16
      %v3201 = vpop.permute.xlu0 %3200
      %3202 = vrot.lane.b32.xlu0 %v1878, 16
      %v3203 = vpop.permute.xlu0 %3202
      %3204 = vrot.lane.b32.xlu0 %v1879, 16
      %v3205 = vpop.permute.xlu0 %3204
      %3238 = vrot.lane.b32.xlu0 %v2475, 32
      %v3239 = vpop.permute.xlu0 %3238
      %3240 = vrot.lane.b32.xlu0 %v2476, 32
      %v3241 = vpop.permute.xlu0 %3240
      %3242 = vrot.lane.b32.xlu0 %v2477, 32
      %v3243 = vpop.permute.xlu0 %3242
      %3244 = vrot.lane.b32.xlu0 %v2478, 32
      %v3245 = vpop.permute.xlu0 %3244
      %3246 = vrot.lane.b32.xlu0 %v2479, 32
      %v3247 = vpop.permute.xlu0 %3246
      %3248 = vrot.lane.b32.xlu0 %v2480, 32
      %v3249 = vpop.permute.xlu0 %3248
      %3250 = vrot.lane.b32.xlu0 %v2481, 32
      %v3251 = vpop.permute.xlu0 %3250
      %3252 = vrot.lane.b32.xlu0 %v2482, 32
      %v3253 = vpop.permute.xlu0 %3252
      %3254 = vrot.lane.b32.xlu0 %v2483, 32
      %v3255 = vpop.permute.xlu0 %3254
      %3256 = vrot.lane.b32.xlu0 %v2484, 32
      %v3257 = vpop.permute.xlu0 %3256
      %3258 = vrot.lane.b32.xlu0 %v2485, 32
      %v3259 = vpop.permute.xlu0 %3258
      %3260 = vrot.lane.b32.xlu0 %v2486, 32
      %v3261 = vpop.permute.xlu0 %3260
      %3262 = vrot.lane.b32.xlu0 %v2487, 32
      %v3263 = vpop.permute.xlu0 %3262
      %3264 = vrot.lane.b32.xlu0 %v2488, 32
      %v3265 = vpop.permute.xlu0 %3264
      %3266 = vrot.lane.b32.xlu0 %v2489, 32
      %v3267 = vpop.permute.xlu0 %3266
      %3268 = vrot.lane.b32.xlu0 %v2490, 32
      %v3269 = vpop.permute.xlu0 %3268
      %3302 = vrot.lane.b32.xlu0 %v3142, 48
      %v3303 = vpop.permute.xlu0 %3302
      %3304 = vrot.lane.b32.xlu0 %v3143, 48
      %v3305 = vpop.permute.xlu0 %3304
      %3306 = vrot.lane.b32.xlu0 %v3144, 48
      %v3307 = vpop.permute.xlu0 %3306
      %3308 = vrot.lane.b32.xlu0 %v3145, 48
      %v3309 = vpop.permute.xlu0 %3308
      %3310 = vrot.lane.b32.xlu0 %v3146, 48
      %v3311 = vpop.permute.xlu0 %3310
      %3312 = vrot.lane.b32.xlu0 %v3147, 48
      %v3313 = vpop.permute.xlu0 %3312
      %3314 = vrot.lane.b32.xlu0 %v3148, 48
      %v3315 = vpop.permute.xlu0 %3314
      %3316 = vrot.lane.b32.xlu0 %v3149, 48
      %v3317 = vpop.permute.xlu0 %3316
      %3318 = vrot.lane.b32.xlu0 %v3150, 48
      %v3319 = vpop.permute.xlu0 %3318
      %3320 = vrot.lane.b32.xlu0 %v3151, 48
      %v3321 = vpop.permute.xlu0 %3320
      %3322 = vrot.lane.b32.xlu0 %v3152, 48
      %v3323 = vpop.permute.xlu0 %3322
      %3324 = vrot.lane.b32.xlu0 %v3153, 48
      %v3325 = vpop.permute.xlu0 %3324
      %3326 = vrot.lane.b32.xlu0 %v3154, 48
      %v3327 = vpop.permute.xlu0 %3326
      %3328 = vrot.lane.b32.xlu0 %v3155, 48
      %v3329 = vpop.permute.xlu0 %3328
      %3330 = vrot.lane.b32.xlu0 %v3156, 48
      %v3331 = vpop.permute.xlu0 %3330
      %3332 = vrot.lane.b32.xlu0 %v3157, 48
      %v3333 = vpop.permute.xlu0 %3332
      %v3350 = vsel %vm601, %v1229, %v3175
      %v3351 = vsel %vm601, %v1230, %v3177
      %v3352 = vsel %vm601, %v1231, %v3179
      %v3353 = vsel %vm601, %v1232, %v3181
      %v3354 = vsel %vm601, %v1233, %v3183
      %v3355 = vsel %vm601, %v1234, %v3185
      %v3356 = vsel %vm601, %v1235, %v3187
      %v3357 = vsel %vm601, %v1236, %v3189
      %v3358 = vsel %vm601, %v1237, %v3191
      %v3359 = vsel %vm601, %v1238, %v3193
      %v3360 = vsel %vm601, %v1239, %v3195
      %v3361 = vsel %vm601, %v1240, %v3197
      %v3362 = vsel %vm601, %v1241, %v3199
      %v3363 = vsel %vm601, %v1242, %v3201
      %v3364 = vsel %vm601, %v1243, %v3203
      %v3365 = vsel %vm601, %v1244, %v3205
      %vm3366 = vcmask 261120
      %v3367 = vsel %vm3366, %v3350, %v3239
      %v3368 = vsel %vm3366, %v3351, %v3241
      %v3369 = vsel %vm3366, %v3352, %v3243
      %v3370 = vsel %vm3366, %v3353, %v3245
      %v3371 = vsel %vm3366, %v3354, %v3247
      %v3372 = vsel %vm3366, %v3355, %v3249
      %v3373 = vsel %vm3366, %v3356, %v3251
      %v3374 = vsel %vm3366, %v3357, %v3253
      %v3375 = vsel %vm3366, %v3358, %v3255
      %v3376 = vsel %vm3366, %v3359, %v3257
      %v3377 = vsel %vm3366, %v3360, %v3259
      %v3378 = vsel %vm3366, %v3361, %v3261
      %v3379 = vsel %vm3366, %v3362, %v3263
      %v3380 = vsel %vm3366, %v3363, %v3265
      %v3381 = vsel %vm3366, %v3364, %v3267
      %v3382 = vsel %vm3366, %v3365, %v3269
      %vm3383 = vcmask 392192
      %v3384 = vsel %vm3383, %v3367, %v3303
      %v3385 = vsel %vm3383, %v3368, %v3305
      %v3386 = vsel %vm3383, %v3369, %v3307
      %v3387 = vsel %vm3383, %v3370, %v3309
      %v3388 = vsel %vm3383, %v3371, %v3311
      %v3389 = vsel %vm3383, %v3372, %v3313
      %v3390 = vsel %vm3383, %v3373, %v3315
      %v3391 = vsel %vm3383, %v3374, %v3317
      %v3392 = vsel %vm3383, %v3375, %v3319
      %v3393 = vsel %vm3383, %v3376, %v3321
      %v3394 = vsel %vm3383, %v3377, %v3323
      %v3395 = vsel %vm3383, %v3378, %v3325
      %v3396 = vsel %vm3383, %v3379, %v3327
      %v3397 = vsel %vm3383, %v3380, %v3329
      %v3398 = vsel %vm3383, %v3381, %v3331
      %v3399 = vsel %vm3383, %v3382, %v3333
      %3400 = vst.msk [vmem:[%s254] sm:$0xff] %vm356, %v3384
      %3401 = vst.msk [vmem:[%s254 + $0x8] sm:$0xff] %vm356, %v3385
      %3402 = vst.msk [vmem:[%s254 + $0x10] sm:$0xff] %vm356, %v3386
      %3403 = vst.msk [vmem:[%s254 + $0x18] sm:$0xff] %vm356, %v3387
      %3404 = vst.msk [vmem:[%s254 + $0x20] sm:$0xff] %vm356, %v3388
      %3405 = vst.msk [vmem:[%s254 + $0x28] sm:$0xff] %vm356, %v3389
      %3406 = vst.msk [vmem:[%s254 + $0x30] sm:$0xff] %vm356, %v3390
      %3407 = vst.msk [vmem:[%s254 + $0x38] sm:$0xff] %vm356, %v3391
      %3408 = vst.msk [vmem:[%s254 + $0x40] sm:$0xff] %vm356, %v3392
      %3409 = vst.msk [vmem:[%s254 + $0x48] sm:$0xff] %vm356, %v3393
      %3410 = vst.msk [vmem:[%s254 + $0x50] sm:$0xff] %vm356, %v3394
      %3411 = vst.msk [vmem:[%s254 + $0x58] sm:$0xff] %vm356, %v3395
      %3412 = vst.msk [vmem:[%s254 + $0x60] sm:$0xff] %vm356, %v3396
      %3413 = vst.msk [vmem:[%s254 + $0x68] sm:$0xff] %vm356, %v3397
      %3414 = vst.msk [vmem:[%s254 + $0x70] sm:$0xff] %vm356, %v3398
      %3415 = vst.msk [vmem:[%s254 + $0x78] sm:$0xff] %vm356, %v3399
      %p3416 = scmp.lt.s32.totalorder %s19, 1
      %s3417 = scalar_select %p3416, %s19, 1
      %p3418 = scmp.lt.s32.totalorder %s20, 0
      %s3419 = scalar_select %p3418, %s20, 0
      %s3420 = smul.addr %s3417, 16
      %s3421 = sadd.s32 %s3419, %s3420
      %s3422 = smul.addr %s3421, 8
      %s3423 = scalar_lea.vmem %s4, %s3422
      // Predicated region
      $region37: #{tpu_custom_call.1} parent=35 // pred_check
        %p3424 = pneg %p146
      $region38: #{tpu_custom_call.1} parent=35 // pred_check_branch
        %3426 = sbr.rel (%p3424) target = $region40
      $region39: #{tpu_custom_call.1} parent=35 // pred_region
        _
      $region40: #{tpu_custom_call.1} parent=35 // pred_fallthru
        _
    $region36: #{tpu_custom_call.1} parent=5 // pred_fallthru
      _
    %p3427 = scmp.le.s32.totalorder 2, %s10
    // Predicated region
    $region41: #{tpu_custom_call.1} parent=5 // pred_check
      %p3428 = pneg %p3427
    $region42: #{tpu_custom_call.1} parent=5 // pred_check_branch
      %3430 = sbr.rel (%p3428) target = $region44
    $region43: #{tpu_custom_call.1} parent=5 // pred_region
      %s3431 = ssub.s32 %s10, 2
      // Predicated region
      $region45: #{tpu_custom_call.1} parent=43 // pred_check
        %p3432 = pneg %p152
      $region46: #{tpu_custom_call.1} parent=43 // pred_check_branch
        %3434 = sbr.rel (%p3432) target = $region48
      $region47: #{tpu_custom_call.1} parent=43 // pred_region
        %p3435 = scmp.lt.s32.totalorder %s21, 1
        %s3436 = scalar_select %p3435, %s21, 1
        %p3437 = scmp.lt.s32.totalorder %s22, 0
        %s3438 = scalar_select %p3437, %s22, 0
        %s3439 = smul.addr %s3436, 16
        %s3440 = sadd.s32 %s3438, %s3439
        %s3441 = smul.addr %s3440, 8
        %s3442 = scalar_lea.vmem %s4, %s3441
      $region48: #{tpu_custom_call.1} parent=43 // pred_fallthru
        _
    $region44: #{tpu_custom_call.1} parent=5 // pred_fallthru
      _
  $region6: #{tpu_custom_call.1} parent=0 // loop_footer
    %s14 = sadd.s32 1, %s10
  $region7: #{tpu_custom_call.1} parent=0 // loop_footer_branch
    %9 = sbr.rel target = $region3
  $region8: #{tpu_custom_call.1} parent=0 // loop_exit
    _

</llo_original>
